<compile_context>
chip_gen: v5e
topology: v5e:2x2
jax: 0.10.0
libtpu: 0.0.40
codegen_flags: <defaults>
</compile_context>

<pallas_src>
import math

import jax
import jax.numpy as jnp
from jax.experimental import pallas as pl
from jax.experimental.pallas import tpu as pltpu


def _attkernel_kernel(xq_ref, xall_ref, mask_ref,
                      wq1_ref, bq1_ref, wk1_ref, bk1_ref, wv1_ref, bv1_ref,
                      wo1_ref, bo1_ref,
                      wv2_ref, bv2_ref, wo2_ref, bo2_ref,
                      hsum_ref,
                      o1_ref, o2_ref):
    # xq_ref  : (TB, H)        query rows for the agents of this tile
    # xall_ref: (A_pad, H)     full feature bank (resident, constant block index)
    # mask_ref: (TB, M, A_pad) adjacency rows for the agents of this tile
    # w*_ref  : (H, H) PyTorch-layout (out, in) weights; b*_ref: (1, H) biases
    # hsum_ref: (H, nh) one-hot head membership matrix
    TB, H = xq_ref.shape
    nh = hsum_ref.shape[1]
    dh = H // nh
    scale = 1.0 / math.sqrt(dh)

    x_all = xall_ref[...]            # (A_pad, H)
    hsum = hsum_ref[...]             # (H, nh)

    def proj(x2d, w_ref, b_ref):
        # PyTorch Linear: y = x @ W^T + b with W stored (out, in).
        # Contract dim 1 of both operands -> no transpose of W anywhere.
        y = jax.lax.dot_general(x2d, w_ref[...], (((1,), (1,)), ((), ())),
                                preferred_element_type=jnp.float32)
        return y + b_ref[...]

    # Static (unrolled) loop over the agents in this tile: each agent has its own
    # neighbourhood and a length-1 query, so the per-agent math stays purely 2-D.
    for b in range(TB):
        xq_b = xq_ref[pl.ds(b, 1), :]                                   # (1, H)
        mask_b = mask_ref[b]                                            # (M, A_pad)

        # x_feats[b] = mask[b] @ x   (== bmm(mask, broadcast_to(x, ...)) in torch)
        xf = jnp.dot(mask_b, x_all, preferred_element_type=jnp.float32)  # (M, H)

        # ---------------- MultiheadAttention #1: q = x[b], kv = x_feats[b] ----------------
        q1 = proj(xq_b, wq1_ref, bq1_ref)                               # (1, H)
        k1 = proj(xf, wk1_ref, bk1_ref)                                 # (M, H)
        v1 = proj(xf, wv1_ref, bv1_ref)                                 # (M, H)

        # Per-head scores via the head-sum matrix (avoids lane reshapes):
        #   s[m, h] = scale * sum_{d in head h} q1[d] * k1[m, d]
        s = jnp.dot((q1 * k1) * scale, hsum,
                    preferred_element_type=jnp.float32)                  # (M, nh)
        s_max = jnp.max(s, axis=0, keepdims=True)
        p = jnp.exp(s - s_max)
        w = p / jnp.sum(p, axis=0, keepdims=True)                        # softmax over M

        # Broadcast head weights back onto their dh lanes, weight values, reduce over M.
        w_lanes = jax.lax.dot_general(w, hsum, (((1,), (1,)), ((), ())),
                                      preferred_element_type=jnp.float32)  # (M, H)
        attn1 = jnp.sum(w_lanes * v1, axis=0, keepdims=True)               # (1, H)
        out1 = proj(attn1, wo1_ref, bo1_ref)                               # x_feats_1[b]

        # ---------------- MultiheadAttention #2: q = x[b], kv = out1 (length 1) ------------
        # softmax over a single key is exactly 1.0, so the q/k projections cancel and the
        # result is out_proj(v_proj(out1)) -- mathematically identical to the full MHA.
        v2 = proj(out1, wv2_ref, bv2_ref)
        out2 = proj(v2, wo2_ref, bo2_ref)                                  # x_feats_2[b]

        o1_ref[pl.ds(b, 1), :] = out1.astype(o1_ref.dtype)
        o2_ref[pl.ds(b, 1), :] = out2.astype(o2_ref.dtype)


def att_kernel_forward(x, mask, params_att1, params_att2, n_heads, *, tile_a=8):
    """x: (A, H) f32; mask: (A, M, A) adjacency; params_att*: dicts with PyTorch-layout
    MultiheadAttention weights {wq,bq,wk,bk,wv,bv,wo,bo}. Returns (x_feats_1, x_feats_2)."""
    A, H = x.shape
    assert mask.shape[0] == A and mask.shape[2] == A, "mask must be (A, max_neighbors, A)"
    M = mask.shape[1]
    nh = n_heads
    assert H % nh == 0, "hidden_dim must be divisible by n_heads"
    dh = H // nh

    # Tile of agents per grid step: multiple of 8 (sublane rule). Pad the agent axis with
    # cdiv instead of asserting divisibility; padded agents are sliced off at the end.
    tile_a = max(8, (tile_a // 8) * 8)
    a_pad = tile_a * pl.cdiv(A, tile_a)
    if a_pad != A:
        x_in = jnp.pad(x, ((0, a_pad - A), (0, 0)))
        mask_in = jnp.pad(mask, ((0, a_pad - A), (0, 0), (0, a_pad - A)))
    else:
        x_in, mask_in = x, mask

    # hsum[j, h] = 1 iff lane j belongs to head h (contiguous dh-lane chunks, torch order).
    hsum = jnp.repeat(jnp.eye(nh, dtype=jnp.float32), dh, axis=0)        # (H, nh)

    b2 = lambda b: b.reshape(1, H)
    p1, p2 = params_att1, params_att2

    full2d = lambda shape: pl.BlockSpec(shape, lambda i: (0, 0))

    o1, o2 = pl.pallas_call(
        _attkernel_kernel,
        out_shape=(jax.ShapeDtypeStruct((a_pad, H), x.dtype),
                   jax.ShapeDtypeStruct((a_pad, H), x.dtype)),
        grid_spec=pltpu.PrefetchScalarGridSpec(
            num_scalar_prefetch=0,
            grid=(a_pad // tile_a,),
            in_specs=[
                pl.BlockSpec((tile_a, H), lambda i: (i, 0)),             # query tile
                pl.BlockSpec((a_pad, H), lambda i: (0, 0)),              # full feature bank
                pl.BlockSpec((tile_a, M, a_pad), lambda i: (i, 0, 0)),   # adjacency tile
                full2d((H, H)), full2d((1, H)),                          # att1 Wq, bq
                full2d((H, H)), full2d((1, H)),                          # att1 Wk, bk
                full2d((H, H)), full2d((1, H)),                          # att1 Wv, bv
                full2d((H, H)), full2d((1, H)),                          # att1 Wo, bo
                full2d((H, H)), full2d((1, H)),                          # att2 Wv, bv
                full2d((H, H)), full2d((1, H)),                          # att2 Wo, bo
                full2d((H, nh)),                                         # head-sum matrix
            ],
            out_specs=[
                pl.BlockSpec((tile_a, H), lambda i: (i, 0)),
                pl.BlockSpec((tile_a, H), lambda i: (i, 0)),
            ],
        ),
        compiler_params=pltpu.CompilerParams(
            dimension_semantics=("parallel",),       # agent tiles are independent
            vmem_limit_bytes=32 * 1024 * 1024,
        ),
    )(x_in, x_in, mask_in,
      p1["wq"], b2(p1["bq"]), p1["wk"], b2(p1["bk"]),
      p1["wv"], b2(p1["bv"]), p1["wo"], b2(p1["bo"]),
      p2["wv"], b2(p2["bv"]), p2["wo"], b2(p2["bo"]),
      hsum)

    return o1[:A], o2[:A]


# ----------------------------- plain-JAX reference ---------------------------------------
def _mha_ref(q, kv, p, n_heads):
    # nn.MultiheadAttention (batch_first=True, dropout=0) forward in plain JAX.
    A, lq, H = q.shape
    lk = kv.shape[1]
    dh = H // n_heads
    Q = q @ p["wq"].T + p["bq"]
    K = kv @ p["wk"].T + p["bk"]
    V = kv @ p["wv"].T + p["bv"]
    Qh = Q.reshape(A, lq, n_heads, dh).transpose(0, 2, 1, 3)
    Kh = K.reshape(A, lk, n_heads, dh).transpose(0, 2, 1, 3)
    Vh = V.reshape(A, lk, n_heads, dh).transpose(0, 2, 1, 3)
    s = jnp.einsum("ahqd,ahkd->ahqk", Qh, Kh) / jnp.sqrt(jnp.float32(dh))
    w = jax.nn.softmax(s, axis=-1)
    o = jnp.einsum("ahqk,ahkd->ahqd", w, Vh)
    o = o.transpose(0, 2, 1, 3).reshape(A, lq, H)
    return o @ p["wo"].T + p["bo"]


def _att_kernel_ref(x, mask, p1, p2, n_heads):
    x_feats = jnp.einsum("ima,ah->imh", mask, x)     # broadcast + bmm of the torch code
    q = x[:, None, :]
    o1 = _mha_ref(q, x_feats, p1, n_heads)
    o2 = _mha_ref(q, o1, p2, n_heads)
    return o1[:, 0, :], o2[:, 0, :]


def _init_mha_params(key, H):
    ks = jax.random.split(key, 8)
    bound = 1.0 / math.sqrt(H)
    u = lambda k, shp: jax.random.uniform(k, shp, minval=-bound, maxval=bound,
                                          dtype=jnp.float32)
    return dict(wq=u(ks[0], (H, H)), bq=u(ks[1], (H,)),
                wk=u(ks[2], (H, H)), bk=u(ks[3], (H,)),
                wv=u(ks[4], (H, H)), bv=u(ks[5], (H,)),
                wo=u(ks[6], (H, H)), bo=u(ks[7], (H,)))


if __name__ == "__main__":
    # Small shapes consistent with AttKernel(n_agents, n_heads, hidden_dim)
    n_agents, n_heads, hidden_dim, max_neighbors = 16, 4, 32, 4

    key = jax.random.PRNGKey(0)
    kx, k1, k2 = jax.random.split(key, 3)

    x = jax.random.normal(kx, (n_agents, hidden_dim), dtype=jnp.float32)
    # Deterministic one-hot ring adjacency: neighbour m of agent i is agent (i + m) % A.
    neigh = (jnp.arange(n_agents)[:, None] + jnp.arange(max_neighbors)[None, :]) % n_agents
    mask = jax.nn.one_hot(neigh, n_agents, dtype=jnp.float32)   # (A, M, A)

    p1 = _init_mha_params(k1, hidden_dim)
    p2 = _init_mha_params(k2, hidden_dim)

    out1, out2 = att_kernel_forward(x, mask, p1, p2, n_heads)
    out1, out2 = jax.block_until_ready((out1, out2))

    ref1, ref2 = _att_kernel_ref(x, mask, p1, p2, n_heads)
    assert out1.shape == (n_agents, hidden_dim)
    assert out2.shape == (n_agents, hidden_dim)
    # f32 matmuls on the TPU MXU use bf16 passes at default precision in both the kernel
    # and the XLA reference, so allow a small (~1e-2) rounding discrepancy.
    assert jnp.allclose(out1, ref1, atol=2e-2, rtol=2e-2)
    assert jnp.allclose(out2, ref2, atol=2e-2, rtol=2e-2)
    print("KERNEL_OK")
</pallas_src>

<mosaic_0001>
module attributes {stable_mosaic.version = 11 : i64} {
  func.func @_attkernel_kernel(%arg0: i32, %arg1: memref<8x32xf32, #tpu.memory_space<vmem>>, %arg2: memref<16x32xf32, #tpu.memory_space<vmem>>, %arg3: memref<8x4x16xf32, #tpu.memory_space<vmem>>, %arg4: memref<32x32xf32, #tpu.memory_space<vmem>>, %arg5: memref<1x32xf32, #tpu.memory_space<vmem>>, %arg6: memref<32x32xf32, #tpu.memory_space<vmem>>, %arg7: memref<1x32xf32, #tpu.memory_space<vmem>>, %arg8: memref<32x32xf32, #tpu.memory_space<vmem>>, %arg9: memref<1x32xf32, #tpu.memory_space<vmem>>, %arg10: memref<32x32xf32, #tpu.memory_space<vmem>>, %arg11: memref<1x32xf32, #tpu.memory_space<vmem>>, %arg12: memref<32x32xf32, #tpu.memory_space<vmem>>, %arg13: memref<1x32xf32, #tpu.memory_space<vmem>>, %arg14: memref<32x32xf32, #tpu.memory_space<vmem>>, %arg15: memref<1x32xf32, #tpu.memory_space<vmem>>, %arg16: memref<32x4xf32, #tpu.memory_space<vmem>>, %arg17: memref<8x32xf32, #tpu.memory_space<vmem>>, %arg18: memref<8x32xf32, #tpu.memory_space<vmem>>) attributes {dimension_semantics = [#tpu.dimension_semantics<parallel>], iteration_bounds = array<i64: 2>, scalar_prefetch = 0 : i64, scratch_operands = 0 : i64, tpu.core_type = #tpu.core_type<tc>, window_params = [{transform_indices = @transform_0, window_bounds = array<i64: 8, 32>}, {pipeline_mode = #tpu.pipeline_mode<synchronous>, transform_indices = @transform_1, window_bounds = array<i64: 16, 32>}, {transform_indices = @transform_2, window_bounds = array<i64: 8, 4, 16>}, {pipeline_mode = #tpu.pipeline_mode<synchronous>, transform_indices = @transform_3, window_bounds = array<i64: 32, 32>}, {pipeline_mode = #tpu.pipeline_mode<synchronous>, transform_indices = @transform_4, window_bounds = array<i64: 1, 32>}, {pipeline_mode = #tpu.pipeline_mode<synchronous>, transform_indices = @transform_5, window_bounds = array<i64: 32, 32>}, {pipeline_mode = #tpu.pipeline_mode<synchronous>, transform_indices = @transform_6, window_bounds = array<i64: 1, 32>}, {pipeline_mode = #tpu.pipeline_mode<synchronous>, transform_indices = @transform_7, window_bounds = array<i64: 32, 32>}, {pipeline_mode = #tpu.pipeline_mode<synchronous>, transform_indices = @transform_8, window_bounds = array<i64: 1, 32>}, {pipeline_mode = #tpu.pipeline_mode<synchronous>, transform_indices = @transform_9, window_bounds = array<i64: 32, 32>}, {pipeline_mode = #tpu.pipeline_mode<synchronous>, transform_indices = @transform_10, window_bounds = array<i64: 1, 32>}, {pipeline_mode = #tpu.pipeline_mode<synchronous>, transform_indices = @transform_11, window_bounds = array<i64: 32, 32>}, {pipeline_mode = #tpu.pipeline_mode<synchronous>, transform_indices = @transform_12, window_bounds = array<i64: 1, 32>}, {pipeline_mode = #tpu.pipeline_mode<synchronous>, transform_indices = @transform_13, window_bounds = array<i64: 32, 32>}, {pipeline_mode = #tpu.pipeline_mode<synchronous>, transform_indices = @transform_14, window_bounds = array<i64: 1, 32>}, {pipeline_mode = #tpu.pipeline_mode<synchronous>, transform_indices = @transform_15, window_bounds = array<i64: 32, 4>}, {transform_indices = @transform_16, window_bounds = array<i64: 8, 32>}, {transform_indices = @transform_17, window_bounds = array<i64: 8, 32>}]} {
    %c0 = arith.constant 0 : index
    %c0_0 = arith.constant 0 : index
    %0 = vector.load %arg2[%c0, %c0_0] : memref<16x32xf32, #tpu.memory_space<vmem>>, vector<16x32xf32>
    %c0_1 = arith.constant 0 : index
    %c0_2 = arith.constant 0 : index
    %1 = vector.load %arg16[%c0_1, %c0_2] : memref<32x4xf32, #tpu.memory_space<vmem>>, vector<32x4xf32>
    %c0_3 = arith.constant 0 : index
    %c0_4 = arith.constant 0 : index
    %2 = vector.load %arg1[%c0_3, %c0_4] : memref<8x32xf32, #tpu.memory_space<vmem>>, vector<1x32xf32>
    %c0_5 = arith.constant 0 : index
    %c0_6 = arith.constant 0 : index
    %c0_7 = arith.constant 0 : index
    %3 = vector.load %arg3[%c0_5, %c0_6, %c0_7] : memref<8x4x16xf32, #tpu.memory_space<vmem>>, vector<1x4x16xf32>
    %4 = vector.shape_cast %3 : vector<1x4x16xf32> to vector<4x16xf32>
    %cst = arith.constant dense<0.000000e+00> : vector<4x32xf32>
    %5 = tpu.matmul %4, %0, %cst {dimension_numbers = #tpu.dot_dimension_numbers<[1], [0], [0], [1], [0, 0, 1, 1], [], []>} : vector<4x16xf32>, vector<16x32xf32>, vector<4x32xf32> -> vector<4x32xf32>
    %c0_8 = arith.constant 0 : index
    %c0_9 = arith.constant 0 : index
    %6 = vector.load %arg4[%c0_8, %c0_9] : memref<32x32xf32, #tpu.memory_space<vmem>>, vector<32x32xf32>
    %cst_10 = arith.constant dense<0.000000e+00> : vector<1x32xf32>
    %7 = tpu.matmul %2, %6, %cst_10 {dimension_numbers = #tpu.dot_dimension_numbers<[1], [1], [0], [0], [0, 0, 1, 0], [], []>} : vector<1x32xf32>, vector<32x32xf32>, vector<1x32xf32> -> vector<1x32xf32>
    %c0_11 = arith.constant 0 : index
    %c0_12 = arith.constant 0 : index
    %8 = vector.load %arg5[%c0_11, %c0_12] : memref<1x32xf32, #tpu.memory_space<vmem>>, vector<1x32xf32>
    %9 = arith.addf %7, %8 : vector<1x32xf32>
    %c0_13 = arith.constant 0 : index
    %c0_14 = arith.constant 0 : index
    %10 = vector.load %arg6[%c0_13, %c0_14] : memref<32x32xf32, #tpu.memory_space<vmem>>, vector<32x32xf32>
    %cst_15 = arith.constant dense<0.000000e+00> : vector<4x32xf32>
    %11 = tpu.matmul %5, %10, %cst_15 {dimension_numbers = #tpu.dot_dimension_numbers<[1], [1], [0], [0], [0, 0, 1, 0], [], []>} : vector<4x32xf32>, vector<32x32xf32>, vector<4x32xf32> -> vector<4x32xf32>
    %c0_16 = arith.constant 0 : index
    %c0_17 = arith.constant 0 : index
    %12 = vector.load %arg7[%c0_16, %c0_17] : memref<1x32xf32, #tpu.memory_space<vmem>>, vector<1x32xf32>
    %13 = vector.broadcast %12 : vector<1x32xf32> to vector<4x32xf32>
    %14 = arith.addf %11, %13 : vector<4x32xf32>
    %c0_18 = arith.constant 0 : index
    %c0_19 = arith.constant 0 : index
    %15 = vector.load %arg8[%c0_18, %c0_19] : memref<32x32xf32, #tpu.memory_space<vmem>>, vector<32x32xf32>
    %cst_20 = arith.constant dense<0.000000e+00> : vector<4x32xf32>
    %16 = tpu.matmul %5, %15, %cst_20 {dimension_numbers = #tpu.dot_dimension_numbers<[1], [1], [0], [0], [0, 0, 1, 0], [], []>} : vector<4x32xf32>, vector<32x32xf32>, vector<4x32xf32> -> vector<4x32xf32>
    %c0_21 = arith.constant 0 : index
    %c0_22 = arith.constant 0 : index
    %17 = vector.load %arg9[%c0_21, %c0_22] : memref<1x32xf32, #tpu.memory_space<vmem>>, vector<1x32xf32>
    %18 = vector.broadcast %17 : vector<1x32xf32> to vector<4x32xf32>
    %19 = arith.addf %16, %18 : vector<4x32xf32>
    %20 = vector.broadcast %9 : vector<1x32xf32> to vector<4x32xf32>
    %21 = arith.mulf %20, %14 : vector<4x32xf32>
    %cst_23 = arith.constant 0.353553385 : f32
    %22 = vector.broadcast %cst_23 : f32 to vector<4x32xf32>
    %23 = arith.mulf %21, %22 : vector<4x32xf32>
    %cst_24 = arith.constant dense<0.000000e+00> : vector<4x4xf32>
    %24 = tpu.matmul %23, %1, %cst_24 {dimension_numbers = #tpu.dot_dimension_numbers<[1], [0], [0], [1], [0, 0, 1, 1], [], []>} : vector<4x32xf32>, vector<32x4xf32>, vector<4x4xf32> -> vector<4x4xf32>
    %cst_25 = arith.constant dense<0xFF800000> : vector<4xf32>
    %25 = vector.multi_reduction <maximumf>, %24, %cst_25 [0] : vector<4x4xf32> to vector<4xf32>
    %26 = vector.shape_cast %25 : vector<4xf32> to vector<1x4xf32>
    %27 = vector.broadcast %26 : vector<1x4xf32> to vector<4x4xf32>
    %28 = arith.subf %24, %27 : vector<4x4xf32>
    %29 = math.exp %28 : vector<4x4xf32>
    %cst_26 = arith.constant dense<0.000000e+00> : vector<4xf32>
    %30 = vector.multi_reduction <add>, %29, %cst_26 [0] : vector<4x4xf32> to vector<4xf32>
    %31 = vector.shape_cast %30 : vector<4xf32> to vector<1x4xf32>
    %32 = vector.broadcast %31 : vector<1x4xf32> to vector<4x4xf32>
    %33 = arith.divf %29, %32 : vector<4x4xf32>
    %cst_27 = arith.constant dense<0.000000e+00> : vector<4x32xf32>
    %34 = tpu.matmul %33, %1, %cst_27 {dimension_numbers = #tpu.dot_dimension_numbers<[1], [1], [0], [0], [0, 0, 1, 0], [], []>} : vector<4x4xf32>, vector<32x4xf32>, vector<4x32xf32> -> vector<4x32xf32>
    %35 = arith.mulf %34, %19 : vector<4x32xf32>
    %cst_28 = arith.constant dense<0.000000e+00> : vector<32xf32>
    %36 = vector.multi_reduction <add>, %35, %cst_28 [0] : vector<4x32xf32> to vector<32xf32>
    %37 = vector.shape_cast %36 : vector<32xf32> to vector<1x32xf32>
    %c0_29 = arith.constant 0 : index
    %c0_30 = arith.constant 0 : index
    %38 = vector.load %arg10[%c0_29, %c0_30] : memref<32x32xf32, #tpu.memory_space<vmem>>, vector<32x32xf32>
    %cst_31 = arith.constant dense<0.000000e+00> : vector<1x32xf32>
    %39 = tpu.matmul %37, %38, %cst_31 {dimension_numbers = #tpu.dot_dimension_numbers<[1], [1], [0], [0], [0, 0, 1, 0], [], []>} : vector<1x32xf32>, vector<32x32xf32>, vector<1x32xf32> -> vector<1x32xf32>
    %c0_32 = arith.constant 0 : index
    %c0_33 = arith.constant 0 : index
    %40 = vector.load %arg11[%c0_32, %c0_33] : memref<1x32xf32, #tpu.memory_space<vmem>>, vector<1x32xf32>
    %41 = arith.addf %39, %40 : vector<1x32xf32>
    %c0_34 = arith.constant 0 : index
    %c0_35 = arith.constant 0 : index
    %42 = vector.load %arg12[%c0_34, %c0_35] : memref<32x32xf32, #tpu.memory_space<vmem>>, vector<32x32xf32>
    %cst_36 = arith.constant dense<0.000000e+00> : vector<1x32xf32>
    %43 = tpu.matmul %41, %42, %cst_36 {dimension_numbers = #tpu.dot_dimension_numbers<[1], [1], [0], [0], [0, 0, 1, 0], [], []>} : vector<1x32xf32>, vector<32x32xf32>, vector<1x32xf32> -> vector<1x32xf32>
    %c0_37 = arith.constant 0 : index
    %c0_38 = arith.constant 0 : index
    %44 = vector.load %arg13[%c0_37, %c0_38] : memref<1x32xf32, #tpu.memory_space<vmem>>, vector<1x32xf32>
    %45 = arith.addf %43, %44 : vector<1x32xf32>
    %c0_39 = arith.constant 0 : index
    %c0_40 = arith.constant 0 : index
    %46 = vector.load %arg14[%c0_39, %c0_40] : memref<32x32xf32, #tpu.memory_space<vmem>>, vector<32x32xf32>
    %cst_41 = arith.constant dense<0.000000e+00> : vector<1x32xf32>
    %47 = tpu.matmul %45, %46, %cst_41 {dimension_numbers = #tpu.dot_dimension_numbers<[1], [1], [0], [0], [0, 0, 1, 0], [], []>} : vector<1x32xf32>, vector<32x32xf32>, vector<1x32xf32> -> vector<1x32xf32>
    %c0_42 = arith.constant 0 : index
    %c0_43 = arith.constant 0 : index
    %48 = vector.load %arg15[%c0_42, %c0_43] : memref<1x32xf32, #tpu.memory_space<vmem>>, vector<1x32xf32>
    %49 = arith.addf %47, %48 : vector<1x32xf32>
    %c0_44 = arith.constant 0 : index
    %c0_45 = arith.constant 0 : index
    %50 = vector.load %arg17[%c0_44, %c0_45] : memref<8x32xf32, #tpu.memory_space<vmem>>, vector<1x32xf32>
    tpu.vector_store %arg17[%c0_44, %c0_45], %41 {strides = array<i32>} : memref<8x32xf32, #tpu.memory_space<vmem>>, vector<1x32xf32>,
    %c0_46 = arith.constant 0 : index
    %c0_47 = arith.constant 0 : index
    %51 = vector.load %arg18[%c0_46, %c0_47] : memref<8x32xf32, #tpu.memory_space<vmem>>, vector<1x32xf32>
    tpu.vector_store %arg18[%c0_46, %c0_47], %49 {strides = array<i32>} : memref<8x32xf32, #tpu.memory_space<vmem>>, vector<1x32xf32>,
    %c1 = arith.constant 1 : index
    %c0_48 = arith.constant 0 : index
    %52 = vector.load %arg1[%c1, %c0_48] : memref<8x32xf32, #tpu.memory_space<vmem>>, vector<1x32xf32>
    %c1_49 = arith.constant 1 : index
    %c0_50 = arith.constant 0 : index
    %c0_51 = arith.constant 0 : index
    %53 = vector.load %arg3[%c1_49, %c0_50, %c0_51] : memref<8x4x16xf32, #tpu.memory_space<vmem>>, vector<1x4x16xf32>
    %54 = vector.shape_cast %53 : vector<1x4x16xf32> to vector<4x16xf32>
    %cst_52 = arith.constant dense<0.000000e+00> : vector<4x32xf32>
    %55 = tpu.matmul %54, %0, %cst_52 {dimension_numbers = #tpu.dot_dimension_numbers<[1], [0], [0], [1], [0, 0, 1, 1], [], []>} : vector<4x16xf32>, vector<16x32xf32>, vector<4x32xf32> -> vector<4x32xf32>
    %c0_53 = arith.constant 0 : index
    %c0_54 = arith.constant 0 : index
    %56 = vector.load %arg4[%c0_53, %c0_54] : memref<32x32xf32, #tpu.memory_space<vmem>>, vector<32x32xf32>
    %cst_55 = arith.constant dense<0.000000e+00> : vector<1x32xf32>
    %57 = tpu.matmul %52, %56, %cst_55 {dimension_numbers = #tpu.dot_dimension_numbers<[1], [1], [0], [0], [0, 0, 1, 0], [], []>} : vector<1x32xf32>, vector<32x32xf32>, vector<1x32xf32> -> vector<1x32xf32>
    %c0_56 = arith.constant 0 : index
    %c0_57 = arith.constant 0 : index
    %58 = vector.load %arg5[%c0_56, %c0_57] : memref<1x32xf32, #tpu.memory_space<vmem>>, vector<1x32xf32>
    %59 = arith.addf %57, %58 : vector<1x32xf32>
    %c0_58 = arith.constant 0 : index
    %c0_59 = arith.constant 0 : index
    %60 = vector.load %arg6[%c0_58, %c0_59] : memref<32x32xf32, #tpu.memory_space<vmem>>, vector<32x32xf32>
    %cst_60 = arith.constant dense<0.000000e+00> : vector<4x32xf32>
    %61 = tpu.matmul %55, %60, %cst_60 {dimension_numbers = #tpu.dot_dimension_numbers<[1], [1], [0], [0], [0, 0, 1, 0], [], []>} : vector<4x32xf32>, vector<32x32xf32>, vector<4x32xf32> -> vector<4x32xf32>
    %c0_61 = arith.constant 0 : index
    %c0_62 = arith.constant 0 : index
    %62 = vector.load %arg7[%c0_61, %c0_62] : memref<1x32xf32, #tpu.memory_space<vmem>>, vector<1x32xf32>
    %63 = vector.broadcast %62 : vector<1x32xf32> to vector<4x32xf32>
    %64 = arith.addf %61, %63 : vector<4x32xf32>
    %c0_63 = arith.constant 0 : index
    %c0_64 = arith.constant 0 : index
    %65 = vector.load %arg8[%c0_63, %c0_64] : memref<32x32xf32, #tpu.memory_space<vmem>>, vector<32x32xf32>
    %cst_65 = arith.constant dense<0.000000e+00> : vector<4x32xf32>
    %66 = tpu.matmul %55, %65, %cst_65 {dimension_numbers = #tpu.dot_dimension_numbers<[1], [1], [0], [0], [0, 0, 1, 0], [], []>} : vector<4x32xf32>, vector<32x32xf32>, vector<4x32xf32> -> vector<4x32xf32>
    %c0_66 = arith.constant 0 : index
    %c0_67 = arith.constant 0 : index
    %67 = vector.load %arg9[%c0_66, %c0_67] : memref<1x32xf32, #tpu.memory_space<vmem>>, vector<1x32xf32>
    %68 = vector.broadcast %67 : vector<1x32xf32> to vector<4x32xf32>
    %69 = arith.addf %66, %68 : vector<4x32xf32>
    %70 = vector.broadcast %59 : vector<1x32xf32> to vector<4x32xf32>
    %71 = arith.mulf %70, %64 : vector<4x32xf32>
    %cst_68 = arith.constant 0.353553385 : f32
    %72 = vector.broadcast %cst_68 : f32 to vector<4x32xf32>
    %73 = arith.mulf %71, %72 : vector<4x32xf32>
    %cst_69 = arith.constant dense<0.000000e+00> : vector<4x4xf32>
    %74 = tpu.matmul %73, %1, %cst_69 {dimension_numbers = #tpu.dot_dimension_numbers<[1], [0], [0], [1], [0, 0, 1, 1], [], []>} : vector<4x32xf32>, vector<32x4xf32>, vector<4x4xf32> -> vector<4x4xf32>
    %cst_70 = arith.constant dense<0xFF800000> : vector<4xf32>
    %75 = vector.multi_reduction <maximumf>, %74, %cst_70 [0] : vector<4x4xf32> to vector<4xf32>
    %76 = vector.shape_cast %75 : vector<4xf32> to vector<1x4xf32>
    %77 = vector.broadcast %76 : vector<1x4xf32> to vector<4x4xf32>
    %78 = arith.subf %74, %77 : vector<4x4xf32>
    %79 = math.exp %78 : vector<4x4xf32>
    %cst_71 = arith.constant dense<0.000000e+00> : vector<4xf32>
    %80 = vector.multi_reduction <add>, %79, %cst_71 [0] : vector<4x4xf32> to vector<4xf32>
    %81 = vector.shape_cast %80 : vector<4xf32> to vector<1x4xf32>
    %82 = vector.broadcast %81 : vector<1x4xf32> to vector<4x4xf32>
    %83 = arith.divf %79, %82 : vector<4x4xf32>
    %cst_72 = arith.constant dense<0.000000e+00> : vector<4x32xf32>
    %84 = tpu.matmul %83, %1, %cst_72 {dimension_numbers = #tpu.dot_dimension_numbers<[1], [1], [0], [0], [0, 0, 1, 0], [], []>} : vector<4x4xf32>, vector<32x4xf32>, vector<4x32xf32> -> vector<4x32xf32>
    %85 = arith.mulf %84, %69 : vector<4x32xf32>
    %cst_73 = arith.constant dense<0.000000e+00> : vector<32xf32>
    %86 = vector.multi_reduction <add>, %85, %cst_73 [0] : vector<4x32xf32> to vector<32xf32>
    %87 = vector.shape_cast %86 : vector<32xf32> to vector<1x32xf32>
    %c0_74 = arith.constant 0 : index
    %c0_75 = arith.constant 0 : index
    %88 = vector.load %arg10[%c0_74, %c0_75] : memref<32x32xf32, #tpu.memory_space<vmem>>, vector<32x32xf32>
    %cst_76 = arith.constant dense<0.000000e+00> : vector<1x32xf32>
    %89 = tpu.matmul %87, %88, %cst_76 {dimension_numbers = #tpu.dot_dimension_numbers<[1], [1], [0], [0], [0, 0, 1, 0], [], []>} : vector<1x32xf32>, vector<32x32xf32>, vector<1x32xf32> -> vector<1x32xf32>
    %c0_77 = arith.constant 0 : index
    %c0_78 = arith.constant 0 : index
    %90 = vector.load %arg11[%c0_77, %c0_78] : memref<1x32xf32, #tpu.memory_space<vmem>>, vector<1x32xf32>
    %91 = arith.addf %89, %90 : vector<1x32xf32>
    %c0_79 = arith.constant 0 : index
    %c0_80 = arith.constant 0 : index
    %92 = vector.load %arg12[%c0_79, %c0_80] : memref<32x32xf32, #tpu.memory_space<vmem>>, vector<32x32xf32>
    %cst_81 = arith.constant dense<0.000000e+00> : vector<1x32xf32>
    %93 = tpu.matmul %91, %92, %cst_81 {dimension_numbers = #tpu.dot_dimension_numbers<[1], [1], [0], [0], [0, 0, 1, 0], [], []>} : vector<1x32xf32>, vector<32x32xf32>, vector<1x32xf32> -> vector<1x32xf32>
    %c0_82 = arith.constant 0 : index
    %c0_83 = arith.constant 0 : index
    %94 = vector.load %arg13[%c0_82, %c0_83] : memref<1x32xf32, #tpu.memory_space<vmem>>, vector<1x32xf32>
    %95 = arith.addf %93, %94 : vector<1x32xf32>
    %c0_84 = arith.constant 0 : index
    %c0_85 = arith.constant 0 : index
    %96 = vector.load %arg14[%c0_84, %c0_85] : memref<32x32xf32, #tpu.memory_space<vmem>>, vector<32x32xf32>
    %cst_86 = arith.constant dense<0.000000e+00> : vector<1x32xf32>
    %97 = tpu.matmul %95, %96, %cst_86 {dimension_numbers = #tpu.dot_dimension_numbers<[1], [1], [0], [0], [0, 0, 1, 0], [], []>} : vector<1x32xf32>, vector<32x32xf32>, vector<1x32xf32> -> vector<1x32xf32>
    %c0_87 = arith.constant 0 : index
    %c0_88 = arith.constant 0 : index
    %98 = vector.load %arg15[%c0_87, %c0_88] : memref<1x32xf32, #tpu.memory_space<vmem>>, vector<1x32xf32>
    %99 = arith.addf %97, %98 : vector<1x32xf32>
    %c1_89 = arith.constant 1 : index
    %c0_90 = arith.constant 0 : index
    %100 = vector.load %arg17[%c1_89, %c0_90] : memref<8x32xf32, #tpu.memory_space<vmem>>, vector<1x32xf32>
    tpu.vector_store %arg17[%c1_89, %c0_90], %91 {strides = array<i32>} : memref<8x32xf32, #tpu.memory_space<vmem>>, vector<1x32xf32>,
    %c1_91 = arith.constant 1 : index
    %c0_92 = arith.constant 0 : index
    %101 = vector.load %arg18[%c1_91, %c0_92] : memref<8x32xf32, #tpu.memory_space<vmem>>, vector<1x32xf32>
    tpu.vector_store %arg18[%c1_91, %c0_92], %99 {strides = array<i32>} : memref<8x32xf32, #tpu.memory_space<vmem>>, vector<1x32xf32>,
    %c2 = arith.constant 2 : index
    %c0_93 = arith.constant 0 : index
    %102 = vector.load %arg1[%c2, %c0_93] : memref<8x32xf32, #tpu.memory_space<vmem>>, vector<1x32xf32>
    %c2_94 = arith.constant 2 : index
    %c0_95 = arith.constant 0 : index
    %c0_96 = arith.constant 0 : index
    %103 = vector.load %arg3[%c2_94, %c0_95, %c0_96] : memref<8x4x16xf32, #tpu.memory_space<vmem>>, vector<1x4x16xf32>
    %104 = vector.shape_cast %103 : vector<1x4x16xf32> to vector<4x16xf32>
    %cst_97 = arith.constant dense<0.000000e+00> : vector<4x32xf32>
    %105 = tpu.matmul %104, %0, %cst_97 {dimension_numbers = #tpu.dot_dimension_numbers<[1], [0], [0], [1], [0, 0, 1, 1], [], []>} : vector<4x16xf32>, vector<16x32xf32>, vector<4x32xf32> -> vector<4x32xf32>
    %c0_98 = arith.constant 0 : index
    %c0_99 = arith.constant 0 : index
    %106 = vector.load %arg4[%c0_98, %c0_99] : memref<32x32xf32, #tpu.memory_space<vmem>>, vector<32x32xf32>
    %cst_100 = arith.constant dense<0.000000e+00> : vector<1x32xf32>
    %107 = tpu.matmul %102, %106, %cst_100 {dimension_numbers = #tpu.dot_dimension_numbers<[1], [1], [0], [0], [0, 0, 1, 0], [], []>} : vector<1x32xf32>, vector<32x32xf32>, vector<1x32xf32> -> vector<1x32xf32>
    %c0_101 = arith.constant 0 : index
    %c0_102 = arith.constant 0 : index
    %108 = vector.load %arg5[%c0_101, %c0_102] : memref<1x32xf32, #tpu.memory_space<vmem>>, vector<1x32xf32>
    %109 = arith.addf %107, %108 : vector<1x32xf32>
    %c0_103 = arith.constant 0 : index
    %c0_104 = arith.constant 0 : index
    %110 = vector.load %arg6[%c0_103, %c0_104] : memref<32x32xf32, #tpu.memory_space<vmem>>, vector<32x32xf32>
    %cst_105 = arith.constant dense<0.000000e+00> : vector<4x32xf32>
    %111 = tpu.matmul %105, %110, %cst_105 {dimension_numbers = #tpu.dot_dimension_numbers<[1], [1], [0], [0], [0, 0, 1, 0], [], []>} : vector<4x32xf32>, vector<32x32xf32>, vector<4x32xf32> -> vector<4x32xf32>
    %c0_106 = arith.constant 0 : index
    %c0_107 = arith.constant 0 : index
    %112 = vector.load %arg7[%c0_106, %c0_107] : memref<1x32xf32, #tpu.memory_space<vmem>>, vector<1x32xf32>
    %113 = vector.broadcast %112 : vector<1x32xf32> to vector<4x32xf32>
    %114 = arith.addf %111, %113 : vector<4x32xf32>
    %c0_108 = arith.constant 0 : index
    %c0_109 = arith.constant 0 : index
    %115 = vector.load %arg8[%c0_108, %c0_109] : memref<32x32xf32, #tpu.memory_space<vmem>>, vector<32x32xf32>
    %cst_110 = arith.constant dense<0.000000e+00> : vector<4x32xf32>
    %116 = tpu.matmul %105, %115, %cst_110 {dimension_numbers = #tpu.dot_dimension_numbers<[1], [1], [0], [0], [0, 0, 1, 0], [], []>} : vector<4x32xf32>, vector<32x32xf32>, vector<4x32xf32> -> vector<4x32xf32>
    %c0_111 = arith.constant 0 : index
    %c0_112 = arith.constant 0 : index
    %117 = vector.load %arg9[%c0_111, %c0_112] : memref<1x32xf32, #tpu.memory_space<vmem>>, vector<1x32xf32>
    %118 = vector.broadcast %117 : vector<1x32xf32> to vector<4x32xf32>
    %119 = arith.addf %116, %118 : vector<4x32xf32>
    %120 = vector.broadcast %109 : vector<1x32xf32> to vector<4x32xf32>
    %121 = arith.mulf %120, %114 : vector<4x32xf32>
    %cst_113 = arith.constant 0.353553385 : f32
    %122 = vector.broadcast %cst_113 : f32 to vector<4x32xf32>
    %123 = arith.mulf %121, %122 : vector<4x32xf32>
    %cst_114 = arith.constant dense<0.000000e+00> : vector<4x4xf32>
    %124 = tpu.matmul %123, %1, %cst_114 {dimension_numbers = #tpu.dot_dimension_numbers<[1], [0], [0], [1], [0, 0, 1, 1], [], []>} : vector<4x32xf32>, vector<32x4xf32>, vector<4x4xf32> -> vector<4x4xf32>
    %cst_115 = arith.constant dense<0xFF800000> : vector<4xf32>
    %125 = vector.multi_reduction <maximumf>, %124, %cst_115 [0] : vector<4x4xf32> to vector<4xf32>
    %126 = vector.shape_cast %125 : vector<4xf32> to vector<1x4xf32>
    %127 = vector.broadcast %126 : vector<1x4xf32> to vector<4x4xf32>
    %128 = arith.subf %124, %127 : vector<4x4xf32>
    %129 = math.exp %128 : vector<4x4xf32>
    %cst_116 = arith.constant dense<0.000000e+00> : vector<4xf32>
    %130 = vector.multi_reduction <add>, %129, %cst_116 [0] : vector<4x4xf32> to vector<4xf32>
    %131 = vector.shape_cast %130 : vector<4xf32> to vector<1x4xf32>
    %132 = vector.broadcast %131 : vector<1x4xf32> to vector<4x4xf32>
    %133 = arith.divf %129, %132 : vector<4x4xf32>
    %cst_117 = arith.constant dense<0.000000e+00> : vector<4x32xf32>
    %134 = tpu.matmul %133, %1, %cst_117 {dimension_numbers = #tpu.dot_dimension_numbers<[1], [1], [0], [0], [0, 0, 1, 0], [], []>} : vector<4x4xf32>, vector<32x4xf32>, vector<4x32xf32> -> vector<4x32xf32>
    %135 = arith.mulf %134, %119 : vector<4x32xf32>
    %cst_118 = arith.constant dense<0.000000e+00> : vector<32xf32>
    %136 = vector.multi_reduction <add>, %135, %cst_118 [0] : vector<4x32xf32> to vector<32xf32>
    %137 = vector.shape_cast %136 : vector<32xf32> to vector<1x32xf32>
    %c0_119 = arith.constant 0 : index
    %c0_120 = arith.constant 0 : index
    %138 = vector.load %arg10[%c0_119, %c0_120] : memref<32x32xf32, #tpu.memory_space<vmem>>, vector<32x32xf32>
    %cst_121 = arith.constant dense<0.000000e+00> : vector<1x32xf32>
    %139 = tpu.matmul %137, %138, %cst_121 {dimension_numbers = #tpu.dot_dimension_numbers<[1], [1], [0], [0], [0, 0, 1, 0], [], []>} : vector<1x32xf32>, vector<32x32xf32>, vector<1x32xf32> -> vector<1x32xf32>
    %c0_122 = arith.constant 0 : index
    %c0_123 = arith.constant 0 : index
    %140 = vector.load %arg11[%c0_122, %c0_123] : memref<1x32xf32, #tpu.memory_space<vmem>>, vector<1x32xf32>
    %141 = arith.addf %139, %140 : vector<1x32xf32>
    %c0_124 = arith.constant 0 : index
    %c0_125 = arith.constant 0 : index
    %142 = vector.load %arg12[%c0_124, %c0_125] : memref<32x32xf32, #tpu.memory_space<vmem>>, vector<32x32xf32>
    %cst_126 = arith.constant dense<0.000000e+00> : vector<1x32xf32>
    %143 = tpu.matmul %141, %142, %cst_126 {dimension_numbers = #tpu.dot_dimension_numbers<[1], [1], [0], [0], [0, 0, 1, 0], [], []>} : vector<1x32xf32>, vector<32x32xf32>, vector<1x32xf32> -> vector<1x32xf32>
    %c0_127 = arith.constant 0 : index
    %c0_128 = arith.constant 0 : index
    %144 = vector.load %arg13[%c0_127, %c0_128] : memref<1x32xf32, #tpu.memory_space<vmem>>, vector<1x32xf32>
    %145 = arith.addf %143, %144 : vector<1x32xf32>
    %c0_129 = arith.constant 0 : index
    %c0_130 = arith.constant 0 : index
    %146 = vector.load %arg14[%c0_129, %c0_130] : memref<32x32xf32, #tpu.memory_space<vmem>>, vector<32x32xf32>
    %cst_131 = arith.constant dense<0.000000e+00> : vector<1x32xf32>
    %147 = tpu.matmul %145, %146, %cst_131 {dimension_numbers = #tpu.dot_dimension_numbers<[1], [1], [0], [0], [0, 0, 1, 0], [], []>} : vector<1x32xf32>, vector<32x32xf32>, vector<1x32xf32> -> vector<1x32xf32>
    %c0_132 = arith.constant 0 : index
    %c0_133 = arith.constant 0 : index
    %148 = vector.load %arg15[%c0_132, %c0_133] : memref<1x32xf32, #tpu.memory_space<vmem>>, vector<1x32xf32>
    %149 = arith.addf %147, %148 : vector<1x32xf32>
    %c2_134 = arith.constant 2 : index
    %c0_135 = arith.constant 0 : index
    %150 = vector.load %arg17[%c2_134, %c0_135] : memref<8x32xf32, #tpu.memory_space<vmem>>, vector<1x32xf32>
    tpu.vector_store %arg17[%c2_134, %c0_135], %141 {strides = array<i32>} : memref<8x32xf32, #tpu.memory_space<vmem>>, vector<1x32xf32>,
    %c2_136 = arith.constant 2 : index
    %c0_137 = arith.constant 0 : index
    %151 = vector.load %arg18[%c2_136, %c0_137] : memref<8x32xf32, #tpu.memory_space<vmem>>, vector<1x32xf32>
    tpu.vector_store %arg18[%c2_136, %c0_137], %149 {strides = array<i32>} : memref<8x32xf32, #tpu.memory_space<vmem>>, vector<1x32xf32>,
    %c3 = arith.constant 3 : index
    %c0_138 = arith.constant 0 : index
    %152 = vector.load %arg1[%c3, %c0_138] : memref<8x32xf32, #tpu.memory_space<vmem>>, vector<1x32xf32>
    %c3_139 = arith.constant 3 : index
    %c0_140 = arith.constant 0 : index
    %c0_141 = arith.constant 0 : index
    %153 = vector.load %arg3[%c3_139, %c0_140, %c0_141] : memref<8x4x16xf32, #tpu.memory_space<vmem>>, vector<1x4x16xf32>
    %154 = vector.shape_cast %153 : vector<1x4x16xf32> to vector<4x16xf32>
    %cst_142 = arith.constant dense<0.000000e+00> : vector<4x32xf32>
    %155 = tpu.matmul %154, %0, %cst_142 {dimension_numbers = #tpu.dot_dimension_numbers<[1], [0], [0], [1], [0, 0, 1, 1], [], []>} : vector<4x16xf32>, vector<16x32xf32>, vector<4x32xf32> -> vector<4x32xf32>
    %c0_143 = arith.constant 0 : index
    %c0_144 = arith.constant 0 : index
    %156 = vector.load %arg4[%c0_143, %c0_144] : memref<32x32xf32, #tpu.memory_space<vmem>>, vector<32x32xf32>
    %cst_145 = arith.constant dense<0.000000e+00> : vector<1x32xf32>
    %157 = tpu.matmul %152, %156, %cst_145 {dimension_numbers = #tpu.dot_dimension_numbers<[1], [1], [0], [0], [0, 0, 1, 0], [], []>} : vector<1x32xf32>, vector<32x32xf32>, vector<1x32xf32> -> vector<1x32xf32>
    %c0_146 = arith.constant 0 : index
    %c0_147 = arith.constant 0 : index
    %158 = vector.load %arg5[%c0_146, %c0_147] : memref<1x32xf32, #tpu.memory_space<vmem>>, vector<1x32xf32>
    %159 = arith.addf %157, %158 : vector<1x32xf32>
    %c0_148 = arith.constant 0 : index
    %c0_149 = arith.constant 0 : index
    %160 = vector.load %arg6[%c0_148, %c0_149] : memref<32x32xf32, #tpu.memory_space<vmem>>, vector<32x32xf32>
    %cst_150 = arith.constant dense<0.000000e+00> : vector<4x32xf32>
    %161 = tpu.matmul %155, %160, %cst_150 {dimension_numbers = #tpu.dot_dimension_numbers<[1], [1], [0], [0], [0, 0, 1, 0], [], []>} : vector<4x32xf32>, vector<32x32xf32>, vector<4x32xf32> -> vector<4x32xf32>
    %c0_151 = arith.constant 0 : index
    %c0_152 = arith.constant 0 : index
    %162 = vector.load %arg7[%c0_151, %c0_152] : memref<1x32xf32, #tpu.memory_space<vmem>>, vector<1x32xf32>
    %163 = vector.broadcast %162 : vector<1x32xf32> to vector<4x32xf32>
    %164 = arith.addf %161, %163 : vector<4x32xf32>
    %c0_153 = arith.constant 0 : index
    %c0_154 = arith.constant 0 : index
    %165 = vector.load %arg8[%c0_153, %c0_154] : memref<32x32xf32, #tpu.memory_space<vmem>>, vector<32x32xf32>
    %cst_155 = arith.constant dense<0.000000e+00> : vector<4x32xf32>
    %166 = tpu.matmul %155, %165, %cst_155 {dimension_numbers = #tpu.dot_dimension_numbers<[1], [1], [0], [0], [0, 0, 1, 0], [], []>} : vector<4x32xf32>, vector<32x32xf32>, vector<4x32xf32> -> vector<4x32xf32>
    %c0_156 = arith.constant 0 : index
    %c0_157 = arith.constant 0 : index
    %167 = vector.load %arg9[%c0_156, %c0_157] : memref<1x32xf32, #tpu.memory_space<vmem>>, vector<1x32xf32>
    %168 = vector.broadcast %167 : vector<1x32xf32> to vector<4x32xf32>
    %169 = arith.addf %166, %168 : vector<4x32xf32>
    %170 = vector.broadcast %159 : vector<1x32xf32> to vector<4x32xf32>
    %171 = arith.mulf %170, %164 : vector<4x32xf32>
    %cst_158 = arith.constant 0.353553385 : f32
    %172 = vector.broadcast %cst_158 : f32 to vector<4x32xf32>
    %173 = arith.mulf %171, %172 : vector<4x32xf32>
    %cst_159 = arith.constant dense<0.000000e+00> : vector<4x4xf32>
    %174 = tpu.matmul %173, %1, %cst_159 {dimension_numbers = #tpu.dot_dimension_numbers<[1], [0], [0], [1], [0, 0, 1, 1], [], []>} : vector<4x32xf32>, vector<32x4xf32>, vector<4x4xf32> -> vector<4x4xf32>
    %cst_160 = arith.constant dense<0xFF800000> : vector<4xf32>
    %175 = vector.multi_reduction <maximumf>, %174, %cst_160 [0] : vector<4x4xf32> to vector<4xf32>
    %176 = vector.shape_cast %175 : vector<4xf32> to vector<1x4xf32>
    %177 = vector.broadcast %176 : vector<1x4xf32> to vector<4x4xf32>
    %178 = arith.subf %174, %177 : vector<4x4xf32>
    %179 = math.exp %178 : vector<4x4xf32>
    %cst_161 = arith.constant dense<0.000000e+00> : vector<4xf32>
    %180 = vector.multi_reduction <add>, %179, %cst_161 [0] : vector<4x4xf32> to vector<4xf32>
    %181 = vector.shape_cast %180 : vector<4xf32> to vector<1x4xf32>
    %182 = vector.broadcast %181 : vector<1x4xf32> to vector<4x4xf32>
    %183 = arith.divf %179, %182 : vector<4x4xf32>
    %cst_162 = arith.constant dense<0.000000e+00> : vector<4x32xf32>
    %184 = tpu.matmul %183, %1, %cst_162 {dimension_numbers = #tpu.dot_dimension_numbers<[1], [1], [0], [0], [0, 0, 1, 0], [], []>} : vector<4x4xf32>, vector<32x4xf32>, vector<4x32xf32> -> vector<4x32xf32>
    %185 = arith.mulf %184, %169 : vector<4x32xf32>
    %cst_163 = arith.constant dense<0.000000e+00> : vector<32xf32>
    %186 = vector.multi_reduction <add>, %185, %cst_163 [0] : vector<4x32xf32> to vector<32xf32>
    %187 = vector.shape_cast %186 : vector<32xf32> to vector<1x32xf32>
    %c0_164 = arith.constant 0 : index
    %c0_165 = arith.constant 0 : index
    %188 = vector.load %arg10[%c0_164, %c0_165] : memref<32x32xf32, #tpu.memory_space<vmem>>, vector<32x32xf32>
    %cst_166 = arith.constant dense<0.000000e+00> : vector<1x32xf32>
    %189 = tpu.matmul %187, %188, %cst_166 {dimension_numbers = #tpu.dot_dimension_numbers<[1], [1], [0], [0], [0, 0, 1, 0], [], []>} : vector<1x32xf32>, vector<32x32xf32>, vector<1x32xf32> -> vector<1x32xf32>
    %c0_167 = arith.constant 0 : index
    %c0_168 = arith.constant 0 : index
    %190 = vector.load %arg11[%c0_167, %c0_168] : memref<1x32xf32, #tpu.memory_space<vmem>>, vector<1x32xf32>
    %191 = arith.addf %189, %190 : vector<1x32xf32>
    %c0_169 = arith.constant 0 : index
    %c0_170 = arith.constant 0 : index
    %192 = vector.load %arg12[%c0_169, %c0_170] : memref<32x32xf32, #tpu.memory_space<vmem>>, vector<32x32xf32>
    %cst_171 = arith.constant dense<0.000000e+00> : vector<1x32xf32>
    %193 = tpu.matmul %191, %192, %cst_171 {dimension_numbers = #tpu.dot_dimension_numbers<[1], [1], [0], [0], [0, 0, 1, 0], [], []>} : vector<1x32xf32>, vector<32x32xf32>, vector<1x32xf32> -> vector<1x32xf32>
    %c0_172 = arith.constant 0 : index
    %c0_173 = arith.constant 0 : index
    %194 = vector.load %arg13[%c0_172, %c0_173] : memref<1x32xf32, #tpu.memory_space<vmem>>, vector<1x32xf32>
    %195 = arith.addf %193, %194 : vector<1x32xf32>
    %c0_174 = arith.constant 0 : index
    %c0_175 = arith.constant 0 : index
    %196 = vector.load %arg14[%c0_174, %c0_175] : memref<32x32xf32, #tpu.memory_space<vmem>>, vector<32x32xf32>
    %cst_176 = arith.constant dense<0.000000e+00> : vector<1x32xf32>
    %197 = tpu.matmul %195, %196, %cst_176 {dimension_numbers = #tpu.dot_dimension_numbers<[1], [1], [0], [0], [0, 0, 1, 0], [], []>} : vector<1x32xf32>, vector<32x32xf32>, vector<1x32xf32> -> vector<1x32xf32>
    %c0_177 = arith.constant 0 : index
    %c0_178 = arith.constant 0 : index
    %198 = vector.load %arg15[%c0_177, %c0_178] : memref<1x32xf32, #tpu.memory_space<vmem>>, vector<1x32xf32>
    %199 = arith.addf %197, %198 : vector<1x32xf32>
    %c3_179 = arith.constant 3 : index
    %c0_180 = arith.constant 0 : index
    %200 = vector.load %arg17[%c3_179, %c0_180] : memref<8x32xf32, #tpu.memory_space<vmem>>, vector<1x32xf32>
    tpu.vector_store %arg17[%c3_179, %c0_180], %191 {strides = array<i32>} : memref<8x32xf32, #tpu.memory_space<vmem>>, vector<1x32xf32>,
    %c3_181 = arith.constant 3 : index
    %c0_182 = arith.constant 0 : index
    %201 = vector.load %arg18[%c3_181, %c0_182] : memref<8x32xf32, #tpu.memory_space<vmem>>, vector<1x32xf32>
    tpu.vector_store %arg18[%c3_181, %c0_182], %199 {strides = array<i32>} : memref<8x32xf32, #tpu.memory_space<vmem>>, vector<1x32xf32>,
    %c4 = arith.constant 4 : index
    %c0_183 = arith.constant 0 : index
    %202 = vector.load %arg1[%c4, %c0_183] : memref<8x32xf32, #tpu.memory_space<vmem>>, vector<1x32xf32>
    %c4_184 = arith.constant 4 : index
    %c0_185 = arith.constant 0 : index
    %c0_186 = arith.constant 0 : index
    %203 = vector.load %arg3[%c4_184, %c0_185, %c0_186] : memref<8x4x16xf32, #tpu.memory_space<vmem>>, vector<1x4x16xf32>
    %204 = vector.shape_cast %203 : vector<1x4x16xf32> to vector<4x16xf32>
    %cst_187 = arith.constant dense<0.000000e+00> : vector<4x32xf32>
    %205 = tpu.matmul %204, %0, %cst_187 {dimension_numbers = #tpu.dot_dimension_numbers<[1], [0], [0], [1], [0, 0, 1, 1], [], []>} : vector<4x16xf32>, vector<16x32xf32>, vector<4x32xf32> -> vector<4x32xf32>
    %c0_188 = arith.constant 0 : index
    %c0_189 = arith.constant 0 : index
    %206 = vector.load %arg4[%c0_188, %c0_189] : memref<32x32xf32, #tpu.memory_space<vmem>>, vector<32x32xf32>
    %cst_190 = arith.constant dense<0.000000e+00> : vector<1x32xf32>
    %207 = tpu.matmul %202, %206, %cst_190 {dimension_numbers = #tpu.dot_dimension_numbers<[1], [1], [0], [0], [0, 0, 1, 0], [], []>} : vector<1x32xf32>, vector<32x32xf32>, vector<1x32xf32> -> vector<1x32xf32>
    %c0_191 = arith.constant 0 : index
    %c0_192 = arith.constant 0 : index
    %208 = vector.load %arg5[%c0_191, %c0_192] : memref<1x32xf32, #tpu.memory_space<vmem>>, vector<1x32xf32>
    %209 = arith.addf %207, %208 : vector<1x32xf32>
    %c0_193 = arith.constant 0 : index
    %c0_194 = arith.constant 0 : index
    %210 = vector.load %arg6[%c0_193, %c0_194] : memref<32x32xf32, #tpu.memory_space<vmem>>, vector<32x32xf32>
    %cst_195 = arith.constant dense<0.000000e+00> : vector<4x32xf32>
    %211 = tpu.matmul %205, %210, %cst_195 {dimension_numbers = #tpu.dot_dimension_numbers<[1], [1], [0], [0], [0, 0, 1, 0], [], []>} : vector<4x32xf32>, vector<32x32xf32>, vector<4x32xf32> -> vector<4x32xf32>
    %c0_196 = arith.constant 0 : index
    %c0_197 = arith.constant 0 : index
    %212 = vector.load %arg7[%c0_196, %c0_197] : memref<1x32xf32, #tpu.memory_space<vmem>>, vector<1x32xf32>
    %213 = vector.broadcast %212 : vector<1x32xf32> to vector<4x32xf32>
    %214 = arith.addf %211, %213 : vector<4x32xf32>
    %c0_198 = arith.constant 0 : index
    %c0_199 = arith.constant 0 : index
    %215 = vector.load %arg8[%c0_198, %c0_199] : memref<32x32xf32, #tpu.memory_space<vmem>>, vector<32x32xf32>
    %cst_200 = arith.constant dense<0.000000e+00> : vector<4x32xf32>
    %216 = tpu.matmul %205, %215, %cst_200 {dimension_numbers = #tpu.dot_dimension_numbers<[1], [1], [0], [0], [0, 0, 1, 0], [], []>} : vector<4x32xf32>, vector<32x32xf32>, vector<4x32xf32> -> vector<4x32xf32>
    %c0_201 = arith.constant 0 : index
    %c0_202 = arith.constant 0 : index
    %217 = vector.load %arg9[%c0_201, %c0_202] : memref<1x32xf32, #tpu.memory_space<vmem>>, vector<1x32xf32>
    %218 = vector.broadcast %217 : vector<1x32xf32> to vector<4x32xf32>
    %219 = arith.addf %216, %218 : vector<4x32xf32>
    %220 = vector.broadcast %209 : vector<1x32xf32> to vector<4x32xf32>
    %221 = arith.mulf %220, %214 : vector<4x32xf32>
    %cst_203 = arith.constant 0.353553385 : f32
    %222 = vector.broadcast %cst_203 : f32 to vector<4x32xf32>
    %223 = arith.mulf %221, %222 : vector<4x32xf32>
    %cst_204 = arith.constant dense<0.000000e+00> : vector<4x4xf32>
    %224 = tpu.matmul %223, %1, %cst_204 {dimension_numbers = #tpu.dot_dimension_numbers<[1], [0], [0], [1], [0, 0, 1, 1], [], []>} : vector<4x32xf32>, vector<32x4xf32>, vector<4x4xf32> -> vector<4x4xf32>
    %cst_205 = arith.constant dense<0xFF800000> : vector<4xf32>
    %225 = vector.multi_reduction <maximumf>, %224, %cst_205 [0] : vector<4x4xf32> to vector<4xf32>
    %226 = vector.shape_cast %225 : vector<4xf32> to vector<1x4xf32>
    %227 = vector.broadcast %226 : vector<1x4xf32> to vector<4x4xf32>
    %228 = arith.subf %224, %227 : vector<4x4xf32>
    %229 = math.exp %228 : vector<4x4xf32>
    %cst_206 = arith.constant dense<0.000000e+00> : vector<4xf32>
    %230 = vector.multi_reduction <add>, %229, %cst_206 [0] : vector<4x4xf32> to vector<4xf32>
    %231 = vector.shape_cast %230 : vector<4xf32> to vector<1x4xf32>
    %232 = vector.broadcast %231 : vector<1x4xf32> to vector<4x4xf32>
    %233 = arith.divf %229, %232 : vector<4x4xf32>
    %cst_207 = arith.constant dense<0.000000e+00> : vector<4x32xf32>
    %234 = tpu.matmul %233, %1, %cst_207 {dimension_numbers = #tpu.dot_dimension_numbers<[1], [1], [0], [0], [0, 0, 1, 0], [], []>} : vector<4x4xf32>, vector<32x4xf32>, vector<4x32xf32> -> vector<4x32xf32>
    %235 = arith.mulf %234, %219 : vector<4x32xf32>
    %cst_208 = arith.constant dense<0.000000e+00> : vector<32xf32>
    %236 = vector.multi_reduction <add>, %235, %cst_208 [0] : vector<4x32xf32> to vector<32xf32>
    %237 = vector.shape_cast %236 : vector<32xf32> to vector<1x32xf32>
    %c0_209 = arith.constant 0 : index
    %c0_210 = arith.constant 0 : index
    %238 = vector.load %arg10[%c0_209, %c0_210] : memref<32x32xf32, #tpu.memory_space<vmem>>, vector<32x32xf32>
    %cst_211 = arith.constant dense<0.000000e+00> : vector<1x32xf32>
    %239 = tpu.matmul %237, %238, %cst_211 {dimension_numbers = #tpu.dot_dimension_numbers<[1], [1], [0], [0], [0, 0, 1, 0], [], []>} : vector<1x32xf32>, vector<32x32xf32>, vector<1x32xf32> -> vector<1x32xf32>
    %c0_212 = arith.constant 0 : index
    %c0_213 = arith.constant 0 : index
    %240 = vector.load %arg11[%c0_212, %c0_213] : memref<1x32xf32, #tpu.memory_space<vmem>>, vector<1x32xf32>
    %241 = arith.addf %239, %240 : vector<1x32xf32>
    %c0_214 = arith.constant 0 : index
    %c0_215 = arith.constant 0 : index
    %242 = vector.load %arg12[%c0_214, %c0_215] : memref<32x32xf32, #tpu.memory_space<vmem>>, vector<32x32xf32>
    %cst_216 = arith.constant dense<0.000000e+00> : vector<1x32xf32>
    %243 = tpu.matmul %241, %242, %cst_216 {dimension_numbers = #tpu.dot_dimension_numbers<[1], [1], [0], [0], [0, 0, 1, 0], [], []>} : vector<1x32xf32>, vector<32x32xf32>, vector<1x32xf32> -> vector<1x32xf32>
    %c0_217 = arith.constant 0 : index
    %c0_218 = arith.constant 0 : index
    %244 = vector.load %arg13[%c0_217, %c0_218] : memref<1x32xf32, #tpu.memory_space<vmem>>, vector<1x32xf32>
    %245 = arith.addf %243, %244 : vector<1x32xf32>
    %c0_219 = arith.constant 0 : index
    %c0_220 = arith.constant 0 : index
    %246 = vector.load %arg14[%c0_219, %c0_220] : memref<32x32xf32, #tpu.memory_space<vmem>>, vector<32x32xf32>
    %cst_221 = arith.constant dense<0.000000e+00> : vector<1x32xf32>
    %247 = tpu.matmul %245, %246, %cst_221 {dimension_numbers = #tpu.dot_dimension_numbers<[1], [1], [0], [0], [0, 0, 1, 0], [], []>} : vector<1x32xf32>, vector<32x32xf32>, vector<1x32xf32> -> vector<1x32xf32>
    %c0_222 = arith.constant 0 : index
    %c0_223 = arith.constant 0 : index
    %248 = vector.load %arg15[%c0_222, %c0_223] : memref<1x32xf32, #tpu.memory_space<vmem>>, vector<1x32xf32>
    %249 = arith.addf %247, %248 : vector<1x32xf32>
    %c4_224 = arith.constant 4 : index
    %c0_225 = arith.constant 0 : index
    %250 = vector.load %arg17[%c4_224, %c0_225] : memref<8x32xf32, #tpu.memory_space<vmem>>, vector<1x32xf32>
    tpu.vector_store %arg17[%c4_224, %c0_225], %241 {strides = array<i32>} : memref<8x32xf32, #tpu.memory_space<vmem>>, vector<1x32xf32>,
    %c4_226 = arith.constant 4 : index
    %c0_227 = arith.constant 0 : index
    %251 = vector.load %arg18[%c4_226, %c0_227] : memref<8x32xf32, #tpu.memory_space<vmem>>, vector<1x32xf32>
    tpu.vector_store %arg18[%c4_226, %c0_227], %249 {strides = array<i32>} : memref<8x32xf32, #tpu.memory_space<vmem>>, vector<1x32xf32>,
    %c5 = arith.constant 5 : index
    %c0_228 = arith.constant 0 : index
    %252 = vector.load %arg1[%c5, %c0_228] : memref<8x32xf32, #tpu.memory_space<vmem>>, vector<1x32xf32>
    %c5_229 = arith.constant 5 : index
    %c0_230 = arith.constant 0 : index
    %c0_231 = arith.constant 0 : index
    %253 = vector.load %arg3[%c5_229, %c0_230, %c0_231] : memref<8x4x16xf32, #tpu.memory_space<vmem>>, vector<1x4x16xf32>
    %254 = vector.shape_cast %253 : vector<1x4x16xf32> to vector<4x16xf32>
    %cst_232 = arith.constant dense<0.000000e+00> : vector<4x32xf32>
    %255 = tpu.matmul %254, %0, %cst_232 {dimension_numbers = #tpu.dot_dimension_numbers<[1], [0], [0], [1], [0, 0, 1, 1], [], []>} : vector<4x16xf32>, vector<16x32xf32>, vector<4x32xf32> -> vector<4x32xf32>
    %c0_233 = arith.constant 0 : index
    %c0_234 = arith.constant 0 : index
    %256 = vector.load %arg4[%c0_233, %c0_234] : memref<32x32xf32, #tpu.memory_space<vmem>>, vector<32x32xf32>
    %cst_235 = arith.constant dense<0.000000e+00> : vector<1x32xf32>
    %257 = tpu.matmul %252, %256, %cst_235 {dimension_numbers = #tpu.dot_dimension_numbers<[1], [1], [0], [0], [0, 0, 1, 0], [], []>} : vector<1x32xf32>, vector<32x32xf32>, vector<1x32xf32> -> vector<1x32xf32>
    %c0_236 = arith.constant 0 : index
    %c0_237 = arith.constant 0 : index
    %258 = vector.load %arg5[%c0_236, %c0_237] : memref<1x32xf32, #tpu.memory_space<vmem>>, vector<1x32xf32>
    %259 = arith.addf %257, %258 : vector<1x32xf32>
    %c0_238 = arith.constant 0 : index
    %c0_239 = arith.constant 0 : index
    %260 = vector.load %arg6[%c0_238, %c0_239] : memref<32x32xf32, #tpu.memory_space<vmem>>, vector<32x32xf32>
    %cst_240 = arith.constant dense<0.000000e+00> : vector<4x32xf32>
    %261 = tpu.matmul %255, %260, %cst_240 {dimension_numbers = #tpu.dot_dimension_numbers<[1], [1], [0], [0], [0, 0, 1, 0], [], []>} : vector<4x32xf32>, vector<32x32xf32>, vector<4x32xf32> -> vector<4x32xf32>
    %c0_241 = arith.constant 0 : index
    %c0_242 = arith.constant 0 : index
    %262 = vector.load %arg7[%c0_241, %c0_242] : memref<1x32xf32, #tpu.memory_space<vmem>>, vector<1x32xf32>
    %263 = vector.broadcast %262 : vector<1x32xf32> to vector<4x32xf32>
    %264 = arith.addf %261, %263 : vector<4x32xf32>
    %c0_243 = arith.constant 0 : index
    %c0_244 = arith.constant 0 : index
    %265 = vector.load %arg8[%c0_243, %c0_244] : memref<32x32xf32, #tpu.memory_space<vmem>>, vector<32x32xf32>
    %cst_245 = arith.constant dense<0.000000e+00> : vector<4x32xf32>
    %266 = tpu.matmul %255, %265, %cst_245 {dimension_numbers = #tpu.dot_dimension_numbers<[1], [1], [0], [0], [0, 0, 1, 0], [], []>} : vector<4x32xf32>, vector<32x32xf32>, vector<4x32xf32> -> vector<4x32xf32>
    %c0_246 = arith.constant 0 : index
    %c0_247 = arith.constant 0 : index
    %267 = vector.load %arg9[%c0_246, %c0_247] : memref<1x32xf32, #tpu.memory_space<vmem>>, vector<1x32xf32>
    %268 = vector.broadcast %267 : vector<1x32xf32> to vector<4x32xf32>
    %269 = arith.addf %266, %268 : vector<4x32xf32>
    %270 = vector.broadcast %259 : vector<1x32xf32> to vector<4x32xf32>
    %271 = arith.mulf %270, %264 : vector<4x32xf32>
    %cst_248 = arith.constant 0.353553385 : f32
    %272 = vector.broadcast %cst_248 : f32 to vector<4x32xf32>
    %273 = arith.mulf %271, %272 : vector<4x32xf32>
    %cst_249 = arith.constant dense<0.000000e+00> : vector<4x4xf32>
    %274 = tpu.matmul %273, %1, %cst_249 {dimension_numbers = #tpu.dot_dimension_numbers<[1], [0], [0], [1], [0, 0, 1, 1], [], []>} : vector<4x32xf32>, vector<32x4xf32>, vector<4x4xf32> -> vector<4x4xf32>
    %cst_250 = arith.constant dense<0xFF800000> : vector<4xf32>
    %275 = vector.multi_reduction <maximumf>, %274, %cst_250 [0] : vector<4x4xf32> to vector<4xf32>
    %276 = vector.shape_cast %275 : vector<4xf32> to vector<1x4xf32>
    %277 = vector.broadcast %276 : vector<1x4xf32> to vector<4x4xf32>
    %278 = arith.subf %274, %277 : vector<4x4xf32>
    %279 = math.exp %278 : vector<4x4xf32>
    %cst_251 = arith.constant dense<0.000000e+00> : vector<4xf32>
    %280 = vector.multi_reduction <add>, %279, %cst_251 [0] : vector<4x4xf32> to vector<4xf32>
    %281 = vector.shape_cast %280 : vector<4xf32> to vector<1x4xf32>
    %282 = vector.broadcast %281 : vector<1x4xf32> to vector<4x4xf32>
    %283 = arith.divf %279, %282 : vector<4x4xf32>
    %cst_252 = arith.constant dense<0.000000e+00> : vector<4x32xf32>
    %284 = tpu.matmul %283, %1, %cst_252 {dimension_numbers = #tpu.dot_dimension_numbers<[1], [1], [0], [0], [0, 0, 1, 0], [], []>} : vector<4x4xf32>, vector<32x4xf32>, vector<4x32xf32> -> vector<4x32xf32>
    %285 = arith.mulf %284, %269 : vector<4x32xf32>
    %cst_253 = arith.constant dense<0.000000e+00> : vector<32xf32>
    %286 = vector.multi_reduction <add>, %285, %cst_253 [0] : vector<4x32xf32> to vector<32xf32>
    %287 = vector.shape_cast %286 : vector<32xf32> to vector<1x32xf32>
    %c0_254 = arith.constant 0 : index
    %c0_255 = arith.constant 0 : index
    %288 = vector.load %arg10[%c0_254, %c0_255] : memref<32x32xf32, #tpu.memory_space<vmem>>, vector<32x32xf32>
    %cst_256 = arith.constant dense<0.000000e+00> : vector<1x32xf32>
    %289 = tpu.matmul %287, %288, %cst_256 {dimension_numbers = #tpu.dot_dimension_numbers<[1], [1], [0], [0], [0, 0, 1, 0], [], []>} : vector<1x32xf32>, vector<32x32xf32>, vector<1x32xf32> -> vector<1x32xf32>
    %c0_257 = arith.constant 0 : index
    %c0_258 = arith.constant 0 : index
    %290 = vector.load %arg11[%c0_257, %c0_258] : memref<1x32xf32, #tpu.memory_space<vmem>>, vector<1x32xf32>
    %291 = arith.addf %289, %290 : vector<1x32xf32>
    %c0_259 = arith.constant 0 : index
    %c0_260 = arith.constant 0 : index
    %292 = vector.load %arg12[%c0_259, %c0_260] : memref<32x32xf32, #tpu.memory_space<vmem>>, vector<32x32xf32>
    %cst_261 = arith.constant dense<0.000000e+00> : vector<1x32xf32>
    %293 = tpu.matmul %291, %292, %cst_261 {dimension_numbers = #tpu.dot_dimension_numbers<[1], [1], [0], [0], [0, 0, 1, 0], [], []>} : vector<1x32xf32>, vector<32x32xf32>, vector<1x32xf32> -> vector<1x32xf32>
    %c0_262 = arith.constant 0 : index
    %c0_263 = arith.constant 0 : index
    %294 = vector.load %arg13[%c0_262, %c0_263] : memref<1x32xf32, #tpu.memory_space<vmem>>, vector<1x32xf32>
    %295 = arith.addf %293, %294 : vector<1x32xf32>
    %c0_264 = arith.constant 0 : index
    %c0_265 = arith.constant 0 : index
    %296 = vector.load %arg14[%c0_264, %c0_265] : memref<32x32xf32, #tpu.memory_space<vmem>>, vector<32x32xf32>
    %cst_266 = arith.constant dense<0.000000e+00> : vector<1x32xf32>
    %297 = tpu.matmul %295, %296, %cst_266 {dimension_numbers = #tpu.dot_dimension_numbers<[1], [1], [0], [0], [0, 0, 1, 0], [], []>} : vector<1x32xf32>, vector<32x32xf32>, vector<1x32xf32> -> vector<1x32xf32>
    %c0_267 = arith.constant 0 : index
    %c0_268 = arith.constant 0 : index
    %298 = vector.load %arg15[%c0_267, %c0_268] : memref<1x32xf32, #tpu.memory_space<vmem>>, vector<1x32xf32>
    %299 = arith.addf %297, %298 : vector<1x32xf32>
    %c5_269 = arith.constant 5 : index
    %c0_270 = arith.constant 0 : index
    %300 = vector.load %arg17[%c5_269, %c0_270] : memref<8x32xf32, #tpu.memory_space<vmem>>, vector<1x32xf32>
    tpu.vector_store %arg17[%c5_269, %c0_270], %291 {strides = array<i32>} : memref<8x32xf32, #tpu.memory_space<vmem>>, vector<1x32xf32>,
    %c5_271 = arith.constant 5 : index
    %c0_272 = arith.constant 0 : index
    %301 = vector.load %arg18[%c5_271, %c0_272] : memref<8x32xf32, #tpu.memory_space<vmem>>, vector<1x32xf32>
    tpu.vector_store %arg18[%c5_271, %c0_272], %299 {strides = array<i32>} : memref<8x32xf32, #tpu.memory_space<vmem>>, vector<1x32xf32>,
    %c6 = arith.constant 6 : index
    %c0_273 = arith.constant 0 : index
    %302 = vector.load %arg1[%c6, %c0_273] : memref<8x32xf32, #tpu.memory_space<vmem>>, vector<1x32xf32>
    %c6_274 = arith.constant 6 : index
    %c0_275 = arith.constant 0 : index
    %c0_276 = arith.constant 0 : index
    %303 = vector.load %arg3[%c6_274, %c0_275, %c0_276] : memref<8x4x16xf32, #tpu.memory_space<vmem>>, vector<1x4x16xf32>
    %304 = vector.shape_cast %303 : vector<1x4x16xf32> to vector<4x16xf32>
    %cst_277 = arith.constant dense<0.000000e+00> : vector<4x32xf32>
    %305 = tpu.matmul %304, %0, %cst_277 {dimension_numbers = #tpu.dot_dimension_numbers<[1], [0], [0], [1], [0, 0, 1, 1], [], []>} : vector<4x16xf32>, vector<16x32xf32>, vector<4x32xf32> -> vector<4x32xf32>
    %c0_278 = arith.constant 0 : index
    %c0_279 = arith.constant 0 : index
    %306 = vector.load %arg4[%c0_278, %c0_279] : memref<32x32xf32, #tpu.memory_space<vmem>>, vector<32x32xf32>
    %cst_280 = arith.constant dense<0.000000e+00> : vector<1x32xf32>
    %307 = tpu.matmul %302, %306, %cst_280 {dimension_numbers = #tpu.dot_dimension_numbers<[1], [1], [0], [0], [0, 0, 1, 0], [], []>} : vector<1x32xf32>, vector<32x32xf32>, vector<1x32xf32> -> vector<1x32xf32>
    %c0_281 = arith.constant 0 : index
    %c0_282 = arith.constant 0 : index
    %308 = vector.load %arg5[%c0_281, %c0_282] : memref<1x32xf32, #tpu.memory_space<vmem>>, vector<1x32xf32>
    %309 = arith.addf %307, %308 : vector<1x32xf32>
    %c0_283 = arith.constant 0 : index
    %c0_284 = arith.constant 0 : index
    %310 = vector.load %arg6[%c0_283, %c0_284] : memref<32x32xf32, #tpu.memory_space<vmem>>, vector<32x32xf32>
    %cst_285 = arith.constant dense<0.000000e+00> : vector<4x32xf32>
    %311 = tpu.matmul %305, %310, %cst_285 {dimension_numbers = #tpu.dot_dimension_numbers<[1], [1], [0], [0], [0, 0, 1, 0], [], []>} : vector<4x32xf32>, vector<32x32xf32>, vector<4x32xf32> -> vector<4x32xf32>
    %c0_286 = arith.constant 0 : index
    %c0_287 = arith.constant 0 : index
    %312 = vector.load %arg7[%c0_286, %c0_287] : memref<1x32xf32, #tpu.memory_space<vmem>>, vector<1x32xf32>
    %313 = vector.broadcast %312 : vector<1x32xf32> to vector<4x32xf32>
    %314 = arith.addf %311, %313 : vector<4x32xf32>
    %c0_288 = arith.constant 0 : index
    %c0_289 = arith.constant 0 : index
    %315 = vector.load %arg8[%c0_288, %c0_289] : memref<32x32xf32, #tpu.memory_space<vmem>>, vector<32x32xf32>
    %cst_290 = arith.constant dense<0.000000e+00> : vector<4x32xf32>
    %316 = tpu.matmul %305, %315, %cst_290 {dimension_numbers = #tpu.dot_dimension_numbers<[1], [1], [0], [0], [0, 0, 1, 0], [], []>} : vector<4x32xf32>, vector<32x32xf32>, vector<4x32xf32> -> vector<4x32xf32>
    %c0_291 = arith.constant 0 : index
    %c0_292 = arith.constant 0 : index
    %317 = vector.load %arg9[%c0_291, %c0_292] : memref<1x32xf32, #tpu.memory_space<vmem>>, vector<1x32xf32>
    %318 = vector.broadcast %317 : vector<1x32xf32> to vector<4x32xf32>
    %319 = arith.addf %316, %318 : vector<4x32xf32>
    %320 = vector.broadcast %309 : vector<1x32xf32> to vector<4x32xf32>
    %321 = arith.mulf %320, %314 : vector<4x32xf32>
    %cst_293 = arith.constant 0.353553385 : f32
    %322 = vector.broadcast %cst_293 : f32 to vector<4x32xf32>
    %323 = arith.mulf %321, %322 : vector<4x32xf32>
    %cst_294 = arith.constant dense<0.000000e+00> : vector<4x4xf32>
    %324 = tpu.matmul %323, %1, %cst_294 {dimension_numbers = #tpu.dot_dimension_numbers<[1], [0], [0], [1], [0, 0, 1, 1], [], []>} : vector<4x32xf32>, vector<32x4xf32>, vector<4x4xf32> -> vector<4x4xf32>
    %cst_295 = arith.constant dense<0xFF800000> : vector<4xf32>
    %325 = vector.multi_reduction <maximumf>, %324, %cst_295 [0] : vector<4x4xf32> to vector<4xf32>
    %326 = vector.shape_cast %325 : vector<4xf32> to vector<1x4xf32>
    %327 = vector.broadcast %326 : vector<1x4xf32> to vector<4x4xf32>
    %328 = arith.subf %324, %327 : vector<4x4xf32>
    %329 = math.exp %328 : vector<4x4xf32>
    %cst_296 = arith.constant dense<0.000000e+00> : vector<4xf32>
    %330 = vector.multi_reduction <add>, %329, %cst_296 [0] : vector<4x4xf32> to vector<4xf32>
    %331 = vector.shape_cast %330 : vector<4xf32> to vector<1x4xf32>
    %332 = vector.broadcast %331 : vector<1x4xf32> to vector<4x4xf32>
    %333 = arith.divf %329, %332 : vector<4x4xf32>
    %cst_297 = arith.constant dense<0.000000e+00> : vector<4x32xf32>
    %334 = tpu.matmul %333, %1, %cst_297 {dimension_numbers = #tpu.dot_dimension_numbers<[1], [1], [0], [0], [0, 0, 1, 0], [], []>} : vector<4x4xf32>, vector<32x4xf32>, vector<4x32xf32> -> vector<4x32xf32>
    %335 = arith.mulf %334, %319 : vector<4x32xf32>
    %cst_298 = arith.constant dense<0.000000e+00> : vector<32xf32>
    %336 = vector.multi_reduction <add>, %335, %cst_298 [0] : vector<4x32xf32> to vector<32xf32>
    %337 = vector.shape_cast %336 : vector<32xf32> to vector<1x32xf32>
    %c0_299 = arith.constant 0 : index
    %c0_300 = arith.constant 0 : index
    %338 = vector.load %arg10[%c0_299, %c0_300] : memref<32x32xf32, #tpu.memory_space<vmem>>, vector<32x32xf32>
    %cst_301 = arith.constant dense<0.000000e+00> : vector<1x32xf32>
    %339 = tpu.matmul %337, %338, %cst_301 {dimension_numbers = #tpu.dot_dimension_numbers<[1], [1], [0], [0], [0, 0, 1, 0], [], []>} : vector<1x32xf32>, vector<32x32xf32>, vector<1x32xf32> -> vector<1x32xf32>
    %c0_302 = arith.constant 0 : index
    %c0_303 = arith.constant 0 : index
    %340 = vector.load %arg11[%c0_302, %c0_303] : memref<1x32xf32, #tpu.memory_space<vmem>>, vector<1x32xf32>
    %341 = arith.addf %339, %340 : vector<1x32xf32>
    %c0_304 = arith.constant 0 : index
    %c0_305 = arith.constant 0 : index
    %342 = vector.load %arg12[%c0_304, %c0_305] : memref<32x32xf32, #tpu.memory_space<vmem>>, vector<32x32xf32>
    %cst_306 = arith.constant dense<0.000000e+00> : vector<1x32xf32>
    %343 = tpu.matmul %341, %342, %cst_306 {dimension_numbers = #tpu.dot_dimension_numbers<[1], [1], [0], [0], [0, 0, 1, 0], [], []>} : vector<1x32xf32>, vector<32x32xf32>, vector<1x32xf32> -> vector<1x32xf32>
    %c0_307 = arith.constant 0 : index
    %c0_308 = arith.constant 0 : index
    %344 = vector.load %arg13[%c0_307, %c0_308] : memref<1x32xf32, #tpu.memory_space<vmem>>, vector<1x32xf32>
    %345 = arith.addf %343, %344 : vector<1x32xf32>
    %c0_309 = arith.constant 0 : index
    %c0_310 = arith.constant 0 : index
    %346 = vector.load %arg14[%c0_309, %c0_310] : memref<32x32xf32, #tpu.memory_space<vmem>>, vector<32x32xf32>
    %cst_311 = arith.constant dense<0.000000e+00> : vector<1x32xf32>
    %347 = tpu.matmul %345, %346, %cst_311 {dimension_numbers = #tpu.dot_dimension_numbers<[1], [1], [0], [0], [0, 0, 1, 0], [], []>} : vector<1x32xf32>, vector<32x32xf32>, vector<1x32xf32> -> vector<1x32xf32>
    %c0_312 = arith.constant 0 : index
    %c0_313 = arith.constant 0 : index
    %348 = vector.load %arg15[%c0_312, %c0_313] : memref<1x32xf32, #tpu.memory_space<vmem>>, vector<1x32xf32>
    %349 = arith.addf %347, %348 : vector<1x32xf32>
    %c6_314 = arith.constant 6 : index
    %c0_315 = arith.constant 0 : index
    %350 = vector.load %arg17[%c6_314, %c0_315] : memref<8x32xf32, #tpu.memory_space<vmem>>, vector<1x32xf32>
    tpu.vector_store %arg17[%c6_314, %c0_315], %341 {strides = array<i32>} : memref<8x32xf32, #tpu.memory_space<vmem>>, vector<1x32xf32>,
    %c6_316 = arith.constant 6 : index
    %c0_317 = arith.constant 0 : index
    %351 = vector.load %arg18[%c6_316, %c0_317] : memref<8x32xf32, #tpu.memory_space<vmem>>, vector<1x32xf32>
    tpu.vector_store %arg18[%c6_316, %c0_317], %349 {strides = array<i32>} : memref<8x32xf32, #tpu.memory_space<vmem>>, vector<1x32xf32>,
    %c7 = arith.constant 7 : index
    %c0_318 = arith.constant 0 : index
    %352 = vector.load %arg1[%c7, %c0_318] : memref<8x32xf32, #tpu.memory_space<vmem>>, vector<1x32xf32>
    %c7_319 = arith.constant 7 : index
    %c0_320 = arith.constant 0 : index
    %c0_321 = arith.constant 0 : index
    %353 = vector.load %arg3[%c7_319, %c0_320, %c0_321] : memref<8x4x16xf32, #tpu.memory_space<vmem>>, vector<1x4x16xf32>
    %354 = vector.shape_cast %353 : vector<1x4x16xf32> to vector<4x16xf32>
    %cst_322 = arith.constant dense<0.000000e+00> : vector<4x32xf32>
    %355 = tpu.matmul %354, %0, %cst_322 {dimension_numbers = #tpu.dot_dimension_numbers<[1], [0], [0], [1], [0, 0, 1, 1], [], []>} : vector<4x16xf32>, vector<16x32xf32>, vector<4x32xf32> -> vector<4x32xf32>
    %c0_323 = arith.constant 0 : index
    %c0_324 = arith.constant 0 : index
    %356 = vector.load %arg4[%c0_323, %c0_324] : memref<32x32xf32, #tpu.memory_space<vmem>>, vector<32x32xf32>
    %cst_325 = arith.constant dense<0.000000e+00> : vector<1x32xf32>
    %357 = tpu.matmul %352, %356, %cst_325 {dimension_numbers = #tpu.dot_dimension_numbers<[1], [1], [0], [0], [0, 0, 1, 0], [], []>} : vector<1x32xf32>, vector<32x32xf32>, vector<1x32xf32> -> vector<1x32xf32>
    %c0_326 = arith.constant 0 : index
    %c0_327 = arith.constant 0 : index
    %358 = vector.load %arg5[%c0_326, %c0_327] : memref<1x32xf32, #tpu.memory_space<vmem>>, vector<1x32xf32>
    %359 = arith.addf %357, %358 : vector<1x32xf32>
    %c0_328 = arith.constant 0 : index
    %c0_329 = arith.constant 0 : index
    %360 = vector.load %arg6[%c0_328, %c0_329] : memref<32x32xf32, #tpu.memory_space<vmem>>, vector<32x32xf32>
    %cst_330 = arith.constant dense<0.000000e+00> : vector<4x32xf32>
    %361 = tpu.matmul %355, %360, %cst_330 {dimension_numbers = #tpu.dot_dimension_numbers<[1], [1], [0], [0], [0, 0, 1, 0], [], []>} : vector<4x32xf32>, vector<32x32xf32>, vector<4x32xf32> -> vector<4x32xf32>
    %c0_331 = arith.constant 0 : index
    %c0_332 = arith.constant 0 : index
    %362 = vector.load %arg7[%c0_331, %c0_332] : memref<1x32xf32, #tpu.memory_space<vmem>>, vector<1x32xf32>
    %363 = vector.broadcast %362 : vector<1x32xf32> to vector<4x32xf32>
    %364 = arith.addf %361, %363 : vector<4x32xf32>
    %c0_333 = arith.constant 0 : index
    %c0_334 = arith.constant 0 : index
    %365 = vector.load %arg8[%c0_333, %c0_334] : memref<32x32xf32, #tpu.memory_space<vmem>>, vector<32x32xf32>
    %cst_335 = arith.constant dense<0.000000e+00> : vector<4x32xf32>
    %366 = tpu.matmul %355, %365, %cst_335 {dimension_numbers = #tpu.dot_dimension_numbers<[1], [1], [0], [0], [0, 0, 1, 0], [], []>} : vector<4x32xf32>, vector<32x32xf32>, vector<4x32xf32> -> vector<4x32xf32>
    %c0_336 = arith.constant 0 : index
    %c0_337 = arith.constant 0 : index
    %367 = vector.load %arg9[%c0_336, %c0_337] : memref<1x32xf32, #tpu.memory_space<vmem>>, vector<1x32xf32>
    %368 = vector.broadcast %367 : vector<1x32xf32> to vector<4x32xf32>
    %369 = arith.addf %366, %368 : vector<4x32xf32>
    %370 = vector.broadcast %359 : vector<1x32xf32> to vector<4x32xf32>
    %371 = arith.mulf %370, %364 : vector<4x32xf32>
    %cst_338 = arith.constant 0.353553385 : f32
    %372 = vector.broadcast %cst_338 : f32 to vector<4x32xf32>
    %373 = arith.mulf %371, %372 : vector<4x32xf32>
    %cst_339 = arith.constant dense<0.000000e+00> : vector<4x4xf32>
    %374 = tpu.matmul %373, %1, %cst_339 {dimension_numbers = #tpu.dot_dimension_numbers<[1], [0], [0], [1], [0, 0, 1, 1], [], []>} : vector<4x32xf32>, vector<32x4xf32>, vector<4x4xf32> -> vector<4x4xf32>
    %cst_340 = arith.constant dense<0xFF800000> : vector<4xf32>
    %375 = vector.multi_reduction <maximumf>, %374, %cst_340 [0] : vector<4x4xf32> to vector<4xf32>
    %376 = vector.shape_cast %375 : vector<4xf32> to vector<1x4xf32>
    %377 = vector.broadcast %376 : vector<1x4xf32> to vector<4x4xf32>
    %378 = arith.subf %374, %377 : vector<4x4xf32>
    %379 = math.exp %378 : vector<4x4xf32>
    %cst_341 = arith.constant dense<0.000000e+00> : vector<4xf32>
    %380 = vector.multi_reduction <add>, %379, %cst_341 [0] : vector<4x4xf32> to vector<4xf32>
    %381 = vector.shape_cast %380 : vector<4xf32> to vector<1x4xf32>
    %382 = vector.broadcast %381 : vector<1x4xf32> to vector<4x4xf32>
    %383 = arith.divf %379, %382 : vector<4x4xf32>
    %cst_342 = arith.constant dense<0.000000e+00> : vector<4x32xf32>
    %384 = tpu.matmul %383, %1, %cst_342 {dimension_numbers = #tpu.dot_dimension_numbers<[1], [1], [0], [0], [0, 0, 1, 0], [], []>} : vector<4x4xf32>, vector<32x4xf32>, vector<4x32xf32> -> vector<4x32xf32>
    %385 = arith.mulf %384, %369 : vector<4x32xf32>
    %cst_343 = arith.constant dense<0.000000e+00> : vector<32xf32>
    %386 = vector.multi_reduction <add>, %385, %cst_343 [0] : vector<4x32xf32> to vector<32xf32>
    %387 = vector.shape_cast %386 : vector<32xf32> to vector<1x32xf32>
    %c0_344 = arith.constant 0 : index
    %c0_345 = arith.constant 0 : index
    %388 = vector.load %arg10[%c0_344, %c0_345] : memref<32x32xf32, #tpu.memory_space<vmem>>, vector<32x32xf32>
    %cst_346 = arith.constant dense<0.000000e+00> : vector<1x32xf32>
    %389 = tpu.matmul %387, %388, %cst_346 {dimension_numbers = #tpu.dot_dimension_numbers<[1], [1], [0], [0], [0, 0, 1, 0], [], []>} : vector<1x32xf32>, vector<32x32xf32>, vector<1x32xf32> -> vector<1x32xf32>
    %c0_347 = arith.constant 0 : index
    %c0_348 = arith.constant 0 : index
    %390 = vector.load %arg11[%c0_347, %c0_348] : memref<1x32xf32, #tpu.memory_space<vmem>>, vector<1x32xf32>
    %391 = arith.addf %389, %390 : vector<1x32xf32>
    %c0_349 = arith.constant 0 : index
    %c0_350 = arith.constant 0 : index
    %392 = vector.load %arg12[%c0_349, %c0_350] : memref<32x32xf32, #tpu.memory_space<vmem>>, vector<32x32xf32>
    %cst_351 = arith.constant dense<0.000000e+00> : vector<1x32xf32>
    %393 = tpu.matmul %391, %392, %cst_351 {dimension_numbers = #tpu.dot_dimension_numbers<[1], [1], [0], [0], [0, 0, 1, 0], [], []>} : vector<1x32xf32>, vector<32x32xf32>, vector<1x32xf32> -> vector<1x32xf32>
    %c0_352 = arith.constant 0 : index
    %c0_353 = arith.constant 0 : index
    %394 = vector.load %arg13[%c0_352, %c0_353] : memref<1x32xf32, #tpu.memory_space<vmem>>, vector<1x32xf32>
    %395 = arith.addf %393, %394 : vector<1x32xf32>
    %c0_354 = arith.constant 0 : index
    %c0_355 = arith.constant 0 : index
    %396 = vector.load %arg14[%c0_354, %c0_355] : memref<32x32xf32, #tpu.memory_space<vmem>>, vector<32x32xf32>
    %cst_356 = arith.constant dense<0.000000e+00> : vector<1x32xf32>
    %397 = tpu.matmul %395, %396, %cst_356 {dimension_numbers = #tpu.dot_dimension_numbers<[1], [1], [0], [0], [0, 0, 1, 0], [], []>} : vector<1x32xf32>, vector<32x32xf32>, vector<1x32xf32> -> vector<1x32xf32>
    %c0_357 = arith.constant 0 : index
    %c0_358 = arith.constant 0 : index
    %398 = vector.load %arg15[%c0_357, %c0_358] : memref<1x32xf32, #tpu.memory_space<vmem>>, vector<1x32xf32>
    %399 = arith.addf %397, %398 : vector<1x32xf32>
    %c7_359 = arith.constant 7 : index
    %c0_360 = arith.constant 0 : index
    %400 = vector.load %arg17[%c7_359, %c0_360] : memref<8x32xf32, #tpu.memory_space<vmem>>, vector<1x32xf32>
    tpu.vector_store %arg17[%c7_359, %c0_360], %391 {strides = array<i32>} : memref<8x32xf32, #tpu.memory_space<vmem>>, vector<1x32xf32>,
    %c7_361 = arith.constant 7 : index
    %c0_362 = arith.constant 0 : index
    %401 = vector.load %arg18[%c7_361, %c0_362] : memref<8x32xf32, #tpu.memory_space<vmem>>, vector<1x32xf32>
    tpu.vector_store %arg18[%c7_361, %c0_362], %399 {strides = array<i32>} : memref<8x32xf32, #tpu.memory_space<vmem>>, vector<1x32xf32>,
    return
  }
  func.func @transform_0(%arg0: i32) -> (i32, i32) {
    %c0_i32 = arith.constant 0 : i32
    %c0_i32_0 = arith.constant 0 : i32
    return %arg0, %c0_i32 : i32, i32
  }
  func.func @transform_1(%arg0: i32) -> (i32, i32) {
    %c0_i32 = arith.constant 0 : i32
    %c0_i32_0 = arith.constant 0 : i32
    %c0_i32_1 = arith.constant 0 : i32
    return %c0_i32, %c0_i32_0 : i32, i32
  }
  func.func @transform_2(%arg0: i32) -> (i32, i32, i32) {
    %c0_i32 = arith.constant 0 : i32
    %c0_i32_0 = arith.constant 0 : i32
    %c0_i32_1 = arith.constant 0 : i32
    return %arg0, %c0_i32, %c0_i32_0 : i32, i32, i32
  }
  func.func @transform_3(%arg0: i32) -> (i32, i32) {
    %c0_i32 = arith.constant 0 : i32
    %c0_i32_0 = arith.constant 0 : i32
    %c0_i32_1 = arith.constant 0 : i32
    return %c0_i32, %c0_i32_0 : i32, i32
  }
  func.func @transform_4(%arg0: i32) -> (i32, i32) {
    %c0_i32 = arith.constant 0 : i32
    %c0_i32_0 = arith.constant 0 : i32
    %c0_i32_1 = arith.constant 0 : i32
    return %c0_i32, %c0_i32_0 : i32, i32
  }
  func.func @transform_5(%arg0: i32) -> (i32, i32) {
    %c0_i32 = arith.constant 0 : i32
    %c0_i32_0 = arith.constant 0 : i32
    %c0_i32_1 = arith.constant 0 : i32
    return %c0_i32, %c0_i32_0 : i32, i32
  }
  func.func @transform_6(%arg0: i32) -> (i32, i32) {
    %c0_i32 = arith.constant 0 : i32
    %c0_i32_0 = arith.constant 0 : i32
    %c0_i32_1 = arith.constant 0 : i32
    return %c0_i32, %c0_i32_0 : i32, i32
  }
  func.func @transform_7(%arg0: i32) -> (i32, i32) {
    %c0_i32 = arith.constant 0 : i32
    %c0_i32_0 = arith.constant 0 : i32
    %c0_i32_1 = arith.constant 0 : i32
    return %c0_i32, %c0_i32_0 : i32, i32
  }
  func.func @transform_8(%arg0: i32) -> (i32, i32) {
    %c0_i32 = arith.constant 0 : i32
    %c0_i32_0 = arith.constant 0 : i32
    %c0_i32_1 = arith.constant 0 : i32
    return %c0_i32, %c0_i32_0 : i32, i32
  }
  func.func @transform_9(%arg0: i32) -> (i32, i32) {
    %c0_i32 = arith.constant 0 : i32
    %c0_i32_0 = arith.constant 0 : i32
    %c0_i32_1 = arith.constant 0 : i32
    return %c0_i32, %c0_i32_0 : i32, i32
  }
  func.func @transform_10(%arg0: i32) -> (i32, i32) {
    %c0_i32 = arith.constant 0 : i32
    %c0_i32_0 = arith.constant 0 : i32
    %c0_i32_1 = arith.constant 0 : i32
    return %c0_i32, %c0_i32_0 : i32, i32
  }
  func.func @transform_11(%arg0: i32) -> (i32, i32) {
    %c0_i32 = arith.constant 0 : i32
    %c0_i32_0 = arith.constant 0 : i32
    %c0_i32_1 = arith.constant 0 : i32
    return %c0_i32, %c0_i32_0 : i32, i32
  }
  func.func @transform_12(%arg0: i32) -> (i32, i32) {
    %c0_i32 = arith.constant 0 : i32
    %c0_i32_0 = arith.constant 0 : i32
    %c0_i32_1 = arith.constant 0 : i32
    return %c0_i32, %c0_i32_0 : i32, i32
  }
  func.func @transform_13(%arg0: i32) -> (i32, i32) {
    %c0_i32 = arith.constant 0 : i32
    %c0_i32_0 = arith.constant 0 : i32
    %c0_i32_1 = arith.constant 0 : i32
    return %c0_i32, %c0_i32_0 : i32, i32
  }
  func.func @transform_14(%arg0: i32) -> (i32, i32) {
    %c0_i32 = arith.constant 0 : i32
    %c0_i32_0 = arith.constant 0 : i32
    %c0_i32_1 = arith.constant 0 : i32
    return %c0_i32, %c0_i32_0 : i32, i32
  }
  func.func @transform_15(%arg0: i32) -> (i32, i32) {
    %c0_i32 = arith.constant 0 : i32
    %c0_i32_0 = arith.constant 0 : i32
    %c0_i32_1 = arith.constant 0 : i32
    return %c0_i32, %c0_i32_0 : i32, i32
  }
  func.func @transform_16(%arg0: i32) -> (i32, i32) {
    %c0_i32 = arith.constant 0 : i32
    %c0_i32_0 = arith.constant 0 : i32
    return %arg0, %c0_i32 : i32, i32
  }
  func.func @transform_17(%arg0: i32) -> (i32, i32) {
    %c0_i32 = arith.constant 0 : i32
    %c0_i32_0 = arith.constant 0 : i32
    return %arg0, %c0_i32 : i32, i32
  }
}

</mosaic_0001>

<llo_original>
// kernel: tpu_custom_call.1
$region0: #{tpu_custom_call.1}
  #allocation0 [shape = 'u32[]', space=smem, size = 0x4, offset = 0x4, fixed_abs, tag = 'smem constant byte address 0x4 - core index']
  #allocation1 [shape = 'u32[72,128]{1,0:T(1,128)}', space=vmem, size = 0x9000, scoped, tag = 'internal scratch']
  %s0 = inlined_call_operand.hbm [shape: f32[16,32], index: 0, kind: input, shape index: {}]
  %s1 = inlined_call_operand.hbm [shape: f32[16,32], index: 1, kind: input, shape index: {}]
  %s2 = inlined_call_operand.hbm [shape: f32[16,4,16], index: 2, kind: input, shape index: {}]
  %s3 = inlined_call_operand.vmem [shape: f32[32,32], index: 3, kind: input, shape index: {}]
  %s4 = inlined_call_operand.vmem [shape: f32[1,32], index: 4, kind: input, shape index: {}]
  %s5 = inlined_call_operand.hbm [shape: f32[32,32], index: 5, kind: input, shape index: {}]
  %s6 = inlined_call_operand.vmem [shape: f32[1,32], index: 6, kind: input, shape index: {}]
  %s7 = inlined_call_operand.hbm [shape: f32[32,32], index: 7, kind: input, shape index: {}]
  %s8 = inlined_call_operand.vmem [shape: f32[1,32], index: 8, kind: input, shape index: {}]
  %s9 = inlined_call_operand.hbm [shape: f32[32,32], index: 9, kind: input, shape index: {}]
  %s10 = inlined_call_operand.vmem [shape: f32[1,32], index: 10, kind: input, shape index: {}]
  %s11 = inlined_call_operand.hbm [shape: f32[32,32], index: 11, kind: input, shape index: {}]
  %s12 = inlined_call_operand.vmem [shape: f32[1,32], index: 12, kind: input, shape index: {}]
  %s13 = inlined_call_operand.hbm [shape: f32[32,32], index: 13, kind: input, shape index: {}]
  %s14 = inlined_call_operand.vmem [shape: f32[1,32], index: 14, kind: input, shape index: {}]
  %s15 = inlined_call_operand.vmem [shape: f32[32,4], index: 15, kind: input, shape index: {}]
  %s16 = inlined_call_operand.hbm [shape: f32[16,32], index: 16, kind: output, shape index: {0}]
  %s17 = inlined_call_operand.hbm [shape: f32[16,32], index: 17, kind: output, shape index: {1}]
  %18 = xla_tuple %s16, %s17
  %s19 = sld [smem:[#allocation0]]
  $region137: #{tpu_custom_call.1} parent=0
    _
  %s21 = ssub.s32 1, %s19
  %s22 = scalar_select 0, %s21, %s19
  $region1: #{tpu_custom_call.1} parent=0
    #allocation2 [shape = 'u8[8192]{0}', space=vmem, size = 0x2000, scoped, tag = 'input window, operand 0']
    #allocation3 [shape = 's32[2]{0}', space=sflag, size = 0x8, scoped, tag = 'scoped memory for tpu_custom_call.1']
    #allocation4 [shape = 's32[2]{0}', space=sflag, size = 0x8, scoped, tag = 'scoped memory for tpu_custom_call.1']
    #allocation5 [shape = 'u8[8192]{0}', space=vmem, size = 0x2000, scoped, tag = 'input window, operand 1, single buffered']
    #allocation6 [shape = 's32[1]{0}', space=sflag, size = 0x4, scoped, tag = 'scoped memory for tpu_custom_call.1']
    #allocation7 [shape = 'u8[32768]{0}', space=vmem, size = 0x8000, scoped, tag = 'input window, operand 2']
    #allocation8 [shape = 'u8[16384]{0}', space=vmem, size = 0x4000, scoped, tag = 'input window, operand 5, single buffered']
    #allocation9 [shape = 'u8[16384]{0}', space=vmem, size = 0x4000, scoped, tag = 'input window, operand 7, single buffered']
    #allocation10 [shape = 's32[1]{0}', space=sflag, size = 0x4, scoped, tag = 'scoped memory for tpu_custom_call.1']
    #allocation11 [shape = 'u8[16384]{0}', space=vmem, size = 0x4000, scoped, tag = 'input window, operand 9, single buffered']
    #allocation12 [shape = 'u8[16384]{0}', space=vmem, size = 0x4000, scoped, tag = 'input window, operand 11, single buffered']
    #allocation13 [shape = 's32[1]{0}', space=sflag, size = 0x4, scoped, tag = 'scoped memory for tpu_custom_call.1']
    #allocation14 [shape = 'u8[16384]{0}', space=vmem, size = 0x4000, scoped, tag = 'input window, operand 13, single buffered']
    #allocation15 [shape = 'u8[8192]{0}', space=vmem, size = 0x2000, scoped, tag = 'output window, operand 0']
    #allocation16 [shape = 'u8[8192]{0}', space=vmem, size = 0x2000, scoped, tag = 'output window, operand 1']
    #allocation17 [shape = 's32[2]{0}', space=sflag, size = 0x8, scoped, tag = 'scoped memory for tpu_custom_call.1']
    %23 = vsyncpa [#allocation3], 0
    %s24 = scalar_lea.sflag [#allocation3], 1
    %25 = vsyncpa %s24, 0
    %26 = vsyncpa [#allocation6], 0
    %27 = vsyncpa [#allocation10], 0
    %28 = vsyncpa [#allocation13], 0
    %29 = vsyncpa [#allocation4], 0
    %s30 = scalar_lea.sflag [#allocation4], 1
    %31 = vsyncpa %s30, 0
    %32 = vsyncpa [#allocation17], 0
    %s33 = scalar_lea.sflag [#allocation17], 1
    %34 = vsyncpa %s33, 0
    loop: start=0, step=1, limit=4
    $region2: #{tpu_custom_call.1} parent=1 // loop_pre_header
      _
    $region3: #{tpu_custom_call.1} parent=1 // loop_header
      %s36 = sphi 0, %s40
      %p37 = scmp.ge.s32.totalorder %s36, 4
      %s46 = sphi 0, %s48
      %s49 = sphi 0, %s46
      %s50 = sphi 0, %s49
      %s66 = sphi 0, %s50
      %s70 = sphi 0, %s70
      %s72 = sphi 0, %s70
      %s73 = sphi 0, %s72
      %s87 = sphi 0, %s73
      %s93 = sphi 0, %s95
      %s96 = sphi 0, %s93
      %s97 = sphi 0, %s96
      %s113 = sphi 0, %s97
      %s117 = sphi 0, %s117
      %s119 = sphi 0, %s117
      %s120 = sphi 0, %s119
      %s134 = sphi 0, %s120
      %s138 = sphi 0, %s138
      %s140 = sphi 0, %s138
      %s141 = sphi 0, %s140
      %s155 = sphi 0, %s141
      %s159 = sphi 0, %s159
      %s161 = sphi 0, %s159
      %s162 = sphi 0, %s161
      %s176 = sphi 0, %s162
      %s180 = sphi 0, %s180
      %s182 = sphi 0, %s180
      %s183 = sphi 0, %s182
      %s197 = sphi 0, %s183
      %s201 = sphi 0, %s201
      %s203 = sphi 0, %s201
      %s204 = sphi 0, %s203
      %s218 = sphi 0, %s204
      %s222 = sphi 0, %s222
      %s224 = sphi 0, %s222
      %s225 = sphi 0, %s224
      %s239 = sphi 0, %s225
      %s243 = sphi 0, %s243
      %s245 = sphi 0, %s243
      %s246 = sphi 0, %s245
      %s260 = sphi 0, %s246
      %s264 = sphi 0, %s264
      %s266 = sphi 0, %s264
      %s267 = sphi 0, %s266
      %s281 = sphi 0, %s267
      %s285 = sphi 0, %s285
      %s287 = sphi 0, %s285
      %s288 = sphi 0, %s287
      %s302 = sphi 0, %s288
      %s306 = sphi 0, %s306
      %s308 = sphi 0, %s306
      %s309 = sphi 0, %s308
      %s323 = sphi 0, %s309
      %s327 = sphi 0, %s327
      %s329 = sphi 0, %s327
      %s330 = sphi 0, %s329
      %s344 = sphi 0, %s330
      %s348 = sphi 0, %s348
      %s350 = sphi 0, %s348
      %s351 = sphi 0, %s350
      %s365 = sphi 0, %s351
      %s369 = sphi 0, %s369
      %s371 = sphi 0, %s369
      %s372 = sphi 0, %s371
      %s386 = sphi 0, %s372
      %s392 = sphi 0, %s394
      %s395 = sphi 0, %s392
      %s396 = sphi 0, %s395
      %s412 = sphi 0, %s396
      %s418 = sphi 0, %s420
      %s421 = sphi 0, %s418
      %s422 = sphi 0, %s421
      %s438 = sphi 0, %s422
    $region4: #{tpu_custom_call.1} parent=1 // loop_header_branch
      %39 = sbr.rel (%p37) target = $region8
    $region5: #{tpu_custom_call.1} parent=1 // loop_body
      %s41 = ssub.s32 %s36, 1
      %s42 = ssub.s32 %s36, 2
      %s43 = sadd.s32 %s36, 1
      %s44 = ssub.s32 %s36, %s43
      %p45 = scmp.eq.s32.totalorder %s44, 0
      %s47 = sadd.s32 %s46, 1
      %s48 = scalar_select %p45, %s46, %s47
      %p51 = pneg %p45
      %p52 = scmp.eq.s32.totalorder %s36, 1
      %p53 = por %p51, %p52
      %p54 = scmp.ne.s32.totalorder %s46, %s49
      %p55 = scmp.eq.s32.totalorder %s36, 0
      %p56 = por %p54, %p55
      %p57 = scmp.ne.s32.totalorder %s46, %s49
      %p58 = scmp.eq.s32.totalorder %s41, 1
      %p59 = por %p57, %p58
      %p60 = scmp.ne.s32.totalorder %s49, %s50
      %p61 = scmp.eq.s32.totalorder %s41, 0
      %p62 = por %p60, %p61
      %p63 = scmp.ne.s32.totalorder %s49, %s50
      %p64 = scmp.eq.s32.totalorder %s42, 1
      %p65 = por %p63, %p64
      %p67 = scmp.ne.s32.totalorder %s50, %s66
      %p68 = scmp.eq.s32.totalorder %s42, 0
      %p69 = por %p67, %p68
      %s71 = sadd.s32 %s70, 1
      %p74 = scmp.eq.s32.totalorder %s36, 1
      %p75 = scmp.ne.s32.totalorder %s70, %s72
      %p76 = scmp.eq.s32.totalorder %s36, 0
      %p77 = por %p75, %p76
      %p78 = scmp.ne.s32.totalorder %s70, %s72
      %p79 = scmp.eq.s32.totalorder %s41, 1
      %p80 = por %p78, %p79
      %p81 = scmp.ne.s32.totalorder %s72, %s73
      %p82 = scmp.eq.s32.totalorder %s41, 0
      %p83 = por %p81, %p82
      %p84 = scmp.ne.s32.totalorder %s72, %s73
      %p85 = scmp.eq.s32.totalorder %s42, 1
      %p86 = por %p84, %p85
      %p88 = scmp.ne.s32.totalorder %s73, %s87
      %p89 = scmp.eq.s32.totalorder %s42, 0
      %p90 = por %p88, %p89
      %s91 = ssub.s32 %s36, %s43
      %p92 = scmp.eq.s32.totalorder %s91, 0
      %s94 = sadd.s32 %s93, 1
      %s95 = scalar_select %p92, %s93, %s94
      %p98 = pneg %p92
      %p99 = scmp.eq.s32.totalorder %s36, 1
      %p100 = por %p98, %p99
      %p101 = scmp.ne.s32.totalorder %s93, %s96
      %p102 = scmp.eq.s32.totalorder %s36, 0
      %p103 = por %p101, %p102
      %p104 = scmp.ne.s32.totalorder %s93, %s96
      %p105 = scmp.eq.s32.totalorder %s41, 1
      %p106 = por %p104, %p105
      %p107 = scmp.ne.s32.totalorder %s96, %s97
      %p108 = scmp.eq.s32.totalorder %s41, 0
      %p109 = por %p107, %p108
      %p110 = scmp.ne.s32.totalorder %s96, %s97
      %p111 = scmp.eq.s32.totalorder %s42, 1
      %p112 = por %p110, %p111
      %p114 = scmp.ne.s32.totalorder %s97, %s113
      %p115 = scmp.eq.s32.totalorder %s42, 0
      %p116 = por %p114, %p115
      %s118 = sadd.s32 %s117, 1
      %p121 = scmp.eq.s32.totalorder %s36, 1
      %p122 = scmp.ne.s32.totalorder %s117, %s119
      %p123 = scmp.eq.s32.totalorder %s36, 0
      %p124 = por %p122, %p123
      %p125 = scmp.ne.s32.totalorder %s117, %s119
      %p126 = scmp.eq.s32.totalorder %s41, 1
      %p127 = por %p125, %p126
      %p128 = scmp.ne.s32.totalorder %s119, %s120
      %p129 = scmp.eq.s32.totalorder %s41, 0
      %p130 = por %p128, %p129
      %p131 = scmp.ne.s32.totalorder %s119, %s120
      %p132 = scmp.eq.s32.totalorder %s42, 1
      %p133 = por %p131, %p132
      %p135 = scmp.ne.s32.totalorder %s120, %s134
      %p136 = scmp.eq.s32.totalorder %s42, 0
      %p137 = por %p135, %p136
      %s139 = sadd.s32 %s138, 1
      %p142 = scmp.eq.s32.totalorder %s36, 1
      %p143 = scmp.ne.s32.totalorder %s138, %s140
      %p144 = scmp.eq.s32.totalorder %s36, 0
      %p145 = por %p143, %p144
      %p146 = scmp.ne.s32.totalorder %s138, %s140
      %p147 = scmp.eq.s32.totalorder %s41, 1
      %p148 = por %p146, %p147
      %p149 = scmp.ne.s32.totalorder %s140, %s141
      %p150 = scmp.eq.s32.totalorder %s41, 0
      %p151 = por %p149, %p150
      %p152 = scmp.ne.s32.totalorder %s140, %s141
      %p153 = scmp.eq.s32.totalorder %s42, 1
      %p154 = por %p152, %p153
      %p156 = scmp.ne.s32.totalorder %s141, %s155
      %p157 = scmp.eq.s32.totalorder %s42, 0
      %p158 = por %p156, %p157
      %s160 = sadd.s32 %s159, 1
      %p163 = scmp.eq.s32.totalorder %s36, 1
      %p164 = scmp.ne.s32.totalorder %s159, %s161
      %p165 = scmp.eq.s32.totalorder %s36, 0
      %p166 = por %p164, %p165
      %p167 = scmp.ne.s32.totalorder %s159, %s161
      %p168 = scmp.eq.s32.totalorder %s41, 1
      %p169 = por %p167, %p168
      %p170 = scmp.ne.s32.totalorder %s161, %s162
      %p171 = scmp.eq.s32.totalorder %s41, 0
      %p172 = por %p170, %p171
      %p173 = scmp.ne.s32.totalorder %s161, %s162
      %p174 = scmp.eq.s32.totalorder %s42, 1
      %p175 = por %p173, %p174
      %p177 = scmp.ne.s32.totalorder %s162, %s176
      %p178 = scmp.eq.s32.totalorder %s42, 0
      %p179 = por %p177, %p178
      %s181 = sadd.s32 %s180, 1
      %p184 = scmp.eq.s32.totalorder %s36, 1
      %p185 = scmp.ne.s32.totalorder %s180, %s182
      %p186 = scmp.eq.s32.totalorder %s36, 0
      %p187 = por %p185, %p186
      %p188 = scmp.ne.s32.totalorder %s180, %s182
      %p189 = scmp.eq.s32.totalorder %s41, 1
      %p190 = por %p188, %p189
      %p191 = scmp.ne.s32.totalorder %s182, %s183
      %p192 = scmp.eq.s32.totalorder %s41, 0
      %p193 = por %p191, %p192
      %p194 = scmp.ne.s32.totalorder %s182, %s183
      %p195 = scmp.eq.s32.totalorder %s42, 1
      %p196 = por %p194, %p195
      %p198 = scmp.ne.s32.totalorder %s183, %s197
      %p199 = scmp.eq.s32.totalorder %s42, 0
      %p200 = por %p198, %p199
      %s202 = sadd.s32 %s201, 1
      %p205 = scmp.eq.s32.totalorder %s36, 1
      %p206 = scmp.ne.s32.totalorder %s201, %s203
      %p207 = scmp.eq.s32.totalorder %s36, 0
      %p208 = por %p206, %p207
      %p209 = scmp.ne.s32.totalorder %s201, %s203
      %p210 = scmp.eq.s32.totalorder %s41, 1
      %p211 = por %p209, %p210
      %p212 = scmp.ne.s32.totalorder %s203, %s204
      %p213 = scmp.eq.s32.totalorder %s41, 0
      %p214 = por %p212, %p213
      %p215 = scmp.ne.s32.totalorder %s203, %s204
      %p216 = scmp.eq.s32.totalorder %s42, 1
      %p217 = por %p215, %p216
      %p219 = scmp.ne.s32.totalorder %s204, %s218
      %p220 = scmp.eq.s32.totalorder %s42, 0
      %p221 = por %p219, %p220
      %s223 = sadd.s32 %s222, 1
      %p226 = scmp.eq.s32.totalorder %s36, 1
      %p227 = scmp.ne.s32.totalorder %s222, %s224
      %p228 = scmp.eq.s32.totalorder %s36, 0
      %p229 = por %p227, %p228
      %p230 = scmp.ne.s32.totalorder %s222, %s224
      %p231 = scmp.eq.s32.totalorder %s41, 1
      %p232 = por %p230, %p231
      %p233 = scmp.ne.s32.totalorder %s224, %s225
      %p234 = scmp.eq.s32.totalorder %s41, 0
      %p235 = por %p233, %p234
      %p236 = scmp.ne.s32.totalorder %s224, %s225
      %p237 = scmp.eq.s32.totalorder %s42, 1
      %p238 = por %p236, %p237
      %p240 = scmp.ne.s32.totalorder %s225, %s239
      %p241 = scmp.eq.s32.totalorder %s42, 0
      %p242 = por %p240, %p241
      %s244 = sadd.s32 %s243, 1
      %p247 = scmp.eq.s32.totalorder %s36, 1
      %p248 = scmp.ne.s32.totalorder %s243, %s245
      %p249 = scmp.eq.s32.totalorder %s36, 0
      %p250 = por %p248, %p249
      %p251 = scmp.ne.s32.totalorder %s243, %s245
      %p252 = scmp.eq.s32.totalorder %s41, 1
      %p253 = por %p251, %p252
      %p254 = scmp.ne.s32.totalorder %s245, %s246
      %p255 = scmp.eq.s32.totalorder %s41, 0
      %p256 = por %p254, %p255
      %p257 = scmp.ne.s32.totalorder %s245, %s246
      %p258 = scmp.eq.s32.totalorder %s42, 1
      %p259 = por %p257, %p258
      %p261 = scmp.ne.s32.totalorder %s246, %s260
      %p262 = scmp.eq.s32.totalorder %s42, 0
      %p263 = por %p261, %p262
      %s265 = sadd.s32 %s264, 1
      %p268 = scmp.eq.s32.totalorder %s36, 1
      %p269 = scmp.ne.s32.totalorder %s264, %s266
      %p270 = scmp.eq.s32.totalorder %s36, 0
      %p271 = por %p269, %p270
      %p272 = scmp.ne.s32.totalorder %s264, %s266
      %p273 = scmp.eq.s32.totalorder %s41, 1
      %p274 = por %p272, %p273
      %p275 = scmp.ne.s32.totalorder %s266, %s267
      %p276 = scmp.eq.s32.totalorder %s41, 0
      %p277 = por %p275, %p276
      %p278 = scmp.ne.s32.totalorder %s266, %s267
      %p279 = scmp.eq.s32.totalorder %s42, 1
      %p280 = por %p278, %p279
      %p282 = scmp.ne.s32.totalorder %s267, %s281
      %p283 = scmp.eq.s32.totalorder %s42, 0
      %p284 = por %p282, %p283
      %s286 = sadd.s32 %s285, 1
      %p289 = scmp.eq.s32.totalorder %s36, 1
      %p290 = scmp.ne.s32.totalorder %s285, %s287
      %p291 = scmp.eq.s32.totalorder %s36, 0
      %p292 = por %p290, %p291
      %p293 = scmp.ne.s32.totalorder %s285, %s287
      %p294 = scmp.eq.s32.totalorder %s41, 1
      %p295 = por %p293, %p294
      %p296 = scmp.ne.s32.totalorder %s287, %s288
      %p297 = scmp.eq.s32.totalorder %s41, 0
      %p298 = por %p296, %p297
      %p299 = scmp.ne.s32.totalorder %s287, %s288
      %p300 = scmp.eq.s32.totalorder %s42, 1
      %p301 = por %p299, %p300
      %p303 = scmp.ne.s32.totalorder %s288, %s302
      %p304 = scmp.eq.s32.totalorder %s42, 0
      %p305 = por %p303, %p304
      %s307 = sadd.s32 %s306, 1
      %p310 = scmp.eq.s32.totalorder %s36, 1
      %p311 = scmp.ne.s32.totalorder %s306, %s308
      %p312 = scmp.eq.s32.totalorder %s36, 0
      %p313 = por %p311, %p312
      %p314 = scmp.ne.s32.totalorder %s306, %s308
      %p315 = scmp.eq.s32.totalorder %s41, 1
      %p316 = por %p314, %p315
      %p317 = scmp.ne.s32.totalorder %s308, %s309
      %p318 = scmp.eq.s32.totalorder %s41, 0
      %p319 = por %p317, %p318
      %p320 = scmp.ne.s32.totalorder %s308, %s309
      %p321 = scmp.eq.s32.totalorder %s42, 1
      %p322 = por %p320, %p321
      %p324 = scmp.ne.s32.totalorder %s309, %s323
      %p325 = scmp.eq.s32.totalorder %s42, 0
      %p326 = por %p324, %p325
      %s328 = sadd.s32 %s327, 1
      %p331 = scmp.eq.s32.totalorder %s36, 1
      %p332 = scmp.ne.s32.totalorder %s327, %s329
      %p333 = scmp.eq.s32.totalorder %s36, 0
      %p334 = por %p332, %p333
      %p335 = scmp.ne.s32.totalorder %s327, %s329
      %p336 = scmp.eq.s32.totalorder %s41, 1
      %p337 = por %p335, %p336
      %p338 = scmp.ne.s32.totalorder %s329, %s330
      %p339 = scmp.eq.s32.totalorder %s41, 0
      %p340 = por %p338, %p339
      %p341 = scmp.ne.s32.totalorder %s329, %s330
      %p342 = scmp.eq.s32.totalorder %s42, 1
      %p343 = por %p341, %p342
      %p345 = scmp.ne.s32.totalorder %s330, %s344
      %p346 = scmp.eq.s32.totalorder %s42, 0
      %p347 = por %p345, %p346
      %s349 = sadd.s32 %s348, 1
      %p352 = scmp.eq.s32.totalorder %s36, 1
      %p353 = scmp.ne.s32.totalorder %s348, %s350
      %p354 = scmp.eq.s32.totalorder %s36, 0
      %p355 = por %p353, %p354
      %p356 = scmp.ne.s32.totalorder %s348, %s350
      %p357 = scmp.eq.s32.totalorder %s41, 1
      %p358 = por %p356, %p357
      %p359 = scmp.ne.s32.totalorder %s350, %s351
      %p360 = scmp.eq.s32.totalorder %s41, 0
      %p361 = por %p359, %p360
      %p362 = scmp.ne.s32.totalorder %s350, %s351
      %p363 = scmp.eq.s32.totalorder %s42, 1
      %p364 = por %p362, %p363
      %p366 = scmp.ne.s32.totalorder %s351, %s365
      %p367 = scmp.eq.s32.totalorder %s42, 0
      %p368 = por %p366, %p367
      %s370 = sadd.s32 %s369, 1
      %p373 = scmp.eq.s32.totalorder %s36, 1
      %p374 = scmp.ne.s32.totalorder %s369, %s371
      %p375 = scmp.eq.s32.totalorder %s36, 0
      %p376 = por %p374, %p375
      %p377 = scmp.ne.s32.totalorder %s369, %s371
      %p378 = scmp.eq.s32.totalorder %s41, 1
      %p379 = por %p377, %p378
      %p380 = scmp.ne.s32.totalorder %s371, %s372
      %p381 = scmp.eq.s32.totalorder %s41, 0
      %p382 = por %p380, %p381
      %p383 = scmp.ne.s32.totalorder %s371, %s372
      %p384 = scmp.eq.s32.totalorder %s42, 1
      %p385 = por %p383, %p384
      %p387 = scmp.ne.s32.totalorder %s372, %s386
      %p388 = scmp.eq.s32.totalorder %s42, 0
      %p389 = por %p387, %p388
      %s390 = ssub.s32 %s36, %s43
      %p391 = scmp.eq.s32.totalorder %s390, 0
      %s393 = sadd.s32 %s392, 1
      %s394 = scalar_select %p391, %s392, %s393
      %p397 = pneg %p391
      %p398 = scmp.eq.s32.totalorder %s36, 1
      %p399 = por %p397, %p398
      %p400 = scmp.ne.s32.totalorder %s392, %s395
      %p401 = scmp.eq.s32.totalorder %s36, 0
      %p402 = por %p400, %p401
      %p403 = scmp.ne.s32.totalorder %s392, %s395
      %p404 = scmp.eq.s32.totalorder %s41, 1
      %p405 = por %p403, %p404
      %p406 = scmp.ne.s32.totalorder %s395, %s396
      %p407 = scmp.eq.s32.totalorder %s41, 0
      %p408 = por %p406, %p407
      %p409 = scmp.ne.s32.totalorder %s395, %s396
      %p410 = scmp.eq.s32.totalorder %s42, 1
      %p411 = por %p409, %p410
      %p413 = scmp.ne.s32.totalorder %s396, %s412
      %p414 = scmp.eq.s32.totalorder %s42, 0
      %p415 = por %p413, %p414
      %s416 = ssub.s32 %s36, %s43
      %p417 = scmp.eq.s32.totalorder %s416, 0
      %s419 = sadd.s32 %s418, 1
      %s420 = scalar_select %p417, %s418, %s419
      %p423 = pneg %p417
      %p424 = scmp.eq.s32.totalorder %s36, 1
      %p425 = por %p423, %p424
      %p426 = scmp.ne.s32.totalorder %s418, %s421
      %p427 = scmp.eq.s32.totalorder %s36, 0
      %p428 = por %p426, %p427
      %p429 = scmp.ne.s32.totalorder %s418, %s421
      %p430 = scmp.eq.s32.totalorder %s41, 1
      %p431 = por %p429, %p430
      %p432 = scmp.ne.s32.totalorder %s421, %s422
      %p433 = scmp.eq.s32.totalorder %s41, 0
      %p434 = por %p432, %p433
      %p435 = scmp.ne.s32.totalorder %s421, %s422
      %p436 = scmp.eq.s32.totalorder %s42, 1
      %p437 = por %p435, %p436
      %p439 = scmp.ne.s32.totalorder %s422, %s438
      %p440 = scmp.eq.s32.totalorder %s42, 0
      %p441 = por %p439, %p440
      %p442 = scmp.le.s32.totalorder 1, %s36
      %p443 = scmp.lt.s32.totalorder %s36, 3
      %p444 = pnand %p442, %p443
      %p445 = pneg %p444
      // Predicated region
      $region9: #{tpu_custom_call.1} parent=5 // pred_check
        _
      $region10: #{tpu_custom_call.1} parent=5 // pred_check_branch
        %447 = sbr.rel (%p444) target = $region12
      $region11: #{tpu_custom_call.1} parent=5 // pred_region
        %s448 = ssub.s32 %s36, 1
        // Predicated region
        $region13: #{tpu_custom_call.1} parent=11 // pred_check
          %p449 = pneg %p83
        $region14: #{tpu_custom_call.1} parent=11 // pred_check_branch
          %451 = sbr.rel (%p449) target = $region16
        $region15: #{tpu_custom_call.1} parent=11 // pred_region
          %453 = vsyncadd [#allocation6], 0
          %s454 = sshll.u32 %s1, 4
          %s455 = int_to_ptr.hbm [resolvable:$true] %s454
          %s456 = sshll.u32 [#allocation5], 4
          %s457 = int_to_ptr.vmem [resolvable:$true] %s456
          %462 = dma.hbm_to_vmem [thread:$0]  %s455, 256, %s457, [#allocation6], 128, 128, 8
        $region16: #{tpu_custom_call.1} parent=11 // pred_fallthru
          _
        // Predicated region
        $region17: #{tpu_custom_call.1} parent=11 // pred_check
          %p463 = pneg %p130
        $region18: #{tpu_custom_call.1} parent=11 // pred_check_branch
          %465 = sbr.rel (%p463) target = $region20
        $region19: #{tpu_custom_call.1} parent=11 // pred_region
          _
        $region20: #{tpu_custom_call.1} parent=11 // pred_fallthru
          _
        // Predicated region
        $region21: #{tpu_custom_call.1} parent=11 // pred_check
          %p466 = pneg %p151
        $region22: #{tpu_custom_call.1} parent=11 // pred_check_branch
          %468 = sbr.rel (%p466) target = $region24
        $region23: #{tpu_custom_call.1} parent=11 // pred_region
          _
        $region24: #{tpu_custom_call.1} parent=11 // pred_fallthru
          _
        // Predicated region
        $region25: #{tpu_custom_call.1} parent=11 // pred_check
          %p469 = pneg %p172
        $region26: #{tpu_custom_call.1} parent=11 // pred_check_branch
          %471 = sbr.rel (%p469) target = $region28
        $region27: #{tpu_custom_call.1} parent=11 // pred_region
          %473 = vsyncadd [#allocation6], 0
          %s474 = sshll.u32 %s5, 4
          %s475 = int_to_ptr.hbm [resolvable:$true] %s474
          %s476 = sshll.u32 [#allocation8], 4
          %s477 = int_to_ptr.vmem [resolvable:$true] %s476
          %482 = dma.hbm_to_vmem [thread:$0]  %s475, 512, %s477, [#allocation6], 128, 128, 8
        $region28: #{tpu_custom_call.1} parent=11 // pred_fallthru
          _
        // Predicated region
        $region29: #{tpu_custom_call.1} parent=11 // pred_check
          %p483 = pneg %p193
        $region30: #{tpu_custom_call.1} parent=11 // pred_check_branch
          %485 = sbr.rel (%p483) target = $region32
        $region31: #{tpu_custom_call.1} parent=11 // pred_region
          _
        $region32: #{tpu_custom_call.1} parent=11 // pred_fallthru
          _
        // Predicated region
        $region33: #{tpu_custom_call.1} parent=11 // pred_check
          %p486 = pneg %p214
        $region34: #{tpu_custom_call.1} parent=11 // pred_check_branch
          %488 = sbr.rel (%p486) target = $region36
        $region35: #{tpu_custom_call.1} parent=11 // pred_region
          %490 = vsyncadd [#allocation10], 0
          %s491 = sshll.u32 %s7, 4
          %s492 = int_to_ptr.hbm [resolvable:$true] %s491
          %s493 = sshll.u32 [#allocation9], 4
          %s494 = int_to_ptr.vmem [resolvable:$true] %s493
          %499 = dma.hbm_to_vmem [thread:$0]  %s492, 512, %s494, [#allocation10], 128, 128, 8
        $region36: #{tpu_custom_call.1} parent=11 // pred_fallthru
          _
        // Predicated region
        $region37: #{tpu_custom_call.1} parent=11 // pred_check
          %p500 = pneg %p235
        $region38: #{tpu_custom_call.1} parent=11 // pred_check_branch
          %502 = sbr.rel (%p500) target = $region40
        $region39: #{tpu_custom_call.1} parent=11 // pred_region
          _
        $region40: #{tpu_custom_call.1} parent=11 // pred_fallthru
          _
        // Predicated region
        $region41: #{tpu_custom_call.1} parent=11 // pred_check
          %p503 = pneg %p256
        $region42: #{tpu_custom_call.1} parent=11 // pred_check_branch
          %505 = sbr.rel (%p503) target = $region44
        $region43: #{tpu_custom_call.1} parent=11 // pred_region
          %507 = vsyncadd [#allocation10], 0
          %s508 = sshll.u32 %s9, 4
          %s509 = int_to_ptr.hbm [resolvable:$true] %s508
          %s510 = sshll.u32 [#allocation11], 4
          %s511 = int_to_ptr.vmem [resolvable:$true] %s510
          %516 = dma.hbm_to_vmem [thread:$0]  %s509, 512, %s511, [#allocation10], 128, 128, 8
        $region44: #{tpu_custom_call.1} parent=11 // pred_fallthru
          _
        // Predicated region
        $region45: #{tpu_custom_call.1} parent=11 // pred_check
          %p517 = pneg %p277
        $region46: #{tpu_custom_call.1} parent=11 // pred_check_branch
          %519 = sbr.rel (%p517) target = $region48
        $region47: #{tpu_custom_call.1} parent=11 // pred_region
          _
        $region48: #{tpu_custom_call.1} parent=11 // pred_fallthru
          _
        // Predicated region
        $region49: #{tpu_custom_call.1} parent=11 // pred_check
          %p520 = pneg %p298
        $region50: #{tpu_custom_call.1} parent=11 // pred_check_branch
          %522 = sbr.rel (%p520) target = $region52
        $region51: #{tpu_custom_call.1} parent=11 // pred_region
          %524 = vsyncadd [#allocation13], 0
          %s525 = sshll.u32 %s11, 4
          %s526 = int_to_ptr.hbm [resolvable:$true] %s525
          %s527 = sshll.u32 [#allocation12], 4
          %s528 = int_to_ptr.vmem [resolvable:$true] %s527
          %533 = dma.hbm_to_vmem [thread:$0]  %s526, 512, %s528, [#allocation13], 128, 128, 8
        $region52: #{tpu_custom_call.1} parent=11 // pred_fallthru
          _
        // Predicated region
        $region53: #{tpu_custom_call.1} parent=11 // pred_check
          %p534 = pneg %p319
        $region54: #{tpu_custom_call.1} parent=11 // pred_check_branch
          %536 = sbr.rel (%p534) target = $region56
        $region55: #{tpu_custom_call.1} parent=11 // pred_region
          _
        $region56: #{tpu_custom_call.1} parent=11 // pred_fallthru
          _
        // Predicated region
        $region57: #{tpu_custom_call.1} parent=11 // pred_check
          %p537 = pneg %p340
        $region58: #{tpu_custom_call.1} parent=11 // pred_check_branch
          %539 = sbr.rel (%p537) target = $region60
        $region59: #{tpu_custom_call.1} parent=11 // pred_region
          %541 = vsyncadd [#allocation13], 0
          %s542 = sshll.u32 %s13, 4
          %s543 = int_to_ptr.hbm [resolvable:$true] %s542
          %s544 = sshll.u32 [#allocation14], 4
          %s545 = int_to_ptr.vmem [resolvable:$true] %s544
          %550 = dma.hbm_to_vmem [thread:$0]  %s543, 512, %s545, [#allocation13], 128, 128, 8
        $region60: #{tpu_custom_call.1} parent=11 // pred_fallthru
          _
        // Predicated region
        $region61: #{tpu_custom_call.1} parent=11 // pred_check
          %p551 = pneg %p361
        $region62: #{tpu_custom_call.1} parent=11 // pred_check_branch
          %553 = sbr.rel (%p551) target = $region64
        $region63: #{tpu_custom_call.1} parent=11 // pred_region
          _
        $region64: #{tpu_custom_call.1} parent=11 // pred_fallthru
          _
        // Predicated region
        $region65: #{tpu_custom_call.1} parent=11 // pred_check
          %p554 = pneg %p382
        $region66: #{tpu_custom_call.1} parent=11 // pred_check_branch
          %556 = sbr.rel (%p554) target = $region68
        $region67: #{tpu_custom_call.1} parent=11 // pred_region
          _
        $region68: #{tpu_custom_call.1} parent=11 // pred_fallthru
          _
      $region12: #{tpu_custom_call.1} parent=5 // pred_fallthru
        _
      %p557 = scmp.lt.s32.totalorder %s36, 2
      // Predicated region
      $region69: #{tpu_custom_call.1} parent=5 // pred_check
        %p558 = pneg %p557
      $region70: #{tpu_custom_call.1} parent=5 // pred_check_branch
        %560 = sbr.rel (%p558) target = $region72
      $region71: #{tpu_custom_call.1} parent=5 // pred_region
        // Predicated region
        $region73: #{tpu_custom_call.1} parent=71 // pred_check
          %p561 = pneg %p56
        $region74: #{tpu_custom_call.1} parent=71 // pred_check_branch
          %563 = sbr.rel (%p561) target = $region76
        $region75: #{tpu_custom_call.1} parent=71 // pred_region
          %s564 = sand.u32 %s36, 1
          %s565 = scalar_lea.sflag [#allocation3], %s564
          %s566 = sand.u32 %s46, 1
          %s567 = smul.addr %s566, 8
          %s568 = scalar_lea.vmem [#allocation2], %s567
          %570 = vsyncadd %s565, 0
          %s571 = smul.addr %s36, 8
          %s572 = scalar_lea.hbm %s0, %s571
          %s574 = sshll.u32 %s572, 4
          %s575 = int_to_ptr.hbm [resolvable:$true] %s574
          %s576 = sshll.u32 %s568, 4
          %s577 = int_to_ptr.vmem [resolvable:$true] %s576
          %579 = dma.hbm_to_vmem [thread:$0]  %s575, 128, %s577, %s565
        $region76: #{tpu_custom_call.1} parent=71 // pred_fallthru
          _
        // Predicated region
        $region77: #{tpu_custom_call.1} parent=71 // pred_check
          %p580 = pneg %p103
        $region78: #{tpu_custom_call.1} parent=71 // pred_check_branch
          %582 = sbr.rel (%p580) target = $region80
        $region79: #{tpu_custom_call.1} parent=71 // pred_region
          %s583 = sand.u32 %s36, 1
          %s584 = scalar_lea.sflag [#allocation3], %s583
          %s585 = sand.u32 %s93, 1
          %s586 = smul.addr %s585, 32
          %s587 = scalar_lea.vmem [#allocation7], %s586
          %s588 = smul.u32 8, %s36
          %590 = vsyncadd %s584, 0
          %s591 = smul.addr %s588, 4
          %s592 = scalar_lea.hbm %s2, %s591
          %s593 = sshll.u32 %s592, 4
          %s594 = int_to_ptr.hbm [resolvable:$true] %s593
          %s595 = sshll.u32 %s587, 4
          %s596 = int_to_ptr.vmem [resolvable:$true] %s595
          %601 = dma.hbm_to_vmem [thread:$0]  %s594, 512, %s596, %s584, 64, 64, 4
        $region80: #{tpu_custom_call.1} parent=71 // pred_fallthru
          _
      $region72: #{tpu_custom_call.1} parent=5 // pred_fallthru
        _
      %p602 = scmp.le.s32.totalorder 1, %s36
      %p603 = scmp.lt.s32.totalorder %s36, 3
      %p604 = pnand %p602, %p603
      %p605 = pneg %p604
      // Predicated region
      $region81: #{tpu_custom_call.1} parent=5 // pred_check
        _
      $region82: #{tpu_custom_call.1} parent=5 // pred_check_branch
        %607 = sbr.rel (%p604) target = $region84
      $region83: #{tpu_custom_call.1} parent=5 // pred_region
        %s608 = ssub.s32 %s36, 1
        %s609 = sand.u32 %s41, 1
        %s610 = scalar_lea.sflag [#allocation3], %s609
        %s611 = sand.u32 %s49, 1
        %s612 = smul.addr %s611, 8
        %s613 = scalar_lea.vmem [#allocation2], %s612
        // Predicated region
        $region85: #{tpu_custom_call.1} parent=83 // pred_check
          %p614 = pneg %p62
        $region86: #{tpu_custom_call.1} parent=83 // pred_check_branch
          %616 = sbr.rel (%p614) target = $region88
        $region87: #{tpu_custom_call.1} parent=83 // pred_region
          %618 = dma.done %s610, 128
        $region88: #{tpu_custom_call.1} parent=83 // pred_fallthru
          _
        // Predicated region
        $region89: #{tpu_custom_call.1} parent=83 // pred_check
          %p619 = pneg %p83
        $region90: #{tpu_custom_call.1} parent=83 // pred_check_branch
          %621 = sbr.rel (%p619) target = $region92
        $region91: #{tpu_custom_call.1} parent=83 // pred_region
          %623 = dma.done [#allocation6], 256
        $region92: #{tpu_custom_call.1} parent=83 // pred_fallthru
          _
        %s624 = sand.u32 %s41, 1
        %s625 = scalar_lea.sflag [#allocation3], %s624
        %s626 = sand.u32 %s96, 1
        %s627 = smul.addr %s626, 32
        %s628 = scalar_lea.vmem [#allocation7], %s627
        // Predicated region
        $region93: #{tpu_custom_call.1} parent=83 // pred_check
          %p629 = pneg %p109
        $region94: #{tpu_custom_call.1} parent=83 // pred_check_branch
          %631 = sbr.rel (%p629) target = $region96
        $region95: #{tpu_custom_call.1} parent=83 // pred_region
          %633 = dma.done %s625, 512
        $region96: #{tpu_custom_call.1} parent=83 // pred_fallthru
          _
        // Predicated region
        $region97: #{tpu_custom_call.1} parent=83 // pred_check
          %p634 = pneg %p172
        $region98: #{tpu_custom_call.1} parent=83 // pred_check_branch
          %636 = sbr.rel (%p634) target = $region100
        $region99: #{tpu_custom_call.1} parent=83 // pred_region
          %638 = dma.done [#allocation6], 512
        $region100: #{tpu_custom_call.1} parent=83 // pred_fallthru
          _
        // Predicated region
        $region101: #{tpu_custom_call.1} parent=83 // pred_check
          %p639 = pneg %p214
        $region102: #{tpu_custom_call.1} parent=83 // pred_check_branch
          %641 = sbr.rel (%p639) target = $region104
        $region103: #{tpu_custom_call.1} parent=83 // pred_region
          %643 = dma.done [#allocation10], 512
        $region104: #{tpu_custom_call.1} parent=83 // pred_fallthru
          _
        // Predicated region
        $region105: #{tpu_custom_call.1} parent=83 // pred_check
          %p644 = pneg %p256
        $region106: #{tpu_custom_call.1} parent=83 // pred_check_branch
          %646 = sbr.rel (%p644) target = $region108
        $region107: #{tpu_custom_call.1} parent=83 // pred_region
          %648 = dma.done [#allocation10], 512
        $region108: #{tpu_custom_call.1} parent=83 // pred_fallthru
          _
        // Predicated region
        $region109: #{tpu_custom_call.1} parent=83 // pred_check
          %p649 = pneg %p298
        $region110: #{tpu_custom_call.1} parent=83 // pred_check_branch
          %651 = sbr.rel (%p649) target = $region112
        $region111: #{tpu_custom_call.1} parent=83 // pred_region
          %653 = dma.done [#allocation13], 512
        $region112: #{tpu_custom_call.1} parent=83 // pred_fallthru
          _
        // Predicated region
        $region113: #{tpu_custom_call.1} parent=83 // pred_check
          %p654 = pneg %p340
        $region114: #{tpu_custom_call.1} parent=83 // pred_check_branch
          %656 = sbr.rel (%p654) target = $region116
        $region115: #{tpu_custom_call.1} parent=83 // pred_region
          %658 = dma.done [#allocation13], 512
        $region116: #{tpu_custom_call.1} parent=83 // pred_fallthru
          _
        %s659 = sand.u32 %s41, 1
        %s660 = scalar_lea.sflag [#allocation3], %s659
        %s661 = sand.u32 %s49, 1
        %s662 = smul.addr %s661, 8
        %s663 = scalar_lea.vmem [#allocation2], %s662
        %p664 = pneg %p62
        %p665 = pneg %p59
        %p666 = pneg %p83
        %p667 = pneg %p80
        %s668 = sand.u32 %s41, 1
        %s669 = scalar_lea.sflag [#allocation3], %s668
        %s670 = sand.u32 %s96, 1
        %s671 = smul.addr %s670, 32
        %s672 = scalar_lea.vmem [#allocation7], %s671
        %p673 = pneg %p109
        %p674 = pneg %p106
        %p675 = pneg %p130
        %p676 = pneg %p127
        %p677 = pneg %p151
        %p678 = pneg %p148
        %p679 = pneg %p172
        %p680 = pneg %p169
        %p681 = pneg %p193
        %p682 = pneg %p190
        %p683 = pneg %p214
        %p684 = pneg %p211
        %p685 = pneg %p235
        %p686 = pneg %p232
        %p687 = pneg %p256
        %p688 = pneg %p253
        %p689 = pneg %p277
        %p690 = pneg %p274
        %p691 = pneg %p298
        %p692 = pneg %p295
        %p693 = pneg %p319
        %p694 = pneg %p316
        %p695 = pneg %p340
        %p696 = pneg %p337
        %p697 = pneg %p361
        %p698 = pneg %p358
        %p699 = pneg %p382
        %p700 = pneg %p379
        %p701 = pneg %p408
        %p702 = pneg %p405
        %s703 = sand.u32 %s395, 1
        %s704 = scalar_lea.sflag [#allocation4], %s703
        %s705 = sand.u32 %s395, 1
        %s706 = smul.addr %s705, 8
        %s707 = scalar_lea.vmem [#allocation15], %s706
        %p708 = pneg %p434
        %p709 = pneg %p431
        %s710 = sand.u32 %s421, 1
        %s711 = scalar_lea.sflag [#allocation17], %s710
        %s712 = sand.u32 %s421, 1
        %s713 = smul.addr %s712, 8
        %s714 = scalar_lea.vmem [#allocation16], %s713
        %s715 = smul.u32 8, %s41
        %v716 = vld [vmem:[#allocation5] sm:$0xff]
        %v717 = vld [vmem:[#allocation5 + $0x8] sm:$0xff]
        %v718 = vld [vmem:[%s15] sm:$0xff]
        %v719 = vld [vmem:[%s15 + $0x8] sm:$0xff]
        %v720 = vld [vmem:[%s15 + $0x10] sm:$0xff]
        %v721 = vld [vmem:[%s15 + $0x18] sm:$0xff]
        %v722 = vld [vmem:[%s613] sm:$0x1]
        %v723 = vld [vmem:[%s628] sm:$0xf]
        %vm724 = vcmask 130048
        %v726 = vsel %vm724, %v723, 0
        %728 = vmatpush.msra.mxu0 0.0
        %729 = vmatpush.msra.mxu0 0.0
        %730 = vmatpush.msra.mxu0 0.0
        %731 = vmatpush.msra.mxu0 0.0
        %732 = vmatpush.msra.mxu0 0.0
        %733 = vmatpush.msra.mxu0 0.0
        %734 = vmatpush.msra.mxu0 0.0
        %735 = vmatpush.msra.mxu0 0.0
        %736 = vmatpush.msra.mxu0 0.0
        %737 = vmatpush.msra.mxu0 0.0
        %738 = vmatpush.msra.mxu0 0.0
        %739 = vmatpush.msra.mxu0 0.0
        %740 = vmatpush.msra.mxu0 0.0
        %741 = vmatpush.msra.mxu0 0.0
        %742 = vmatpush.msra.mxu0 %v717
        %743 = vmatpush.msra.mxu0 %v716
        %744 = vmatmul.f32.gmra.mxu0 %v726
        %v745 = vpop.f32.mrf.mxu0
        %v746 = vadd.f32 0.0, %v745
        %747 = vdwg.mxu0
        %v748 = vld [vmem:[%s3] sm:$0xff]
        %v749 = vld [vmem:[%s3 + $0x8] sm:$0xff]
        %v750 = vld [vmem:[%s3 + $0x10] sm:$0xff]
        %v751 = vld [vmem:[%s3 + $0x18] sm:$0xff]
        %v752 = vld [vmem:[%s4] sm:$0x1]
        %vm753 = vcmask 261120
        %v755 = vsel %vm753, %v722, 0
        %v758 = vsel %vm753, %v748, 0
        %v761 = vsel %vm753, %v749, 0
        %v764 = vsel %vm753, %v750, 0
        %v767 = vsel %vm753, %v751, 0
        %769 = vmatpush.xpose.msra.mxu0 0.0
        %770 = vmatpush.xpose.msra.mxu0 0.0
        %771 = vmatpush.xpose.msra.mxu0 0.0
        %772 = vmatpush.xpose.msra.mxu0 0.0
        %773 = vmatpush.xpose.msra.mxu0 0.0
        %774 = vmatpush.xpose.msra.mxu0 0.0
        %775 = vmatpush.xpose.msra.mxu0 0.0
        %776 = vmatpush.xpose.msra.mxu0 0.0
        %777 = vmatpush.xpose.msra.mxu0 0.0
        %778 = vmatpush.xpose.msra.mxu0 0.0
        %779 = vmatpush.xpose.msra.mxu0 0.0
        %780 = vmatpush.xpose.msra.mxu0 0.0
        %781 = vmatpush.xpose.msra.mxu0 %v767
        %782 = vmatpush.xpose.msra.mxu0 %v764
        %783 = vmatpush.xpose.msra.mxu0 %v761
        %784 = vmatpush.xpose.msra.mxu0 %v758
        %785 = vmatmul.f32.gmra.mxu0 %v755
        %v786 = vpop.f32.mrf.mxu0
        %v787 = vadd.f32 %v752, %v786
        %788 = vdwg.mxu0
        %v789 = vld [vmem:[#allocation8] sm:$0xff]
        %v790 = vld [vmem:[#allocation8 + $0x8] sm:$0xff]
        %v791 = vld [vmem:[#allocation8 + $0x10] sm:$0xff]
        %v792 = vld [vmem:[#allocation8 + $0x18] sm:$0xff]
        %v793 = vld [vmem:[%s6] sm:$0x1]
        %v795 = vperm.slane %v793, 0
        %v798 = vsel %vm753, %v746, 0
        %v801 = vsel %vm753, %v789, 0
        %v804 = vsel %vm753, %v790, 0
        %v807 = vsel %vm753, %v791, 0
        %v810 = vsel %vm753, %v792, 0
        %812 = vmatpush.xpose.msra.mxu0 0.0
        %813 = vmatpush.xpose.msra.mxu0 0.0
        %814 = vmatpush.xpose.msra.mxu0 0.0
        %815 = vmatpush.xpose.msra.mxu0 0.0
        %816 = vmatpush.xpose.msra.mxu0 0.0
        %817 = vmatpush.xpose.msra.mxu0 0.0
        %818 = vmatpush.xpose.msra.mxu0 0.0
        %819 = vmatpush.xpose.msra.mxu0 0.0
        %820 = vmatpush.xpose.msra.mxu0 0.0
        %821 = vmatpush.xpose.msra.mxu0 0.0
        %822 = vmatpush.xpose.msra.mxu0 0.0
        %823 = vmatpush.xpose.msra.mxu0 0.0
        %824 = vmatpush.xpose.msra.mxu0 %v810
        %825 = vmatpush.xpose.msra.mxu0 %v807
        %826 = vmatpush.xpose.msra.mxu0 %v804
        %827 = vmatpush.xpose.msra.mxu0 %v801
        %828 = vmatmul.f32.gmra.mxu0 %v798
        %v829 = vpop.f32.mrf.mxu0
        %v830 = vadd.f32 %v795, %v829
        %831 = vdwg.mxu0
        %v832 = vld [vmem:[#allocation9] sm:$0xff]
        %v833 = vld [vmem:[#allocation9 + $0x8] sm:$0xff]
        %v834 = vld [vmem:[#allocation9 + $0x10] sm:$0xff]
        %v835 = vld [vmem:[#allocation9 + $0x18] sm:$0xff]
        %v836 = vld [vmem:[%s8] sm:$0x1]
        %v838 = vperm.slane %v836, 0
        %v841 = vsel %vm753, %v832, 0
        %v844 = vsel %vm753, %v833, 0
        %v847 = vsel %vm753, %v834, 0
        %v850 = vsel %vm753, %v835, 0
        %852 = vmatpush.xpose.msra.mxu0 0.0
        %853 = vmatpush.xpose.msra.mxu0 0.0
        %854 = vmatpush.xpose.msra.mxu0 0.0
        %855 = vmatpush.xpose.msra.mxu0 0.0
        %856 = vmatpush.xpose.msra.mxu0 0.0
        %857 = vmatpush.xpose.msra.mxu0 0.0
        %858 = vmatpush.xpose.msra.mxu0 0.0
        %859 = vmatpush.xpose.msra.mxu0 0.0
        %860 = vmatpush.xpose.msra.mxu0 0.0
        %861 = vmatpush.xpose.msra.mxu0 0.0
        %862 = vmatpush.xpose.msra.mxu0 0.0
        %863 = vmatpush.xpose.msra.mxu0 0.0
        %864 = vmatpush.xpose.msra.mxu0 %v850
        %865 = vmatpush.xpose.msra.mxu0 %v847
        %866 = vmatpush.xpose.msra.mxu0 %v844
        %867 = vmatpush.xpose.msra.mxu0 %v841
        %868 = vmatmul.f32.gmra.mxu0 %v798
        %v869 = vpop.f32.mrf.mxu0
        %v870 = vadd.f32 %v838, %v869
        %871 = vdwg.mxu0
        %v872 = vperm.slane %v787, 0
        %v873 = vmul.f32 %v872, %v830
        %v874 = vmul.f32 %v873, 0.35355338
        %v876 = vsel %vm753, %v874, 0
        %878 = vmatpush.msra.mxu0 0.0
        %879 = vmatpush.msra.mxu0 0.0
        %880 = vmatpush.msra.mxu0 0.0
        %881 = vmatpush.msra.mxu0 0.0
        %882 = vmatpush.msra.mxu0 0.0
        %883 = vmatpush.msra.mxu0 0.0
        %884 = vmatpush.msra.mxu0 0.0
        %885 = vmatpush.msra.mxu0 0.0
        %886 = vmatpush.msra.mxu0 0.0
        %887 = vmatpush.msra.mxu0 0.0
        %888 = vmatpush.msra.mxu0 0.0
        %889 = vmatpush.msra.mxu0 0.0
        %890 = vmatpush.msra.mxu0 %v721
        %891 = vmatpush.msra.mxu0 %v720
        %892 = vmatpush.msra.mxu0 %v719
        %893 = vmatpush.msra.mxu0 %v718
        %894 = vmatmul.f32.gmra.mxu0 %v876
        %v895 = vpop.f32.mrf.mxu0
        %v896 = vadd.f32 0.0, %v895
        %897 = vdwg.mxu0
        %vm898 = vcmask 27648
        %v899 = vsel %vm898, %v896, -inf
        %v900 = vrot.slane %v899, 4
        %v901 = vmax.f32 %v899, %v900
        %v902 = vrot.slane %v901, 2
        %v903 = vmax.f32 %v901, %v902
        %v904 = vrot.slane %v903, 1
        %v905 = vmax.f32 %v903, %v904
        %v906 = vsub.f32 %v896, %v905
        %v907 = vmul.f32 %v906, 1.442695
        %v908 = vpow.pop %v907
        %v909 = vsel %vm898, %v908, 0.0
        %v910 = vrot.slane %v909, 4
        %v911 = vadd.f32 %v909, %v910
        %v912 = vrot.slane %v911, 2
        %v913 = vadd.f32 %v911, %v912
        %v914 = vrot.slane %v913, 1
        %v915 = vadd.f32 %v913, %v914
        %v916 = vrcp.pop %v915
        %v917 = vmul.f32 %v915, %v916
        %v918 = vsub.f32 1.0, %v917
        %v919 = vmul.f32 %v916, %v918
        %v920 = vadd.f32 %v916, %v919
        %vm921 = vweird.f32 %v915
        %vm922 = vweird.f32 %v916
        %vm923 = vmor %vm921, %vm922
        %v924 = vsel %vm923, %v916, %v920
        %v925 = vand.u32 2147483647, %v915
        %vm926 = vcmp.eq.f32.partialorder %v925, 8.507059e+37
        %v927 = vand.u32 %v915, 2147483648
        %v928 = vor.u32 1.1754944e-38, %v927
        %v929 = vsel %vm926, %v928, %v924
        %v930 = vmul.f32 %v908, %v929
        %vm931 = vcmask 31744
        %v933 = vsel %vm931, %v930, 0
        %v936 = vsel %vm931, %v718, 0
        %v939 = vsel %vm931, %v719, 0
        %v942 = vsel %vm931, %v720, 0
        %v945 = vsel %vm931, %v721, 0
        %947 = vmatpush.xpose.msra.mxu0 0.0
        %948 = vmatpush.xpose.msra.mxu0 0.0
        %949 = vmatpush.xpose.msra.mxu0 0.0
        %950 = vmatpush.xpose.msra.mxu0 0.0
        %951 = vmatpush.xpose.msra.mxu0 0.0
        %952 = vmatpush.xpose.msra.mxu0 0.0
        %953 = vmatpush.xpose.msra.mxu0 0.0
        %954 = vmatpush.xpose.msra.mxu0 0.0
        %955 = vmatpush.xpose.msra.mxu0 0.0
        %956 = vmatpush.xpose.msra.mxu0 0.0
        %957 = vmatpush.xpose.msra.mxu0 0.0
        %958 = vmatpush.xpose.msra.mxu0 0.0
        %959 = vmatpush.xpose.msra.mxu0 %v945
        %960 = vmatpush.xpose.msra.mxu0 %v942
        %961 = vmatpush.xpose.msra.mxu0 %v939
        %962 = vmatpush.xpose.msra.mxu0 %v936
        %963 = vmatmul.f32.gmra.mxu0 %v933
        %v964 = vpop.f32.mrf.mxu0
        %v965 = vadd.f32 0.0, %v964
        %966 = vdwg.mxu0
        %v967 = vmul.f32 %v965, %v870
        %vm968 = vcmask 257024
        %v969 = vsel %vm968, %v967, 0.0
        %v970 = vrot.slane %v969, 4
        %v971 = vadd.f32 %v969, %v970
        %v972 = vrot.slane %v971, 2
        %v973 = vadd.f32 %v971, %v972
        %v974 = vrot.slane %v973, 1
        %v975 = vadd.f32 %v973, %v974
        %v976 = vld [vmem:[#allocation11] sm:$0xff]
        %v977 = vld [vmem:[#allocation11 + $0x8] sm:$0xff]
        %v978 = vld [vmem:[#allocation11 + $0x10] sm:$0xff]
        %v979 = vld [vmem:[#allocation11 + $0x18] sm:$0xff]
        %v980 = vld [vmem:[%s10] sm:$0x1]
        %v982 = vsel %vm753, %v975, 0
        %v985 = vsel %vm753, %v976, 0
        %v988 = vsel %vm753, %v977, 0
        %v991 = vsel %vm753, %v978, 0
        %v994 = vsel %vm753, %v979, 0
        %996 = vmatpush.xpose.msra.mxu0 0.0
        %997 = vmatpush.xpose.msra.mxu0 0.0
        %998 = vmatpush.xpose.msra.mxu0 0.0
        %999 = vmatpush.xpose.msra.mxu0 0.0
        %1000 = vmatpush.xpose.msra.mxu0 0.0
        %1001 = vmatpush.xpose.msra.mxu0 0.0
        %1002 = vmatpush.xpose.msra.mxu0 0.0
        %1003 = vmatpush.xpose.msra.mxu0 0.0
        %1004 = vmatpush.xpose.msra.mxu0 0.0
        %1005 = vmatpush.xpose.msra.mxu0 0.0
        %1006 = vmatpush.xpose.msra.mxu0 0.0
        %1007 = vmatpush.xpose.msra.mxu0 0.0
        %1008 = vmatpush.xpose.msra.mxu0 %v994
        %1009 = vmatpush.xpose.msra.mxu0 %v991
        %1010 = vmatpush.xpose.msra.mxu0 %v988
        %1011 = vmatpush.xpose.msra.mxu0 %v985
        %1012 = vmatmul.f32.gmra.mxu0 %v982
        %v1013 = vpop.f32.mrf.mxu0
        %v1014 = vadd.f32 %v980, %v1013
        %1015 = vdwg.mxu0
        %v1016 = vld [vmem:[#allocation12] sm:$0xff]
        %v1017 = vld [vmem:[#allocation12 + $0x8] sm:$0xff]
        %v1018 = vld [vmem:[#allocation12 + $0x10] sm:$0xff]
        %v1019 = vld [vmem:[#allocation12 + $0x18] sm:$0xff]
        %v1020 = vld [vmem:[%s12] sm:$0x1]
        %v1022 = vsel %vm753, %v1014, 0
        %v1025 = vsel %vm753, %v1016, 0
        %v1028 = vsel %vm753, %v1017, 0
        %v1031 = vsel %vm753, %v1018, 0
        %v1034 = vsel %vm753, %v1019, 0
        %1036 = vmatpush.xpose.msra.mxu0 0.0
        %1037 = vmatpush.xpose.msra.mxu0 0.0
        %1038 = vmatpush.xpose.msra.mxu0 0.0
        %1039 = vmatpush.xpose.msra.mxu0 0.0
        %1040 = vmatpush.xpose.msra.mxu0 0.0
        %1041 = vmatpush.xpose.msra.mxu0 0.0
        %1042 = vmatpush.xpose.msra.mxu0 0.0
        %1043 = vmatpush.xpose.msra.mxu0 0.0
        %1044 = vmatpush.xpose.msra.mxu0 0.0
        %1045 = vmatpush.xpose.msra.mxu0 0.0
        %1046 = vmatpush.xpose.msra.mxu0 0.0
        %1047 = vmatpush.xpose.msra.mxu0 0.0
        %1048 = vmatpush.xpose.msra.mxu0 %v1034
        %1049 = vmatpush.xpose.msra.mxu0 %v1031
        %1050 = vmatpush.xpose.msra.mxu0 %v1028
        %1051 = vmatpush.xpose.msra.mxu0 %v1025
        %1052 = vmatmul.f32.gmra.mxu0 %v1022
        %v1053 = vpop.f32.mrf.mxu0
        %v1054 = vadd.f32 %v1020, %v1053
        %1055 = vdwg.mxu0
        %v1056 = vld [vmem:[#allocation14] sm:$0xff]
        %v1057 = vld [vmem:[#allocation14 + $0x8] sm:$0xff]
        %v1058 = vld [vmem:[#allocation14 + $0x10] sm:$0xff]
        %v1059 = vld [vmem:[#allocation14 + $0x18] sm:$0xff]
        %v1060 = vld [vmem:[%s14] sm:$0x1]
        %v1062 = vsel %vm753, %v1054, 0
        %v1065 = vsel %vm753, %v1056, 0
        %v1068 = vsel %vm753, %v1057, 0
        %v1071 = vsel %vm753, %v1058, 0
        %v1074 = vsel %vm753, %v1059, 0
        %1076 = vmatpush.xpose.msra.mxu0 0.0
        %1077 = vmatpush.xpose.msra.mxu0 0.0
        %1078 = vmatpush.xpose.msra.mxu0 0.0
        %1079 = vmatpush.xpose.msra.mxu0 0.0
        %1080 = vmatpush.xpose.msra.mxu0 0.0
        %1081 = vmatpush.xpose.msra.mxu0 0.0
        %1082 = vmatpush.xpose.msra.mxu0 0.0
        %1083 = vmatpush.xpose.msra.mxu0 0.0
        %1084 = vmatpush.xpose.msra.mxu0 0.0
        %1085 = vmatpush.xpose.msra.mxu0 0.0
        %1086 = vmatpush.xpose.msra.mxu0 0.0
        %1087 = vmatpush.xpose.msra.mxu0 0.0
        %1088 = vmatpush.xpose.msra.mxu0 %v1074
        %1089 = vmatpush.xpose.msra.mxu0 %v1071
        %1090 = vmatpush.xpose.msra.mxu0 %v1068
        %1091 = vmatpush.xpose.msra.mxu0 %v1065
        %1092 = vmatmul.f32.gmra.mxu0 %v1062
        %v1093 = vpop.f32.mrf.mxu0
        %v1094 = vadd.f32 %v1060, %v1093
        %1095 = vdwg.mxu0
        %vm1096 = vcmask 253952
        %1097 = vst.msk [vmem:[%s707] sm:$0x1] %vm1096, %v1014
        %1098 = vst.msk [vmem:[%s714] sm:$0x1] %vm1096, %v1094
        %v1099 = vld [vmem:[%s613 + $0x1] sm:$0x1]
        %s1100 = scalar_lea.vmem %s628, 4 [#allocation7]
        %v1101 = vld [vmem:[%s1100] sm:$0xf]
        %v1103 = vsel %vm724, %v1101, 0
        %1105 = vmatpush.msra.mxu0 0.0
        %1106 = vmatpush.msra.mxu0 0.0
        %1107 = vmatpush.msra.mxu0 0.0
        %1108 = vmatpush.msra.mxu0 0.0
        %1109 = vmatpush.msra.mxu0 0.0
        %1110 = vmatpush.msra.mxu0 0.0
        %1111 = vmatpush.msra.mxu0 0.0
        %1112 = vmatpush.msra.mxu0 0.0
        %1113 = vmatpush.msra.mxu0 0.0
        %1114 = vmatpush.msra.mxu0 0.0
        %1115 = vmatpush.msra.mxu0 0.0
        %1116 = vmatpush.msra.mxu0 0.0
        %1117 = vmatpush.msra.mxu0 0.0
        %1118 = vmatpush.msra.mxu0 0.0
        %1119 = vmatpush.msra.mxu0 %v717
        %1120 = vmatpush.msra.mxu0 %v716
        %1121 = vmatmul.f32.gmra.mxu0 %v1103
        %v1122 = vpop.f32.mrf.mxu0
        %v1123 = vadd.f32 0.0, %v1122
        %1124 = vdwg.mxu0
        %v1125 = vld [vmem:[%s3] sm:$0xff]
        %v1126 = vld [vmem:[%s3 + $0x8] sm:$0xff]
        %v1127 = vld [vmem:[%s3 + $0x10] sm:$0xff]
        %v1128 = vld [vmem:[%s3 + $0x18] sm:$0xff]
        %v1129 = vld [vmem:[%s4] sm:$0x1]
        %v1131 = vsel %vm753, %v1099, 0
        %v1134 = vsel %vm753, %v1125, 0
        %v1137 = vsel %vm753, %v1126, 0
        %v1140 = vsel %vm753, %v1127, 0
        %v1143 = vsel %vm753, %v1128, 0
        %1145 = vmatpush.xpose.msra.mxu0 0.0
        %1146 = vmatpush.xpose.msra.mxu0 0.0
        %1147 = vmatpush.xpose.msra.mxu0 0.0
        %1148 = vmatpush.xpose.msra.mxu0 0.0
        %1149 = vmatpush.xpose.msra.mxu0 0.0
        %1150 = vmatpush.xpose.msra.mxu0 0.0
        %1151 = vmatpush.xpose.msra.mxu0 0.0
        %1152 = vmatpush.xpose.msra.mxu0 0.0
        %1153 = vmatpush.xpose.msra.mxu0 0.0
        %1154 = vmatpush.xpose.msra.mxu0 0.0
        %1155 = vmatpush.xpose.msra.mxu0 0.0
        %1156 = vmatpush.xpose.msra.mxu0 0.0
        %1157 = vmatpush.xpose.msra.mxu0 %v1143
        %1158 = vmatpush.xpose.msra.mxu0 %v1140
        %1159 = vmatpush.xpose.msra.mxu0 %v1137
        %1160 = vmatpush.xpose.msra.mxu0 %v1134
        %1161 = vmatmul.f32.gmra.mxu0 %v1131
        %v1162 = vpop.f32.mrf.mxu0
        %v1163 = vadd.f32 %v1129, %v1162
        %1164 = vdwg.mxu0
        %v1165 = vld [vmem:[#allocation8] sm:$0xff]
        %v1166 = vld [vmem:[#allocation8 + $0x8] sm:$0xff]
        %v1167 = vld [vmem:[#allocation8 + $0x10] sm:$0xff]
        %v1168 = vld [vmem:[#allocation8 + $0x18] sm:$0xff]
        %v1169 = vld [vmem:[%s6] sm:$0x1]
        %v1171 = vperm.slane %v1169, 0
        %v1174 = vsel %vm753, %v1123, 0
        %v1177 = vsel %vm753, %v1165, 0
        %v1180 = vsel %vm753, %v1166, 0
        %v1183 = vsel %vm753, %v1167, 0
        %v1186 = vsel %vm753, %v1168, 0
        %1188 = vmatpush.xpose.msra.mxu0 0.0
        %1189 = vmatpush.xpose.msra.mxu0 0.0
        %1190 = vmatpush.xpose.msra.mxu0 0.0
        %1191 = vmatpush.xpose.msra.mxu0 0.0
        %1192 = vmatpush.xpose.msra.mxu0 0.0
        %1193 = vmatpush.xpose.msra.mxu0 0.0
        %1194 = vmatpush.xpose.msra.mxu0 0.0
        %1195 = vmatpush.xpose.msra.mxu0 0.0
        %1196 = vmatpush.xpose.msra.mxu0 0.0
        %1197 = vmatpush.xpose.msra.mxu0 0.0
        %1198 = vmatpush.xpose.msra.mxu0 0.0
        %1199 = vmatpush.xpose.msra.mxu0 0.0
        %1200 = vmatpush.xpose.msra.mxu0 %v1186
        %1201 = vmatpush.xpose.msra.mxu0 %v1183
        %1202 = vmatpush.xpose.msra.mxu0 %v1180
        %1203 = vmatpush.xpose.msra.mxu0 %v1177
        %1204 = vmatmul.f32.gmra.mxu0 %v1174
        %v1205 = vpop.f32.mrf.mxu0
        %v1206 = vadd.f32 %v1171, %v1205
        %1207 = vdwg.mxu0
        %v1208 = vld [vmem:[#allocation9] sm:$0xff]
        %v1209 = vld [vmem:[#allocation9 + $0x8] sm:$0xff]
        %v1210 = vld [vmem:[#allocation9 + $0x10] sm:$0xff]
        %v1211 = vld [vmem:[#allocation9 + $0x18] sm:$0xff]
        %v1212 = vld [vmem:[%s8] sm:$0x1]
        %v1214 = vperm.slane %v1212, 0
        %v1217 = vsel %vm753, %v1208, 0
        %v1220 = vsel %vm753, %v1209, 0
        %v1223 = vsel %vm753, %v1210, 0
        %v1226 = vsel %vm753, %v1211, 0
        %1228 = vmatpush.xpose.msra.mxu0 0.0
        %1229 = vmatpush.xpose.msra.mxu0 0.0
        %1230 = vmatpush.xpose.msra.mxu0 0.0
        %1231 = vmatpush.xpose.msra.mxu0 0.0
        %1232 = vmatpush.xpose.msra.mxu0 0.0
        %1233 = vmatpush.xpose.msra.mxu0 0.0
        %1234 = vmatpush.xpose.msra.mxu0 0.0
        %1235 = vmatpush.xpose.msra.mxu0 0.0
        %1236 = vmatpush.xpose.msra.mxu0 0.0
        %1237 = vmatpush.xpose.msra.mxu0 0.0
        %1238 = vmatpush.xpose.msra.mxu0 0.0
        %1239 = vmatpush.xpose.msra.mxu0 0.0
        %1240 = vmatpush.xpose.msra.mxu0 %v1226
        %1241 = vmatpush.xpose.msra.mxu0 %v1223
        %1242 = vmatpush.xpose.msra.mxu0 %v1220
        %1243 = vmatpush.xpose.msra.mxu0 %v1217
        %1244 = vmatmul.f32.gmra.mxu0 %v1174
        %v1245 = vpop.f32.mrf.mxu0
        %v1246 = vadd.f32 %v1214, %v1245
        %1247 = vdwg.mxu0
        %v1248 = vperm.slane %v1163, 0
        %v1249 = vmul.f32 %v1248, %v1206
        %v1250 = vmul.f32 %v1249, 0.35355338
        %v1252 = vsel %vm753, %v1250, 0
        %1254 = vmatpush.msra.mxu0 0.0
        %1255 = vmatpush.msra.mxu0 0.0
        %1256 = vmatpush.msra.mxu0 0.0
        %1257 = vmatpush.msra.mxu0 0.0
        %1258 = vmatpush.msra.mxu0 0.0
        %1259 = vmatpush.msra.mxu0 0.0
        %1260 = vmatpush.msra.mxu0 0.0
        %1261 = vmatpush.msra.mxu0 0.0
        %1262 = vmatpush.msra.mxu0 0.0
        %1263 = vmatpush.msra.mxu0 0.0
        %1264 = vmatpush.msra.mxu0 0.0
        %1265 = vmatpush.msra.mxu0 0.0
        %1266 = vmatpush.msra.mxu0 %v721
        %1267 = vmatpush.msra.mxu0 %v720
        %1268 = vmatpush.msra.mxu0 %v719
        %1269 = vmatpush.msra.mxu0 %v718
        %1270 = vmatmul.f32.gmra.mxu0 %v1252
        %v1271 = vpop.f32.mrf.mxu0
        %v1272 = vadd.f32 0.0, %v1271
        %1273 = vdwg.mxu0
        %v1274 = vsel %vm898, %v1272, -inf
        %v1275 = vrot.slane %v1274, 4
        %v1276 = vmax.f32 %v1274, %v1275
        %v1277 = vrot.slane %v1276, 2
        %v1278 = vmax.f32 %v1276, %v1277
        %v1279 = vrot.slane %v1278, 1
        %v1280 = vmax.f32 %v1278, %v1279
        %v1281 = vsub.f32 %v1272, %v1280
        %v1282 = vmul.f32 %v1281, 1.442695
        %v1283 = vpow.pop %v1282
        %v1284 = vsel %vm898, %v1283, 0.0
        %v1285 = vrot.slane %v1284, 4
        %v1286 = vadd.f32 %v1284, %v1285
        %v1287 = vrot.slane %v1286, 2
        %v1288 = vadd.f32 %v1286, %v1287
        %v1289 = vrot.slane %v1288, 1
        %v1290 = vadd.f32 %v1288, %v1289
        %v1291 = vrcp.pop %v1290
        %v1292 = vmul.f32 %v1290, %v1291
        %v1293 = vsub.f32 1.0, %v1292
        %v1294 = vmul.f32 %v1291, %v1293
        %v1295 = vadd.f32 %v1291, %v1294
        %vm1296 = vweird.f32 %v1290
        %vm1297 = vweird.f32 %v1291
        %vm1298 = vmor %vm1296, %vm1297
        %v1299 = vsel %vm1298, %v1291, %v1295
        %v1300 = vand.u32 2147483647, %v1290
        %vm1301 = vcmp.eq.f32.partialorder %v1300, 8.507059e+37
        %v1302 = vand.u32 %v1290, 2147483648
        %v1303 = vor.u32 1.1754944e-38, %v1302
        %v1304 = vsel %vm1301, %v1303, %v1299
        %v1305 = vmul.f32 %v1283, %v1304
        %v1307 = vsel %vm931, %v1305, 0
        %1309 = vmatpush.xpose.msra.mxu0 0.0
        %1310 = vmatpush.xpose.msra.mxu0 0.0
        %1311 = vmatpush.xpose.msra.mxu0 0.0
        %1312 = vmatpush.xpose.msra.mxu0 0.0
        %1313 = vmatpush.xpose.msra.mxu0 0.0
        %1314 = vmatpush.xpose.msra.mxu0 0.0
        %1315 = vmatpush.xpose.msra.mxu0 0.0
        %1316 = vmatpush.xpose.msra.mxu0 0.0
        %1317 = vmatpush.xpose.msra.mxu0 0.0
        %1318 = vmatpush.xpose.msra.mxu0 0.0
        %1319 = vmatpush.xpose.msra.mxu0 0.0
        %1320 = vmatpush.xpose.msra.mxu0 0.0
        %1321 = vmatpush.xpose.msra.mxu0 %v945
        %1322 = vmatpush.xpose.msra.mxu0 %v942
        %1323 = vmatpush.xpose.msra.mxu0 %v939
        %1324 = vmatpush.xpose.msra.mxu0 %v936
        %1325 = vmatmul.f32.gmra.mxu0 %v1307
        %v1326 = vpop.f32.mrf.mxu0
        %v1327 = vadd.f32 0.0, %v1326
        %1328 = vdwg.mxu0
        %v1329 = vmul.f32 %v1327, %v1246
        %v1330 = vsel %vm968, %v1329, 0.0
        %v1331 = vrot.slane %v1330, 4
        %v1332 = vadd.f32 %v1330, %v1331
        %v1333 = vrot.slane %v1332, 2
        %v1334 = vadd.f32 %v1332, %v1333
        %v1335 = vrot.slane %v1334, 1
        %v1336 = vadd.f32 %v1334, %v1335
        %v1337 = vld [vmem:[#allocation11] sm:$0xff]
        %v1338 = vld [vmem:[#allocation11 + $0x8] sm:$0xff]
        %v1339 = vld [vmem:[#allocation11 + $0x10] sm:$0xff]
        %v1340 = vld [vmem:[#allocation11 + $0x18] sm:$0xff]
        %v1341 = vld [vmem:[%s10] sm:$0x1]
        %v1343 = vsel %vm753, %v1336, 0
        %v1346 = vsel %vm753, %v1337, 0
        %v1349 = vsel %vm753, %v1338, 0
        %v1352 = vsel %vm753, %v1339, 0
        %v1355 = vsel %vm753, %v1340, 0
        %1357 = vmatpush.xpose.msra.mxu0 0.0
        %1358 = vmatpush.xpose.msra.mxu0 0.0
        %1359 = vmatpush.xpose.msra.mxu0 0.0
        %1360 = vmatpush.xpose.msra.mxu0 0.0
        %1361 = vmatpush.xpose.msra.mxu0 0.0
        %1362 = vmatpush.xpose.msra.mxu0 0.0
        %1363 = vmatpush.xpose.msra.mxu0 0.0
        %1364 = vmatpush.xpose.msra.mxu0 0.0
        %1365 = vmatpush.xpose.msra.mxu0 0.0
        %1366 = vmatpush.xpose.msra.mxu0 0.0
        %1367 = vmatpush.xpose.msra.mxu0 0.0
        %1368 = vmatpush.xpose.msra.mxu0 0.0
        %1369 = vmatpush.xpose.msra.mxu0 %v1355
        %1370 = vmatpush.xpose.msra.mxu0 %v1352
        %1371 = vmatpush.xpose.msra.mxu0 %v1349
        %1372 = vmatpush.xpose.msra.mxu0 %v1346
        %1373 = vmatmul.f32.gmra.mxu0 %v1343
        %v1374 = vpop.f32.mrf.mxu0
        %v1375 = vadd.f32 %v1341, %v1374
        %1376 = vdwg.mxu0
        %v1377 = vld [vmem:[#allocation12] sm:$0xff]
        %v1378 = vld [vmem:[#allocation12 + $0x8] sm:$0xff]
        %v1379 = vld [vmem:[#allocation12 + $0x10] sm:$0xff]
        %v1380 = vld [vmem:[#allocation12 + $0x18] sm:$0xff]
        %v1381 = vld [vmem:[%s12] sm:$0x1]
        %v1383 = vsel %vm753, %v1375, 0
        %v1386 = vsel %vm753, %v1377, 0
        %v1389 = vsel %vm753, %v1378, 0
        %v1392 = vsel %vm753, %v1379, 0
        %v1395 = vsel %vm753, %v1380, 0
        %1397 = vmatpush.xpose.msra.mxu0 0.0
        %1398 = vmatpush.xpose.msra.mxu0 0.0
        %1399 = vmatpush.xpose.msra.mxu0 0.0
        %1400 = vmatpush.xpose.msra.mxu0 0.0
        %1401 = vmatpush.xpose.msra.mxu0 0.0
        %1402 = vmatpush.xpose.msra.mxu0 0.0
        %1403 = vmatpush.xpose.msra.mxu0 0.0
        %1404 = vmatpush.xpose.msra.mxu0 0.0
        %1405 = vmatpush.xpose.msra.mxu0 0.0
        %1406 = vmatpush.xpose.msra.mxu0 0.0
        %1407 = vmatpush.xpose.msra.mxu0 0.0
        %1408 = vmatpush.xpose.msra.mxu0 0.0
        %1409 = vmatpush.xpose.msra.mxu0 %v1395
        %1410 = vmatpush.xpose.msra.mxu0 %v1392
        %1411 = vmatpush.xpose.msra.mxu0 %v1389
        %1412 = vmatpush.xpose.msra.mxu0 %v1386
        %1413 = vmatmul.f32.gmra.mxu0 %v1383
        %v1414 = vpop.f32.mrf.mxu0
        %v1415 = vadd.f32 %v1381, %v1414
        %1416 = vdwg.mxu0
        %v1417 = vld [vmem:[#allocation14] sm:$0xff]
        %v1418 = vld [vmem:[#allocation14 + $0x8] sm:$0xff]
        %v1419 = vld [vmem:[#allocation14 + $0x10] sm:$0xff]
        %v1420 = vld [vmem:[#allocation14 + $0x18] sm:$0xff]
        %v1421 = vld [vmem:[%s14] sm:$0x1]
        %v1423 = vsel %vm753, %v1415, 0
        %v1426 = vsel %vm753, %v1417, 0
        %v1429 = vsel %vm753, %v1418, 0
        %v1432 = vsel %vm753, %v1419, 0
        %v1435 = vsel %vm753, %v1420, 0
        %1437 = vmatpush.xpose.msra.mxu0 0.0
        %1438 = vmatpush.xpose.msra.mxu0 0.0
        %1439 = vmatpush.xpose.msra.mxu0 0.0
        %1440 = vmatpush.xpose.msra.mxu0 0.0
        %1441 = vmatpush.xpose.msra.mxu0 0.0
        %1442 = vmatpush.xpose.msra.mxu0 0.0
        %1443 = vmatpush.xpose.msra.mxu0 0.0
        %1444 = vmatpush.xpose.msra.mxu0 0.0
        %1445 = vmatpush.xpose.msra.mxu0 0.0
        %1446 = vmatpush.xpose.msra.mxu0 0.0
        %1447 = vmatpush.xpose.msra.mxu0 0.0
        %1448 = vmatpush.xpose.msra.mxu0 0.0
        %1449 = vmatpush.xpose.msra.mxu0 %v1435
        %1450 = vmatpush.xpose.msra.mxu0 %v1432
        %1451 = vmatpush.xpose.msra.mxu0 %v1429
        %1452 = vmatpush.xpose.msra.mxu0 %v1426
        %1453 = vmatmul.f32.gmra.mxu0 %v1423
        %v1454 = vpop.f32.mrf.mxu0
        %v1455 = vadd.f32 %v1421, %v1454
        %1456 = vdwg.mxu0
        %1457 = vst.msk [vmem:[%s707 + $0x1] sm:$0x1] %vm1096, %v1375
        %1458 = vst.msk [vmem:[%s714 + $0x1] sm:$0x1] %vm1096, %v1455
        %v1459 = vld [vmem:[%s613 + $0x2] sm:$0x1]
        %s1460 = scalar_lea.vmem %s628, 8 [#allocation7]
        %v1461 = vld [vmem:[%s1460] sm:$0xf]
        %v1463 = vsel %vm724, %v1461, 0
        %1465 = vmatpush.msra.mxu0 0.0
        %1466 = vmatpush.msra.mxu0 0.0
        %1467 = vmatpush.msra.mxu0 0.0
        %1468 = vmatpush.msra.mxu0 0.0
        %1469 = vmatpush.msra.mxu0 0.0
        %1470 = vmatpush.msra.mxu0 0.0
        %1471 = vmatpush.msra.mxu0 0.0
        %1472 = vmatpush.msra.mxu0 0.0
        %1473 = vmatpush.msra.mxu0 0.0
        %1474 = vmatpush.msra.mxu0 0.0
        %1475 = vmatpush.msra.mxu0 0.0
        %1476 = vmatpush.msra.mxu0 0.0
        %1477 = vmatpush.msra.mxu0 0.0
        %1478 = vmatpush.msra.mxu0 0.0
        %1479 = vmatpush.msra.mxu0 %v717
        %1480 = vmatpush.msra.mxu0 %v716
        %1481 = vmatmul.f32.gmra.mxu0 %v1463
        %v1482 = vpop.f32.mrf.mxu0
        %v1483 = vadd.f32 0.0, %v1482
        %1484 = vdwg.mxu0
        %v1485 = vld [vmem:[%s3] sm:$0xff]
        %v1486 = vld [vmem:[%s3 + $0x8] sm:$0xff]
        %v1487 = vld [vmem:[%s3 + $0x10] sm:$0xff]
        %v1488 = vld [vmem:[%s3 + $0x18] sm:$0xff]
        %v1489 = vld [vmem:[%s4] sm:$0x1]
        %v1491 = vsel %vm753, %v1459, 0
        %v1494 = vsel %vm753, %v1485, 0
        %v1497 = vsel %vm753, %v1486, 0
        %v1500 = vsel %vm753, %v1487, 0
        %v1503 = vsel %vm753, %v1488, 0
        %1505 = vmatpush.xpose.msra.mxu0 0.0
        %1506 = vmatpush.xpose.msra.mxu0 0.0
        %1507 = vmatpush.xpose.msra.mxu0 0.0
        %1508 = vmatpush.xpose.msra.mxu0 0.0
        %1509 = vmatpush.xpose.msra.mxu0 0.0
        %1510 = vmatpush.xpose.msra.mxu0 0.0
        %1511 = vmatpush.xpose.msra.mxu0 0.0
        %1512 = vmatpush.xpose.msra.mxu0 0.0
        %1513 = vmatpush.xpose.msra.mxu0 0.0
        %1514 = vmatpush.xpose.msra.mxu0 0.0
        %1515 = vmatpush.xpose.msra.mxu0 0.0
        %1516 = vmatpush.xpose.msra.mxu0 0.0
        %1517 = vmatpush.xpose.msra.mxu0 %v1503
        %1518 = vmatpush.xpose.msra.mxu0 %v1500
        %1519 = vmatpush.xpose.msra.mxu0 %v1497
        %1520 = vmatpush.xpose.msra.mxu0 %v1494
        %1521 = vmatmul.f32.gmra.mxu0 %v1491
        %v1522 = vpop.f32.mrf.mxu0
        %v1523 = vadd.f32 %v1489, %v1522
        %1524 = vdwg.mxu0
        %v1525 = vld [vmem:[#allocation8] sm:$0xff]
        %v1526 = vld [vmem:[#allocation8 + $0x8] sm:$0xff]
        %v1527 = vld [vmem:[#allocation8 + $0x10] sm:$0xff]
        %v1528 = vld [vmem:[#allocation8 + $0x18] sm:$0xff]
        %v1529 = vld [vmem:[%s6] sm:$0x1]
        %v1531 = vperm.slane %v1529, 0
        %v1534 = vsel %vm753, %v1483, 0
        %v1537 = vsel %vm753, %v1525, 0
        %v1540 = vsel %vm753, %v1526, 0
        %v1543 = vsel %vm753, %v1527, 0
        %v1546 = vsel %vm753, %v1528, 0
        %1548 = vmatpush.xpose.msra.mxu0 0.0
        %1549 = vmatpush.xpose.msra.mxu0 0.0
        %1550 = vmatpush.xpose.msra.mxu0 0.0
        %1551 = vmatpush.xpose.msra.mxu0 0.0
        %1552 = vmatpush.xpose.msra.mxu0 0.0
        %1553 = vmatpush.xpose.msra.mxu0 0.0
        %1554 = vmatpush.xpose.msra.mxu0 0.0
        %1555 = vmatpush.xpose.msra.mxu0 0.0
        %1556 = vmatpush.xpose.msra.mxu0 0.0
        %1557 = vmatpush.xpose.msra.mxu0 0.0
        %1558 = vmatpush.xpose.msra.mxu0 0.0
        %1559 = vmatpush.xpose.msra.mxu0 0.0
        %1560 = vmatpush.xpose.msra.mxu0 %v1546
        %1561 = vmatpush.xpose.msra.mxu0 %v1543
        %1562 = vmatpush.xpose.msra.mxu0 %v1540
        %1563 = vmatpush.xpose.msra.mxu0 %v1537
        %1564 = vmatmul.f32.gmra.mxu0 %v1534
        %v1565 = vpop.f32.mrf.mxu0
        %v1566 = vadd.f32 %v1531, %v1565
        %1567 = vdwg.mxu0
        %v1568 = vld [vmem:[#allocation9] sm:$0xff]
        %v1569 = vld [vmem:[#allocation9 + $0x8] sm:$0xff]
        %v1570 = vld [vmem:[#allocation9 + $0x10] sm:$0xff]
        %v1571 = vld [vmem:[#allocation9 + $0x18] sm:$0xff]
        %v1572 = vld [vmem:[%s8] sm:$0x1]
        %v1574 = vperm.slane %v1572, 0
        %v1577 = vsel %vm753, %v1568, 0
        %v1580 = vsel %vm753, %v1569, 0
        %v1583 = vsel %vm753, %v1570, 0
        %v1586 = vsel %vm753, %v1571, 0
        %1588 = vmatpush.xpose.msra.mxu0 0.0
        %1589 = vmatpush.xpose.msra.mxu0 0.0
        %1590 = vmatpush.xpose.msra.mxu0 0.0
        %1591 = vmatpush.xpose.msra.mxu0 0.0
        %1592 = vmatpush.xpose.msra.mxu0 0.0
        %1593 = vmatpush.xpose.msra.mxu0 0.0
        %1594 = vmatpush.xpose.msra.mxu0 0.0
        %1595 = vmatpush.xpose.msra.mxu0 0.0
        %1596 = vmatpush.xpose.msra.mxu0 0.0
        %1597 = vmatpush.xpose.msra.mxu0 0.0
        %1598 = vmatpush.xpose.msra.mxu0 0.0
        %1599 = vmatpush.xpose.msra.mxu0 0.0
        %1600 = vmatpush.xpose.msra.mxu0 %v1586
        %1601 = vmatpush.xpose.msra.mxu0 %v1583
        %1602 = vmatpush.xpose.msra.mxu0 %v1580
        %1603 = vmatpush.xpose.msra.mxu0 %v1577
        %1604 = vmatmul.f32.gmra.mxu0 %v1534
        %v1605 = vpop.f32.mrf.mxu0
        %v1606 = vadd.f32 %v1574, %v1605
        %1607 = vdwg.mxu0
        %v1608 = vperm.slane %v1523, 0
        %v1609 = vmul.f32 %v1608, %v1566
        %v1610 = vmul.f32 %v1609, 0.35355338
        %v1612 = vsel %vm753, %v1610, 0
        %1614 = vmatpush.msra.mxu0 0.0
        %1615 = vmatpush.msra.mxu0 0.0
        %1616 = vmatpush.msra.mxu0 0.0
        %1617 = vmatpush.msra.mxu0 0.0
        %1618 = vmatpush.msra.mxu0 0.0
        %1619 = vmatpush.msra.mxu0 0.0
        %1620 = vmatpush.msra.mxu0 0.0
        %1621 = vmatpush.msra.mxu0 0.0
        %1622 = vmatpush.msra.mxu0 0.0
        %1623 = vmatpush.msra.mxu0 0.0
        %1624 = vmatpush.msra.mxu0 0.0
        %1625 = vmatpush.msra.mxu0 0.0
        %1626 = vmatpush.msra.mxu0 %v721
        %1627 = vmatpush.msra.mxu0 %v720
        %1628 = vmatpush.msra.mxu0 %v719
        %1629 = vmatpush.msra.mxu0 %v718
        %1630 = vmatmul.f32.gmra.mxu0 %v1612
        %v1631 = vpop.f32.mrf.mxu0
        %v1632 = vadd.f32 0.0, %v1631
        %1633 = vdwg.mxu0
        %v1634 = vsel %vm898, %v1632, -inf
        %v1635 = vrot.slane %v1634, 4
        %v1636 = vmax.f32 %v1634, %v1635
        %v1637 = vrot.slane %v1636, 2
        %v1638 = vmax.f32 %v1636, %v1637
        %v1639 = vrot.slane %v1638, 1
        %v1640 = vmax.f32 %v1638, %v1639
        %v1641 = vsub.f32 %v1632, %v1640
        %v1642 = vmul.f32 %v1641, 1.442695
        %v1643 = vpow.pop %v1642
        %v1644 = vsel %vm898, %v1643, 0.0
        %v1645 = vrot.slane %v1644, 4
        %v1646 = vadd.f32 %v1644, %v1645
        %v1647 = vrot.slane %v1646, 2
        %v1648 = vadd.f32 %v1646, %v1647
        %v1649 = vrot.slane %v1648, 1
        %v1650 = vadd.f32 %v1648, %v1649
        %v1651 = vrcp.pop %v1650
        %v1652 = vmul.f32 %v1650, %v1651
        %v1653 = vsub.f32 1.0, %v1652
        %v1654 = vmul.f32 %v1651, %v1653
        %v1655 = vadd.f32 %v1651, %v1654
        %vm1656 = vweird.f32 %v1650
        %vm1657 = vweird.f32 %v1651
        %vm1658 = vmor %vm1656, %vm1657
        %v1659 = vsel %vm1658, %v1651, %v1655
        %v1660 = vand.u32 2147483647, %v1650
        %vm1661 = vcmp.eq.f32.partialorder %v1660, 8.507059e+37
        %v1662 = vand.u32 %v1650, 2147483648
        %v1663 = vor.u32 1.1754944e-38, %v1662
        %v1664 = vsel %vm1661, %v1663, %v1659
        %v1665 = vmul.f32 %v1643, %v1664
        %v1667 = vsel %vm931, %v1665, 0
        %1669 = vmatpush.xpose.msra.mxu0 0.0
        %1670 = vmatpush.xpose.msra.mxu0 0.0
        %1671 = vmatpush.xpose.msra.mxu0 0.0
        %1672 = vmatpush.xpose.msra.mxu0 0.0
        %1673 = vmatpush.xpose.msra.mxu0 0.0
        %1674 = vmatpush.xpose.msra.mxu0 0.0
        %1675 = vmatpush.xpose.msra.mxu0 0.0
        %1676 = vmatpush.xpose.msra.mxu0 0.0
        %1677 = vmatpush.xpose.msra.mxu0 0.0
        %1678 = vmatpush.xpose.msra.mxu0 0.0
        %1679 = vmatpush.xpose.msra.mxu0 0.0
        %1680 = vmatpush.xpose.msra.mxu0 0.0
        %1681 = vmatpush.xpose.msra.mxu0 %v945
        %1682 = vmatpush.xpose.msra.mxu0 %v942
        %1683 = vmatpush.xpose.msra.mxu0 %v939
        %1684 = vmatpush.xpose.msra.mxu0 %v936
        %1685 = vmatmul.f32.gmra.mxu0 %v1667
        %v1686 = vpop.f32.mrf.mxu0
        %v1687 = vadd.f32 0.0, %v1686
        %1688 = vdwg.mxu0
        %v1689 = vmul.f32 %v1687, %v1606
        %v1690 = vsel %vm968, %v1689, 0.0
        %v1691 = vrot.slane %v1690, 4
        %v1692 = vadd.f32 %v1690, %v1691
        %v1693 = vrot.slane %v1692, 2
        %v1694 = vadd.f32 %v1692, %v1693
        %v1695 = vrot.slane %v1694, 1
        %v1696 = vadd.f32 %v1694, %v1695
        %v1697 = vld [vmem:[#allocation11] sm:$0xff]
        %v1698 = vld [vmem:[#allocation11 + $0x8] sm:$0xff]
        %v1699 = vld [vmem:[#allocation11 + $0x10] sm:$0xff]
        %v1700 = vld [vmem:[#allocation11 + $0x18] sm:$0xff]
        %v1701 = vld [vmem:[%s10] sm:$0x1]
        %v1703 = vsel %vm753, %v1696, 0
        %v1706 = vsel %vm753, %v1697, 0
        %v1709 = vsel %vm753, %v1698, 0
        %v1712 = vsel %vm753, %v1699, 0
        %v1715 = vsel %vm753, %v1700, 0
        %1717 = vmatpush.xpose.msra.mxu0 0.0
        %1718 = vmatpush.xpose.msra.mxu0 0.0
        %1719 = vmatpush.xpose.msra.mxu0 0.0
        %1720 = vmatpush.xpose.msra.mxu0 0.0
        %1721 = vmatpush.xpose.msra.mxu0 0.0
        %1722 = vmatpush.xpose.msra.mxu0 0.0
        %1723 = vmatpush.xpose.msra.mxu0 0.0
        %1724 = vmatpush.xpose.msra.mxu0 0.0
        %1725 = vmatpush.xpose.msra.mxu0 0.0
        %1726 = vmatpush.xpose.msra.mxu0 0.0
        %1727 = vmatpush.xpose.msra.mxu0 0.0
        %1728 = vmatpush.xpose.msra.mxu0 0.0
        %1729 = vmatpush.xpose.msra.mxu0 %v1715
        %1730 = vmatpush.xpose.msra.mxu0 %v1712
        %1731 = vmatpush.xpose.msra.mxu0 %v1709
        %1732 = vmatpush.xpose.msra.mxu0 %v1706
        %1733 = vmatmul.f32.gmra.mxu0 %v1703
        %v1734 = vpop.f32.mrf.mxu0
        %v1735 = vadd.f32 %v1701, %v1734
        %1736 = vdwg.mxu0
        %v1737 = vld [vmem:[#allocation12] sm:$0xff]
        %v1738 = vld [vmem:[#allocation12 + $0x8] sm:$0xff]
        %v1739 = vld [vmem:[#allocation12 + $0x10] sm:$0xff]
        %v1740 = vld [vmem:[#allocation12 + $0x18] sm:$0xff]
        %v1741 = vld [vmem:[%s12] sm:$0x1]
        %v1743 = vsel %vm753, %v1735, 0
        %v1746 = vsel %vm753, %v1737, 0
        %v1749 = vsel %vm753, %v1738, 0
        %v1752 = vsel %vm753, %v1739, 0
        %v1755 = vsel %vm753, %v1740, 0
        %1757 = vmatpush.xpose.msra.mxu0 0.0
        %1758 = vmatpush.xpose.msra.mxu0 0.0
        %1759 = vmatpush.xpose.msra.mxu0 0.0
        %1760 = vmatpush.xpose.msra.mxu0 0.0
        %1761 = vmatpush.xpose.msra.mxu0 0.0
        %1762 = vmatpush.xpose.msra.mxu0 0.0
        %1763 = vmatpush.xpose.msra.mxu0 0.0
        %1764 = vmatpush.xpose.msra.mxu0 0.0
        %1765 = vmatpush.xpose.msra.mxu0 0.0
        %1766 = vmatpush.xpose.msra.mxu0 0.0
        %1767 = vmatpush.xpose.msra.mxu0 0.0
        %1768 = vmatpush.xpose.msra.mxu0 0.0
        %1769 = vmatpush.xpose.msra.mxu0 %v1755
        %1770 = vmatpush.xpose.msra.mxu0 %v1752
        %1771 = vmatpush.xpose.msra.mxu0 %v1749
        %1772 = vmatpush.xpose.msra.mxu0 %v1746
        %1773 = vmatmul.f32.gmra.mxu0 %v1743
        %v1774 = vpop.f32.mrf.mxu0
        %v1775 = vadd.f32 %v1741, %v1774
        %1776 = vdwg.mxu0
        %v1777 = vld [vmem:[#allocation14] sm:$0xff]
        %v1778 = vld [vmem:[#allocation14 + $0x8] sm:$0xff]
        %v1779 = vld [vmem:[#allocation14 + $0x10] sm:$0xff]
        %v1780 = vld [vmem:[#allocation14 + $0x18] sm:$0xff]
        %v1781 = vld [vmem:[%s14] sm:$0x1]
        %v1783 = vsel %vm753, %v1775, 0
        %v1786 = vsel %vm753, %v1777, 0
        %v1789 = vsel %vm753, %v1778, 0
        %v1792 = vsel %vm753, %v1779, 0
        %v1795 = vsel %vm753, %v1780, 0
        %1797 = vmatpush.xpose.msra.mxu0 0.0
        %1798 = vmatpush.xpose.msra.mxu0 0.0
        %1799 = vmatpush.xpose.msra.mxu0 0.0
        %1800 = vmatpush.xpose.msra.mxu0 0.0
        %1801 = vmatpush.xpose.msra.mxu0 0.0
        %1802 = vmatpush.xpose.msra.mxu0 0.0
        %1803 = vmatpush.xpose.msra.mxu0 0.0
        %1804 = vmatpush.xpose.msra.mxu0 0.0
        %1805 = vmatpush.xpose.msra.mxu0 0.0
        %1806 = vmatpush.xpose.msra.mxu0 0.0
        %1807 = vmatpush.xpose.msra.mxu0 0.0
        %1808 = vmatpush.xpose.msra.mxu0 0.0
        %1809 = vmatpush.xpose.msra.mxu0 %v1795
        %1810 = vmatpush.xpose.msra.mxu0 %v1792
        %1811 = vmatpush.xpose.msra.mxu0 %v1789
        %1812 = vmatpush.xpose.msra.mxu0 %v1786
        %1813 = vmatmul.f32.gmra.mxu0 %v1783
        %v1814 = vpop.f32.mrf.mxu0
        %v1815 = vadd.f32 %v1781, %v1814
        %1816 = vdwg.mxu0
        %1817 = vst.msk [vmem:[%s707 + $0x2] sm:$0x1] %vm1096, %v1735
        %1818 = vst.msk [vmem:[%s714 + $0x2] sm:$0x1] %vm1096, %v1815
        %v1819 = vld [vmem:[%s613 + $0x3] sm:$0x1]
        %s1820 = scalar_lea.vmem %s628, 12 [#allocation7]
        %v1821 = vld [vmem:[%s1820] sm:$0xf]
        %v1823 = vsel %vm724, %v1821, 0
        %1825 = vmatpush.msra.mxu0 0.0
        %1826 = vmatpush.msra.mxu0 0.0
        %1827 = vmatpush.msra.mxu0 0.0
        %1828 = vmatpush.msra.mxu0 0.0
        %1829 = vmatpush.msra.mxu0 0.0
        %1830 = vmatpush.msra.mxu0 0.0
        %1831 = vmatpush.msra.mxu0 0.0
        %1832 = vmatpush.msra.mxu0 0.0
        %1833 = vmatpush.msra.mxu0 0.0
        %1834 = vmatpush.msra.mxu0 0.0
        %1835 = vmatpush.msra.mxu0 0.0
        %1836 = vmatpush.msra.mxu0 0.0
        %1837 = vmatpush.msra.mxu0 0.0
        %1838 = vmatpush.msra.mxu0 0.0
        %1839 = vmatpush.msra.mxu0 %v717
        %1840 = vmatpush.msra.mxu0 %v716
        %1841 = vmatmul.f32.gmra.mxu0 %v1823
        %v1842 = vpop.f32.mrf.mxu0
        %v1843 = vadd.f32 0.0, %v1842
        %1844 = vdwg.mxu0
        %v1845 = vld [vmem:[%s3] sm:$0xff]
        %v1846 = vld [vmem:[%s3 + $0x8] sm:$0xff]
        %v1847 = vld [vmem:[%s3 + $0x10] sm:$0xff]
        %v1848 = vld [vmem:[%s3 + $0x18] sm:$0xff]
        %v1849 = vld [vmem:[%s4] sm:$0x1]
        %v1851 = vsel %vm753, %v1819, 0
        %v1854 = vsel %vm753, %v1845, 0
        %v1857 = vsel %vm753, %v1846, 0
        %v1860 = vsel %vm753, %v1847, 0
        %v1863 = vsel %vm753, %v1848, 0
        %1865 = vmatpush.xpose.msra.mxu0 0.0
        %1866 = vmatpush.xpose.msra.mxu0 0.0
        %1867 = vmatpush.xpose.msra.mxu0 0.0
        %1868 = vmatpush.xpose.msra.mxu0 0.0
        %1869 = vmatpush.xpose.msra.mxu0 0.0
        %1870 = vmatpush.xpose.msra.mxu0 0.0
        %1871 = vmatpush.xpose.msra.mxu0 0.0
        %1872 = vmatpush.xpose.msra.mxu0 0.0
        %1873 = vmatpush.xpose.msra.mxu0 0.0
        %1874 = vmatpush.xpose.msra.mxu0 0.0
        %1875 = vmatpush.xpose.msra.mxu0 0.0
        %1876 = vmatpush.xpose.msra.mxu0 0.0
        %1877 = vmatpush.xpose.msra.mxu0 %v1863
        %1878 = vmatpush.xpose.msra.mxu0 %v1860
        %1879 = vmatpush.xpose.msra.mxu0 %v1857
        %1880 = vmatpush.xpose.msra.mxu0 %v1854
        %1881 = vmatmul.f32.gmra.mxu0 %v1851
        %v1882 = vpop.f32.mrf.mxu0
        %v1883 = vadd.f32 %v1849, %v1882
        %1884 = vdwg.mxu0
        %v1885 = vld [vmem:[#allocation8] sm:$0xff]
        %v1886 = vld [vmem:[#allocation8 + $0x8] sm:$0xff]
        %v1887 = vld [vmem:[#allocation8 + $0x10] sm:$0xff]
        %v1888 = vld [vmem:[#allocation8 + $0x18] sm:$0xff]
        %v1889 = vld [vmem:[%s6] sm:$0x1]
        %v1891 = vperm.slane %v1889, 0
        %v1894 = vsel %vm753, %v1843, 0
        %v1897 = vsel %vm753, %v1885, 0
        %v1900 = vsel %vm753, %v1886, 0
        %v1903 = vsel %vm753, %v1887, 0
        %v1906 = vsel %vm753, %v1888, 0
        %1908 = vmatpush.xpose.msra.mxu0 0.0
        %1909 = vmatpush.xpose.msra.mxu0 0.0
        %1910 = vmatpush.xpose.msra.mxu0 0.0
        %1911 = vmatpush.xpose.msra.mxu0 0.0
        %1912 = vmatpush.xpose.msra.mxu0 0.0
        %1913 = vmatpush.xpose.msra.mxu0 0.0
        %1914 = vmatpush.xpose.msra.mxu0 0.0
        %1915 = vmatpush.xpose.msra.mxu0 0.0
        %1916 = vmatpush.xpose.msra.mxu0 0.0
        %1917 = vmatpush.xpose.msra.mxu0 0.0
        %1918 = vmatpush.xpose.msra.mxu0 0.0
        %1919 = vmatpush.xpose.msra.mxu0 0.0
        %1920 = vmatpush.xpose.msra.mxu0 %v1906
        %1921 = vmatpush.xpose.msra.mxu0 %v1903
        %1922 = vmatpush.xpose.msra.mxu0 %v1900
        %1923 = vmatpush.xpose.msra.mxu0 %v1897
        %1924 = vmatmul.f32.gmra.mxu0 %v1894
        %v1925 = vpop.f32.mrf.mxu0
        %v1926 = vadd.f32 %v1891, %v1925
        %1927 = vdwg.mxu0
        %v1928 = vld [vmem:[#allocation9] sm:$0xff]
        %v1929 = vld [vmem:[#allocation9 + $0x8] sm:$0xff]
        %v1930 = vld [vmem:[#allocation9 + $0x10] sm:$0xff]
        %v1931 = vld [vmem:[#allocation9 + $0x18] sm:$0xff]
        %v1932 = vld [vmem:[%s8] sm:$0x1]
        %v1934 = vperm.slane %v1932, 0
        %v1937 = vsel %vm753, %v1928, 0
        %v1940 = vsel %vm753, %v1929, 0
        %v1943 = vsel %vm753, %v1930, 0
        %v1946 = vsel %vm753, %v1931, 0
        %1948 = vmatpush.xpose.msra.mxu0 0.0
        %1949 = vmatpush.xpose.msra.mxu0 0.0
        %1950 = vmatpush.xpose.msra.mxu0 0.0
        %1951 = vmatpush.xpose.msra.mxu0 0.0
        %1952 = vmatpush.xpose.msra.mxu0 0.0
        %1953 = vmatpush.xpose.msra.mxu0 0.0
        %1954 = vmatpush.xpose.msra.mxu0 0.0
        %1955 = vmatpush.xpose.msra.mxu0 0.0
        %1956 = vmatpush.xpose.msra.mxu0 0.0
        %1957 = vmatpush.xpose.msra.mxu0 0.0
        %1958 = vmatpush.xpose.msra.mxu0 0.0
        %1959 = vmatpush.xpose.msra.mxu0 0.0
        %1960 = vmatpush.xpose.msra.mxu0 %v1946
        %1961 = vmatpush.xpose.msra.mxu0 %v1943
        %1962 = vmatpush.xpose.msra.mxu0 %v1940
        %1963 = vmatpush.xpose.msra.mxu0 %v1937
        %1964 = vmatmul.f32.gmra.mxu0 %v1894
        %v1965 = vpop.f32.mrf.mxu0
        %v1966 = vadd.f32 %v1934, %v1965
        %1967 = vdwg.mxu0
        %v1968 = vperm.slane %v1883, 0
        %v1969 = vmul.f32 %v1968, %v1926
        %v1970 = vmul.f32 %v1969, 0.35355338
        %v1972 = vsel %vm753, %v1970, 0
        %1974 = vmatpush.msra.mxu0 0.0
        %1975 = vmatpush.msra.mxu0 0.0
        %1976 = vmatpush.msra.mxu0 0.0
        %1977 = vmatpush.msra.mxu0 0.0
        %1978 = vmatpush.msra.mxu0 0.0
        %1979 = vmatpush.msra.mxu0 0.0
        %1980 = vmatpush.msra.mxu0 0.0
        %1981 = vmatpush.msra.mxu0 0.0
        %1982 = vmatpush.msra.mxu0 0.0
        %1983 = vmatpush.msra.mxu0 0.0
        %1984 = vmatpush.msra.mxu0 0.0
        %1985 = vmatpush.msra.mxu0 0.0
        %1986 = vmatpush.msra.mxu0 %v721
        %1987 = vmatpush.msra.mxu0 %v720
        %1988 = vmatpush.msra.mxu0 %v719
        %1989 = vmatpush.msra.mxu0 %v718
        %1990 = vmatmul.f32.gmra.mxu0 %v1972
        %v1991 = vpop.f32.mrf.mxu0
        %v1992 = vadd.f32 0.0, %v1991
        %1993 = vdwg.mxu0
        %v1994 = vsel %vm898, %v1992, -inf
        %v1995 = vrot.slane %v1994, 4
        %v1996 = vmax.f32 %v1994, %v1995
        %v1997 = vrot.slane %v1996, 2
        %v1998 = vmax.f32 %v1996, %v1997
        %v1999 = vrot.slane %v1998, 1
        %v2000 = vmax.f32 %v1998, %v1999
        %v2001 = vsub.f32 %v1992, %v2000
        %v2002 = vmul.f32 %v2001, 1.442695
        %v2003 = vpow.pop %v2002
        %v2004 = vsel %vm898, %v2003, 0.0
        %v2005 = vrot.slane %v2004, 4
        %v2006 = vadd.f32 %v2004, %v2005
        %v2007 = vrot.slane %v2006, 2
        %v2008 = vadd.f32 %v2006, %v2007
        %v2009 = vrot.slane %v2008, 1
        %v2010 = vadd.f32 %v2008, %v2009
        %v2011 = vrcp.pop %v2010
        %v2012 = vmul.f32 %v2010, %v2011
        %v2013 = vsub.f32 1.0, %v2012
        %v2014 = vmul.f32 %v2011, %v2013
        %v2015 = vadd.f32 %v2011, %v2014
        %vm2016 = vweird.f32 %v2010
        %vm2017 = vweird.f32 %v2011
        %vm2018 = vmor %vm2016, %vm2017
        %v2019 = vsel %vm2018, %v2011, %v2015
        %v2020 = vand.u32 2147483647, %v2010
        %vm2021 = vcmp.eq.f32.partialorder %v2020, 8.507059e+37
        %v2022 = vand.u32 %v2010, 2147483648
        %v2023 = vor.u32 1.1754944e-38, %v2022
        %v2024 = vsel %vm2021, %v2023, %v2019
        %v2025 = vmul.f32 %v2003, %v2024
        %v2027 = vsel %vm931, %v2025, 0
        %2029 = vmatpush.xpose.msra.mxu0 0.0
        %2030 = vmatpush.xpose.msra.mxu0 0.0
        %2031 = vmatpush.xpose.msra.mxu0 0.0
        %2032 = vmatpush.xpose.msra.mxu0 0.0
        %2033 = vmatpush.xpose.msra.mxu0 0.0
        %2034 = vmatpush.xpose.msra.mxu0 0.0
        %2035 = vmatpush.xpose.msra.mxu0 0.0
        %2036 = vmatpush.xpose.msra.mxu0 0.0
        %2037 = vmatpush.xpose.msra.mxu0 0.0
        %2038 = vmatpush.xpose.msra.mxu0 0.0
        %2039 = vmatpush.xpose.msra.mxu0 0.0
        %2040 = vmatpush.xpose.msra.mxu0 0.0
        %2041 = vmatpush.xpose.msra.mxu0 %v945
        %2042 = vmatpush.xpose.msra.mxu0 %v942
        %2043 = vmatpush.xpose.msra.mxu0 %v939
        %2044 = vmatpush.xpose.msra.mxu0 %v936
        %2045 = vmatmul.f32.gmra.mxu0 %v2027
        %v2046 = vpop.f32.mrf.mxu0
        %v2047 = vadd.f32 0.0, %v2046
        %2048 = vdwg.mxu0
        %v2049 = vmul.f32 %v2047, %v1966
        %v2050 = vsel %vm968, %v2049, 0.0
        %v2051 = vrot.slane %v2050, 4
        %v2052 = vadd.f32 %v2050, %v2051
        %v2053 = vrot.slane %v2052, 2
        %v2054 = vadd.f32 %v2052, %v2053
        %v2055 = vrot.slane %v2054, 1
        %v2056 = vadd.f32 %v2054, %v2055
        %v2057 = vld [vmem:[#allocation11] sm:$0xff]
        %v2058 = vld [vmem:[#allocation11 + $0x8] sm:$0xff]
        %v2059 = vld [vmem:[#allocation11 + $0x10] sm:$0xff]
        %v2060 = vld [vmem:[#allocation11 + $0x18] sm:$0xff]
        %v2061 = vld [vmem:[%s10] sm:$0x1]
        %v2063 = vsel %vm753, %v2056, 0
        %v2066 = vsel %vm753, %v2057, 0
        %v2069 = vsel %vm753, %v2058, 0
        %v2072 = vsel %vm753, %v2059, 0
        %v2075 = vsel %vm753, %v2060, 0
        %2077 = vmatpush.xpose.msra.mxu0 0.0
        %2078 = vmatpush.xpose.msra.mxu0 0.0
        %2079 = vmatpush.xpose.msra.mxu0 0.0
        %2080 = vmatpush.xpose.msra.mxu0 0.0
        %2081 = vmatpush.xpose.msra.mxu0 0.0
        %2082 = vmatpush.xpose.msra.mxu0 0.0
        %2083 = vmatpush.xpose.msra.mxu0 0.0
        %2084 = vmatpush.xpose.msra.mxu0 0.0
        %2085 = vmatpush.xpose.msra.mxu0 0.0
        %2086 = vmatpush.xpose.msra.mxu0 0.0
        %2087 = vmatpush.xpose.msra.mxu0 0.0
        %2088 = vmatpush.xpose.msra.mxu0 0.0
        %2089 = vmatpush.xpose.msra.mxu0 %v2075
        %2090 = vmatpush.xpose.msra.mxu0 %v2072
        %2091 = vmatpush.xpose.msra.mxu0 %v2069
        %2092 = vmatpush.xpose.msra.mxu0 %v2066
        %2093 = vmatmul.f32.gmra.mxu0 %v2063
        %v2094 = vpop.f32.mrf.mxu0
        %v2095 = vadd.f32 %v2061, %v2094
        %2096 = vdwg.mxu0
        %v2097 = vld [vmem:[#allocation12] sm:$0xff]
        %v2098 = vld [vmem:[#allocation12 + $0x8] sm:$0xff]
        %v2099 = vld [vmem:[#allocation12 + $0x10] sm:$0xff]
        %v2100 = vld [vmem:[#allocation12 + $0x18] sm:$0xff]
        %v2101 = vld [vmem:[%s12] sm:$0x1]
        %v2103 = vsel %vm753, %v2095, 0
        %v2106 = vsel %vm753, %v2097, 0
        %v2109 = vsel %vm753, %v2098, 0
        %v2112 = vsel %vm753, %v2099, 0
        %v2115 = vsel %vm753, %v2100, 0
        %2117 = vmatpush.xpose.msra.mxu0 0.0
        %2118 = vmatpush.xpose.msra.mxu0 0.0
        %2119 = vmatpush.xpose.msra.mxu0 0.0
        %2120 = vmatpush.xpose.msra.mxu0 0.0
        %2121 = vmatpush.xpose.msra.mxu0 0.0
        %2122 = vmatpush.xpose.msra.mxu0 0.0
        %2123 = vmatpush.xpose.msra.mxu0 0.0
        %2124 = vmatpush.xpose.msra.mxu0 0.0
        %2125 = vmatpush.xpose.msra.mxu0 0.0
        %2126 = vmatpush.xpose.msra.mxu0 0.0
        %2127 = vmatpush.xpose.msra.mxu0 0.0
        %2128 = vmatpush.xpose.msra.mxu0 0.0
        %2129 = vmatpush.xpose.msra.mxu0 %v2115
        %2130 = vmatpush.xpose.msra.mxu0 %v2112
        %2131 = vmatpush.xpose.msra.mxu0 %v2109
        %2132 = vmatpush.xpose.msra.mxu0 %v2106
        %2133 = vmatmul.f32.gmra.mxu0 %v2103
        %v2134 = vpop.f32.mrf.mxu0
        %v2135 = vadd.f32 %v2101, %v2134
        %2136 = vdwg.mxu0
        %v2137 = vld [vmem:[#allocation14] sm:$0xff]
        %v2138 = vld [vmem:[#allocation14 + $0x8] sm:$0xff]
        %v2139 = vld [vmem:[#allocation14 + $0x10] sm:$0xff]
        %v2140 = vld [vmem:[#allocation14 + $0x18] sm:$0xff]
        %v2141 = vld [vmem:[%s14] sm:$0x1]
        %v2143 = vsel %vm753, %v2135, 0
        %v2146 = vsel %vm753, %v2137, 0
        %v2149 = vsel %vm753, %v2138, 0
        %v2152 = vsel %vm753, %v2139, 0
        %v2155 = vsel %vm753, %v2140, 0
        %2157 = vmatpush.xpose.msra.mxu0 0.0
        %2158 = vmatpush.xpose.msra.mxu0 0.0
        %2159 = vmatpush.xpose.msra.mxu0 0.0
        %2160 = vmatpush.xpose.msra.mxu0 0.0
        %2161 = vmatpush.xpose.msra.mxu0 0.0
        %2162 = vmatpush.xpose.msra.mxu0 0.0
        %2163 = vmatpush.xpose.msra.mxu0 0.0
        %2164 = vmatpush.xpose.msra.mxu0 0.0
        %2165 = vmatpush.xpose.msra.mxu0 0.0
        %2166 = vmatpush.xpose.msra.mxu0 0.0
        %2167 = vmatpush.xpose.msra.mxu0 0.0
        %2168 = vmatpush.xpose.msra.mxu0 0.0
        %2169 = vmatpush.xpose.msra.mxu0 %v2155
        %2170 = vmatpush.xpose.msra.mxu0 %v2152
        %2171 = vmatpush.xpose.msra.mxu0 %v2149
        %2172 = vmatpush.xpose.msra.mxu0 %v2146
        %2173 = vmatmul.f32.gmra.mxu0 %v2143
        %v2174 = vpop.f32.mrf.mxu0
        %v2175 = vadd.f32 %v2141, %v2174
        %2176 = vdwg.mxu0
        %2177 = vst.msk [vmem:[%s707 + $0x3] sm:$0x1] %vm1096, %v2095
        %2178 = vst.msk [vmem:[%s714 + $0x3] sm:$0x1] %vm1096, %v2175
        %v2179 = vld [vmem:[%s613 + $0x4] sm:$0x1]
        %s2180 = scalar_lea.vmem %s628, 16 [#allocation7]
        %v2181 = vld [vmem:[%s2180] sm:$0xf]
        %v2183 = vsel %vm724, %v2181, 0
        %2185 = vmatpush.msra.mxu0 0.0
        %2186 = vmatpush.msra.mxu0 0.0
        %2187 = vmatpush.msra.mxu0 0.0
        %2188 = vmatpush.msra.mxu0 0.0
        %2189 = vmatpush.msra.mxu0 0.0
        %2190 = vmatpush.msra.mxu0 0.0
        %2191 = vmatpush.msra.mxu0 0.0
        %2192 = vmatpush.msra.mxu0 0.0
        %2193 = vmatpush.msra.mxu0 0.0
        %2194 = vmatpush.msra.mxu0 0.0
        %2195 = vmatpush.msra.mxu0 0.0
        %2196 = vmatpush.msra.mxu0 0.0
        %2197 = vmatpush.msra.mxu0 0.0
        %2198 = vmatpush.msra.mxu0 0.0
        %2199 = vmatpush.msra.mxu0 %v717
        %2200 = vmatpush.msra.mxu0 %v716
        %2201 = vmatmul.f32.gmra.mxu0 %v2183
        %v2202 = vpop.f32.mrf.mxu0
        %v2203 = vadd.f32 0.0, %v2202
        %2204 = vdwg.mxu0
        %v2205 = vld [vmem:[%s3] sm:$0xff]
        %v2206 = vld [vmem:[%s3 + $0x8] sm:$0xff]
        %v2207 = vld [vmem:[%s3 + $0x10] sm:$0xff]
        %v2208 = vld [vmem:[%s3 + $0x18] sm:$0xff]
        %v2209 = vld [vmem:[%s4] sm:$0x1]
        %v2211 = vsel %vm753, %v2179, 0
        %v2214 = vsel %vm753, %v2205, 0
        %v2217 = vsel %vm753, %v2206, 0
        %v2220 = vsel %vm753, %v2207, 0
        %v2223 = vsel %vm753, %v2208, 0
        %2225 = vmatpush.xpose.msra.mxu0 0.0
        %2226 = vmatpush.xpose.msra.mxu0 0.0
        %2227 = vmatpush.xpose.msra.mxu0 0.0
        %2228 = vmatpush.xpose.msra.mxu0 0.0
        %2229 = vmatpush.xpose.msra.mxu0 0.0
        %2230 = vmatpush.xpose.msra.mxu0 0.0
        %2231 = vmatpush.xpose.msra.mxu0 0.0
        %2232 = vmatpush.xpose.msra.mxu0 0.0
        %2233 = vmatpush.xpose.msra.mxu0 0.0
        %2234 = vmatpush.xpose.msra.mxu0 0.0
        %2235 = vmatpush.xpose.msra.mxu0 0.0
        %2236 = vmatpush.xpose.msra.mxu0 0.0
        %2237 = vmatpush.xpose.msra.mxu0 %v2223
        %2238 = vmatpush.xpose.msra.mxu0 %v2220
        %2239 = vmatpush.xpose.msra.mxu0 %v2217
        %2240 = vmatpush.xpose.msra.mxu0 %v2214
        %2241 = vmatmul.f32.gmra.mxu0 %v2211
        %v2242 = vpop.f32.mrf.mxu0
        %v2243 = vadd.f32 %v2209, %v2242
        %2244 = vdwg.mxu0
        %v2245 = vld [vmem:[#allocation8] sm:$0xff]
        %v2246 = vld [vmem:[#allocation8 + $0x8] sm:$0xff]
        %v2247 = vld [vmem:[#allocation8 + $0x10] sm:$0xff]
        %v2248 = vld [vmem:[#allocation8 + $0x18] sm:$0xff]
        %v2249 = vld [vmem:[%s6] sm:$0x1]
        %v2251 = vperm.slane %v2249, 0
        %v2254 = vsel %vm753, %v2203, 0
        %v2257 = vsel %vm753, %v2245, 0
        %v2260 = vsel %vm753, %v2246, 0
        %v2263 = vsel %vm753, %v2247, 0
        %v2266 = vsel %vm753, %v2248, 0
        %2268 = vmatpush.xpose.msra.mxu0 0.0
        %2269 = vmatpush.xpose.msra.mxu0 0.0
        %2270 = vmatpush.xpose.msra.mxu0 0.0
        %2271 = vmatpush.xpose.msra.mxu0 0.0
        %2272 = vmatpush.xpose.msra.mxu0 0.0
        %2273 = vmatpush.xpose.msra.mxu0 0.0
        %2274 = vmatpush.xpose.msra.mxu0 0.0
        %2275 = vmatpush.xpose.msra.mxu0 0.0
        %2276 = vmatpush.xpose.msra.mxu0 0.0
        %2277 = vmatpush.xpose.msra.mxu0 0.0
        %2278 = vmatpush.xpose.msra.mxu0 0.0
        %2279 = vmatpush.xpose.msra.mxu0 0.0
        %2280 = vmatpush.xpose.msra.mxu0 %v2266
        %2281 = vmatpush.xpose.msra.mxu0 %v2263
        %2282 = vmatpush.xpose.msra.mxu0 %v2260
        %2283 = vmatpush.xpose.msra.mxu0 %v2257
        %2284 = vmatmul.f32.gmra.mxu0 %v2254
        %v2285 = vpop.f32.mrf.mxu0
        %v2286 = vadd.f32 %v2251, %v2285
        %2287 = vdwg.mxu0
        %v2288 = vld [vmem:[#allocation9] sm:$0xff]
        %v2289 = vld [vmem:[#allocation9 + $0x8] sm:$0xff]
        %v2290 = vld [vmem:[#allocation9 + $0x10] sm:$0xff]
        %v2291 = vld [vmem:[#allocation9 + $0x18] sm:$0xff]
        %v2292 = vld [vmem:[%s8] sm:$0x1]
        %v2294 = vperm.slane %v2292, 0
        %v2297 = vsel %vm753, %v2288, 0
        %v2300 = vsel %vm753, %v2289, 0
        %v2303 = vsel %vm753, %v2290, 0
        %v2306 = vsel %vm753, %v2291, 0
        %2308 = vmatpush.xpose.msra.mxu0 0.0
        %2309 = vmatpush.xpose.msra.mxu0 0.0
        %2310 = vmatpush.xpose.msra.mxu0 0.0
        %2311 = vmatpush.xpose.msra.mxu0 0.0
        %2312 = vmatpush.xpose.msra.mxu0 0.0
        %2313 = vmatpush.xpose.msra.mxu0 0.0
        %2314 = vmatpush.xpose.msra.mxu0 0.0
        %2315 = vmatpush.xpose.msra.mxu0 0.0
        %2316 = vmatpush.xpose.msra.mxu0 0.0
        %2317 = vmatpush.xpose.msra.mxu0 0.0
        %2318 = vmatpush.xpose.msra.mxu0 0.0
        %2319 = vmatpush.xpose.msra.mxu0 0.0
        %2320 = vmatpush.xpose.msra.mxu0 %v2306
        %2321 = vmatpush.xpose.msra.mxu0 %v2303
        %2322 = vmatpush.xpose.msra.mxu0 %v2300
        %2323 = vmatpush.xpose.msra.mxu0 %v2297
        %2324 = vmatmul.f32.gmra.mxu0 %v2254
        %v2325 = vpop.f32.mrf.mxu0
        %v2326 = vadd.f32 %v2294, %v2325
        %2327 = vdwg.mxu0
        %v2328 = vperm.slane %v2243, 0
        %v2329 = vmul.f32 %v2328, %v2286
        %v2330 = vmul.f32 %v2329, 0.35355338
        %v2332 = vsel %vm753, %v2330, 0
        %2334 = vmatpush.msra.mxu0 0.0
        %2335 = vmatpush.msra.mxu0 0.0
        %2336 = vmatpush.msra.mxu0 0.0
        %2337 = vmatpush.msra.mxu0 0.0
        %2338 = vmatpush.msra.mxu0 0.0
        %2339 = vmatpush.msra.mxu0 0.0
        %2340 = vmatpush.msra.mxu0 0.0
        %2341 = vmatpush.msra.mxu0 0.0
        %2342 = vmatpush.msra.mxu0 0.0
        %2343 = vmatpush.msra.mxu0 0.0
        %2344 = vmatpush.msra.mxu0 0.0
        %2345 = vmatpush.msra.mxu0 0.0
        %2346 = vmatpush.msra.mxu0 %v721
        %2347 = vmatpush.msra.mxu0 %v720
        %2348 = vmatpush.msra.mxu0 %v719
        %2349 = vmatpush.msra.mxu0 %v718
        %2350 = vmatmul.f32.gmra.mxu0 %v2332
        %v2351 = vpop.f32.mrf.mxu0
        %v2352 = vadd.f32 0.0, %v2351
        %2353 = vdwg.mxu0
        %v2354 = vsel %vm898, %v2352, -inf
        %v2355 = vrot.slane %v2354, 4
        %v2356 = vmax.f32 %v2354, %v2355
        %v2357 = vrot.slane %v2356, 2
        %v2358 = vmax.f32 %v2356, %v2357
        %v2359 = vrot.slane %v2358, 1
        %v2360 = vmax.f32 %v2358, %v2359
        %v2361 = vsub.f32 %v2352, %v2360
        %v2362 = vmul.f32 %v2361, 1.442695
        %v2363 = vpow.pop %v2362
        %v2364 = vsel %vm898, %v2363, 0.0
        %v2365 = vrot.slane %v2364, 4
        %v2366 = vadd.f32 %v2364, %v2365
        %v2367 = vrot.slane %v2366, 2
        %v2368 = vadd.f32 %v2366, %v2367
        %v2369 = vrot.slane %v2368, 1
        %v2370 = vadd.f32 %v2368, %v2369
        %v2371 = vrcp.pop %v2370
        %v2372 = vmul.f32 %v2370, %v2371
        %v2373 = vsub.f32 1.0, %v2372
        %v2374 = vmul.f32 %v2371, %v2373
        %v2375 = vadd.f32 %v2371, %v2374
        %vm2376 = vweird.f32 %v2370
        %vm2377 = vweird.f32 %v2371
        %vm2378 = vmor %vm2376, %vm2377
        %v2379 = vsel %vm2378, %v2371, %v2375
        %v2380 = vand.u32 2147483647, %v2370
        %vm2381 = vcmp.eq.f32.partialorder %v2380, 8.507059e+37
        %v2382 = vand.u32 %v2370, 2147483648
        %v2383 = vor.u32 1.1754944e-38, %v2382
        %v2384 = vsel %vm2381, %v2383, %v2379
        %v2385 = vmul.f32 %v2363, %v2384
        %v2387 = vsel %vm931, %v2385, 0
        %2389 = vmatpush.xpose.msra.mxu0 0.0
        %2390 = vmatpush.xpose.msra.mxu0 0.0
        %2391 = vmatpush.xpose.msra.mxu0 0.0
        %2392 = vmatpush.xpose.msra.mxu0 0.0
        %2393 = vmatpush.xpose.msra.mxu0 0.0
        %2394 = vmatpush.xpose.msra.mxu0 0.0
        %2395 = vmatpush.xpose.msra.mxu0 0.0
        %2396 = vmatpush.xpose.msra.mxu0 0.0
        %2397 = vmatpush.xpose.msra.mxu0 0.0
        %2398 = vmatpush.xpose.msra.mxu0 0.0
        %2399 = vmatpush.xpose.msra.mxu0 0.0
        %2400 = vmatpush.xpose.msra.mxu0 0.0
        %2401 = vmatpush.xpose.msra.mxu0 %v945
        %2402 = vmatpush.xpose.msra.mxu0 %v942
        %2403 = vmatpush.xpose.msra.mxu0 %v939
        %2404 = vmatpush.xpose.msra.mxu0 %v936
        %2405 = vmatmul.f32.gmra.mxu0 %v2387
        %v2406 = vpop.f32.mrf.mxu0
        %v2407 = vadd.f32 0.0, %v2406
        %2408 = vdwg.mxu0
        %v2409 = vmul.f32 %v2407, %v2326
        %v2410 = vsel %vm968, %v2409, 0.0
        %v2411 = vrot.slane %v2410, 4
        %v2412 = vadd.f32 %v2410, %v2411
        %v2413 = vrot.slane %v2412, 2
        %v2414 = vadd.f32 %v2412, %v2413
        %v2415 = vrot.slane %v2414, 1
        %v2416 = vadd.f32 %v2414, %v2415
        %v2417 = vld [vmem:[#allocation11] sm:$0xff]
        %v2418 = vld [vmem:[#allocation11 + $0x8] sm:$0xff]
        %v2419 = vld [vmem:[#allocation11 + $0x10] sm:$0xff]
        %v2420 = vld [vmem:[#allocation11 + $0x18] sm:$0xff]
        %v2421 = vld [vmem:[%s10] sm:$0x1]
        %v2423 = vsel %vm753, %v2416, 0
        %v2426 = vsel %vm753, %v2417, 0
        %v2429 = vsel %vm753, %v2418, 0
        %v2432 = vsel %vm753, %v2419, 0
        %v2435 = vsel %vm753, %v2420, 0
        %2437 = vmatpush.xpose.msra.mxu0 0.0
        %2438 = vmatpush.xpose.msra.mxu0 0.0
        %2439 = vmatpush.xpose.msra.mxu0 0.0
        %2440 = vmatpush.xpose.msra.mxu0 0.0
        %2441 = vmatpush.xpose.msra.mxu0 0.0
        %2442 = vmatpush.xpose.msra.mxu0 0.0
        %2443 = vmatpush.xpose.msra.mxu0 0.0
        %2444 = vmatpush.xpose.msra.mxu0 0.0
        %2445 = vmatpush.xpose.msra.mxu0 0.0
        %2446 = vmatpush.xpose.msra.mxu0 0.0
        %2447 = vmatpush.xpose.msra.mxu0 0.0
        %2448 = vmatpush.xpose.msra.mxu0 0.0
        %2449 = vmatpush.xpose.msra.mxu0 %v2435
        %2450 = vmatpush.xpose.msra.mxu0 %v2432
        %2451 = vmatpush.xpose.msra.mxu0 %v2429
        %2452 = vmatpush.xpose.msra.mxu0 %v2426
        %2453 = vmatmul.f32.gmra.mxu0 %v2423
        %v2454 = vpop.f32.mrf.mxu0
        %v2455 = vadd.f32 %v2421, %v2454
        %2456 = vdwg.mxu0
        %v2457 = vld [vmem:[#allocation12] sm:$0xff]
        %v2458 = vld [vmem:[#allocation12 + $0x8] sm:$0xff]
        %v2459 = vld [vmem:[#allocation12 + $0x10] sm:$0xff]
        %v2460 = vld [vmem:[#allocation12 + $0x18] sm:$0xff]
        %v2461 = vld [vmem:[%s12] sm:$0x1]
        %v2463 = vsel %vm753, %v2455, 0
        %v2466 = vsel %vm753, %v2457, 0
        %v2469 = vsel %vm753, %v2458, 0
        %v2472 = vsel %vm753, %v2459, 0
        %v2475 = vsel %vm753, %v2460, 0
        %2477 = vmatpush.xpose.msra.mxu0 0.0
        %2478 = vmatpush.xpose.msra.mxu0 0.0
        %2479 = vmatpush.xpose.msra.mxu0 0.0
        %2480 = vmatpush.xpose.msra.mxu0 0.0
        %2481 = vmatpush.xpose.msra.mxu0 0.0
        %2482 = vmatpush.xpose.msra.mxu0 0.0
        %2483 = vmatpush.xpose.msra.mxu0 0.0
        %2484 = vmatpush.xpose.msra.mxu0 0.0
        %2485 = vmatpush.xpose.msra.mxu0 0.0
        %2486 = vmatpush.xpose.msra.mxu0 0.0
        %2487 = vmatpush.xpose.msra.mxu0 0.0
        %2488 = vmatpush.xpose.msra.mxu0 0.0
        %2489 = vmatpush.xpose.msra.mxu0 %v2475
        %2490 = vmatpush.xpose.msra.mxu0 %v2472
        %2491 = vmatpush.xpose.msra.mxu0 %v2469
        %2492 = vmatpush.xpose.msra.mxu0 %v2466
        %2493 = vmatmul.f32.gmra.mxu0 %v2463
        %v2494 = vpop.f32.mrf.mxu0
        %v2495 = vadd.f32 %v2461, %v2494
        %2496 = vdwg.mxu0
        %v2497 = vld [vmem:[#allocation14] sm:$0xff]
        %v2498 = vld [vmem:[#allocation14 + $0x8] sm:$0xff]
        %v2499 = vld [vmem:[#allocation14 + $0x10] sm:$0xff]
        %v2500 = vld [vmem:[#allocation14 + $0x18] sm:$0xff]
        %v2501 = vld [vmem:[%s14] sm:$0x1]
        %v2503 = vsel %vm753, %v2495, 0
        %v2506 = vsel %vm753, %v2497, 0
        %v2509 = vsel %vm753, %v2498, 0
        %v2512 = vsel %vm753, %v2499, 0
        %v2515 = vsel %vm753, %v2500, 0
        %2517 = vmatpush.xpose.msra.mxu0 0.0
        %2518 = vmatpush.xpose.msra.mxu0 0.0
        %2519 = vmatpush.xpose.msra.mxu0 0.0
        %2520 = vmatpush.xpose.msra.mxu0 0.0
        %2521 = vmatpush.xpose.msra.mxu0 0.0
        %2522 = vmatpush.xpose.msra.mxu0 0.0
        %2523 = vmatpush.xpose.msra.mxu0 0.0
        %2524 = vmatpush.xpose.msra.mxu0 0.0
        %2525 = vmatpush.xpose.msra.mxu0 0.0
        %2526 = vmatpush.xpose.msra.mxu0 0.0
        %2527 = vmatpush.xpose.msra.mxu0 0.0
        %2528 = vmatpush.xpose.msra.mxu0 0.0
        %2529 = vmatpush.xpose.msra.mxu0 %v2515
        %2530 = vmatpush.xpose.msra.mxu0 %v2512
        %2531 = vmatpush.xpose.msra.mxu0 %v2509
        %2532 = vmatpush.xpose.msra.mxu0 %v2506
        %2533 = vmatmul.f32.gmra.mxu0 %v2503
        %v2534 = vpop.f32.mrf.mxu0
        %v2535 = vadd.f32 %v2501, %v2534
        %2536 = vdwg.mxu0
        %2537 = vst.msk [vmem:[%s707 + $0x4] sm:$0x1] %vm1096, %v2455
        %2538 = vst.msk [vmem:[%s714 + $0x4] sm:$0x1] %vm1096, %v2535
        %v2539 = vld [vmem:[%s613 + $0x5] sm:$0x1]
        %s2540 = scalar_lea.vmem %s628, 20 [#allocation7]
        %v2541 = vld [vmem:[%s2540] sm:$0xf]
        %v2543 = vsel %vm724, %v2541, 0
        %2545 = vmatpush.msra.mxu0 0.0
        %2546 = vmatpush.msra.mxu0 0.0
        %2547 = vmatpush.msra.mxu0 0.0
        %2548 = vmatpush.msra.mxu0 0.0
        %2549 = vmatpush.msra.mxu0 0.0
        %2550 = vmatpush.msra.mxu0 0.0
        %2551 = vmatpush.msra.mxu0 0.0
        %2552 = vmatpush.msra.mxu0 0.0
        %2553 = vmatpush.msra.mxu0 0.0
        %2554 = vmatpush.msra.mxu0 0.0
        %2555 = vmatpush.msra.mxu0 0.0
        %2556 = vmatpush.msra.mxu0 0.0
        %2557 = vmatpush.msra.mxu0 0.0
        %2558 = vmatpush.msra.mxu0 0.0
        %2559 = vmatpush.msra.mxu0 %v717
        %2560 = vmatpush.msra.mxu0 %v716
        %2561 = vmatmul.f32.gmra.mxu0 %v2543
        %v2562 = vpop.f32.mrf.mxu0
        %v2563 = vadd.f32 0.0, %v2562
        %2564 = vdwg.mxu0
        %v2565 = vld [vmem:[%s3] sm:$0xff]
        %v2566 = vld [vmem:[%s3 + $0x8] sm:$0xff]
        %v2567 = vld [vmem:[%s3 + $0x10] sm:$0xff]
        %v2568 = vld [vmem:[%s3 + $0x18] sm:$0xff]
        %v2569 = vld [vmem:[%s4] sm:$0x1]
        %v2571 = vsel %vm753, %v2539, 0
        %v2574 = vsel %vm753, %v2565, 0
        %v2577 = vsel %vm753, %v2566, 0
        %v2580 = vsel %vm753, %v2567, 0
        %v2583 = vsel %vm753, %v2568, 0
        %2585 = vmatpush.xpose.msra.mxu0 0.0
        %2586 = vmatpush.xpose.msra.mxu0 0.0
        %2587 = vmatpush.xpose.msra.mxu0 0.0
        %2588 = vmatpush.xpose.msra.mxu0 0.0
        %2589 = vmatpush.xpose.msra.mxu0 0.0
        %2590 = vmatpush.xpose.msra.mxu0 0.0
        %2591 = vmatpush.xpose.msra.mxu0 0.0
        %2592 = vmatpush.xpose.msra.mxu0 0.0
        %2593 = vmatpush.xpose.msra.mxu0 0.0
        %2594 = vmatpush.xpose.msra.mxu0 0.0
        %2595 = vmatpush.xpose.msra.mxu0 0.0
        %2596 = vmatpush.xpose.msra.mxu0 0.0
        %2597 = vmatpush.xpose.msra.mxu0 %v2583
        %2598 = vmatpush.xpose.msra.mxu0 %v2580
        %2599 = vmatpush.xpose.msra.mxu0 %v2577
        %2600 = vmatpush.xpose.msra.mxu0 %v2574
        %2601 = vmatmul.f32.gmra.mxu0 %v2571
        %v2602 = vpop.f32.mrf.mxu0
        %v2603 = vadd.f32 %v2569, %v2602
        %2604 = vdwg.mxu0
        %v2605 = vld [vmem:[#allocation8] sm:$0xff]
        %v2606 = vld [vmem:[#allocation8 + $0x8] sm:$0xff]
        %v2607 = vld [vmem:[#allocation8 + $0x10] sm:$0xff]
        %v2608 = vld [vmem:[#allocation8 + $0x18] sm:$0xff]
        %v2609 = vld [vmem:[%s6] sm:$0x1]
        %v2611 = vperm.slane %v2609, 0
        %v2614 = vsel %vm753, %v2563, 0
        %v2617 = vsel %vm753, %v2605, 0
        %v2620 = vsel %vm753, %v2606, 0
        %v2623 = vsel %vm753, %v2607, 0
        %v2626 = vsel %vm753, %v2608, 0
        %2628 = vmatpush.xpose.msra.mxu0 0.0
        %2629 = vmatpush.xpose.msra.mxu0 0.0
        %2630 = vmatpush.xpose.msra.mxu0 0.0
        %2631 = vmatpush.xpose.msra.mxu0 0.0
        %2632 = vmatpush.xpose.msra.mxu0 0.0
        %2633 = vmatpush.xpose.msra.mxu0 0.0
        %2634 = vmatpush.xpose.msra.mxu0 0.0
        %2635 = vmatpush.xpose.msra.mxu0 0.0
        %2636 = vmatpush.xpose.msra.mxu0 0.0
        %2637 = vmatpush.xpose.msra.mxu0 0.0
        %2638 = vmatpush.xpose.msra.mxu0 0.0
        %2639 = vmatpush.xpose.msra.mxu0 0.0
        %2640 = vmatpush.xpose.msra.mxu0 %v2626
        %2641 = vmatpush.xpose.msra.mxu0 %v2623
        %2642 = vmatpush.xpose.msra.mxu0 %v2620
        %2643 = vmatpush.xpose.msra.mxu0 %v2617
        %2644 = vmatmul.f32.gmra.mxu0 %v2614
        %v2645 = vpop.f32.mrf.mxu0
        %v2646 = vadd.f32 %v2611, %v2645
        %2647 = vdwg.mxu0
        %v2648 = vld [vmem:[#allocation9] sm:$0xff]
        %v2649 = vld [vmem:[#allocation9 + $0x8] sm:$0xff]
        %v2650 = vld [vmem:[#allocation9 + $0x10] sm:$0xff]
        %v2651 = vld [vmem:[#allocation9 + $0x18] sm:$0xff]
        %v2652 = vld [vmem:[%s8] sm:$0x1]
        %v2654 = vperm.slane %v2652, 0
        %v2657 = vsel %vm753, %v2648, 0
        %v2660 = vsel %vm753, %v2649, 0
        %v2663 = vsel %vm753, %v2650, 0
        %v2666 = vsel %vm753, %v2651, 0
        %2668 = vmatpush.xpose.msra.mxu0 0.0
        %2669 = vmatpush.xpose.msra.mxu0 0.0
        %2670 = vmatpush.xpose.msra.mxu0 0.0
        %2671 = vmatpush.xpose.msra.mxu0 0.0
        %2672 = vmatpush.xpose.msra.mxu0 0.0
        %2673 = vmatpush.xpose.msra.mxu0 0.0
        %2674 = vmatpush.xpose.msra.mxu0 0.0
        %2675 = vmatpush.xpose.msra.mxu0 0.0
        %2676 = vmatpush.xpose.msra.mxu0 0.0
        %2677 = vmatpush.xpose.msra.mxu0 0.0
        %2678 = vmatpush.xpose.msra.mxu0 0.0
        %2679 = vmatpush.xpose.msra.mxu0 0.0
        %2680 = vmatpush.xpose.msra.mxu0 %v2666
        %2681 = vmatpush.xpose.msra.mxu0 %v2663
        %2682 = vmatpush.xpose.msra.mxu0 %v2660
        %2683 = vmatpush.xpose.msra.mxu0 %v2657
        %2684 = vmatmul.f32.gmra.mxu0 %v2614
        %v2685 = vpop.f32.mrf.mxu0
        %v2686 = vadd.f32 %v2654, %v2685
        %2687 = vdwg.mxu0
        %v2688 = vperm.slane %v2603, 0
        %v2689 = vmul.f32 %v2688, %v2646
        %v2690 = vmul.f32 %v2689, 0.35355338
        %v2692 = vsel %vm753, %v2690, 0
        %2694 = vmatpush.msra.mxu0 0.0
        %2695 = vmatpush.msra.mxu0 0.0
        %2696 = vmatpush.msra.mxu0 0.0
        %2697 = vmatpush.msra.mxu0 0.0
        %2698 = vmatpush.msra.mxu0 0.0
        %2699 = vmatpush.msra.mxu0 0.0
        %2700 = vmatpush.msra.mxu0 0.0
        %2701 = vmatpush.msra.mxu0 0.0
        %2702 = vmatpush.msra.mxu0 0.0
        %2703 = vmatpush.msra.mxu0 0.0
        %2704 = vmatpush.msra.mxu0 0.0
        %2705 = vmatpush.msra.mxu0 0.0
        %2706 = vmatpush.msra.mxu0 %v721
        %2707 = vmatpush.msra.mxu0 %v720
        %2708 = vmatpush.msra.mxu0 %v719
        %2709 = vmatpush.msra.mxu0 %v718
        %2710 = vmatmul.f32.gmra.mxu0 %v2692
        %v2711 = vpop.f32.mrf.mxu0
        %v2712 = vadd.f32 0.0, %v2711
        %2713 = vdwg.mxu0
        %v2714 = vsel %vm898, %v2712, -inf
        %v2715 = vrot.slane %v2714, 4
        %v2716 = vmax.f32 %v2714, %v2715
        %v2717 = vrot.slane %v2716, 2
        %v2718 = vmax.f32 %v2716, %v2717
        %v2719 = vrot.slane %v2718, 1
        %v2720 = vmax.f32 %v2718, %v2719
        %v2721 = vsub.f32 %v2712, %v2720
        %v2722 = vmul.f32 %v2721, 1.442695
        %v2723 = vpow.pop %v2722
        %v2724 = vsel %vm898, %v2723, 0.0
        %v2725 = vrot.slane %v2724, 4
        %v2726 = vadd.f32 %v2724, %v2725
        %v2727 = vrot.slane %v2726, 2
        %v2728 = vadd.f32 %v2726, %v2727
        %v2729 = vrot.slane %v2728, 1
        %v2730 = vadd.f32 %v2728, %v2729
        %v2731 = vrcp.pop %v2730
        %v2732 = vmul.f32 %v2730, %v2731
        %v2733 = vsub.f32 1.0, %v2732
        %v2734 = vmul.f32 %v2731, %v2733
        %v2735 = vadd.f32 %v2731, %v2734
        %vm2736 = vweird.f32 %v2730
        %vm2737 = vweird.f32 %v2731
        %vm2738 = vmor %vm2736, %vm2737
        %v2739 = vsel %vm2738, %v2731, %v2735
        %v2740 = vand.u32 2147483647, %v2730
        %vm2741 = vcmp.eq.f32.partialorder %v2740, 8.507059e+37
        %v2742 = vand.u32 %v2730, 2147483648
        %v2743 = vor.u32 1.1754944e-38, %v2742
        %v2744 = vsel %vm2741, %v2743, %v2739
        %v2745 = vmul.f32 %v2723, %v2744
        %v2747 = vsel %vm931, %v2745, 0
        %2749 = vmatpush.xpose.msra.mxu0 0.0
        %2750 = vmatpush.xpose.msra.mxu0 0.0
        %2751 = vmatpush.xpose.msra.mxu0 0.0
        %2752 = vmatpush.xpose.msra.mxu0 0.0
        %2753 = vmatpush.xpose.msra.mxu0 0.0
        %2754 = vmatpush.xpose.msra.mxu0 0.0
        %2755 = vmatpush.xpose.msra.mxu0 0.0
        %2756 = vmatpush.xpose.msra.mxu0 0.0
        %2757 = vmatpush.xpose.msra.mxu0 0.0
        %2758 = vmatpush.xpose.msra.mxu0 0.0
        %2759 = vmatpush.xpose.msra.mxu0 0.0
        %2760 = vmatpush.xpose.msra.mxu0 0.0
        %2761 = vmatpush.xpose.msra.mxu0 %v945
        %2762 = vmatpush.xpose.msra.mxu0 %v942
        %2763 = vmatpush.xpose.msra.mxu0 %v939
        %2764 = vmatpush.xpose.msra.mxu0 %v936
        %2765 = vmatmul.f32.gmra.mxu0 %v2747
        %v2766 = vpop.f32.mrf.mxu0
        %v2767 = vadd.f32 0.0, %v2766
        %2768 = vdwg.mxu0
        %v2769 = vmul.f32 %v2767, %v2686
        %v2770 = vsel %vm968, %v2769, 0.0
        %v2771 = vrot.slane %v2770, 4
        %v2772 = vadd.f32 %v2770, %v2771
        %v2773 = vrot.slane %v2772, 2
        %v2774 = vadd.f32 %v2772, %v2773
        %v2775 = vrot.slane %v2774, 1
        %v2776 = vadd.f32 %v2774, %v2775
        %v2777 = vld [vmem:[#allocation11] sm:$0xff]
        %v2778 = vld [vmem:[#allocation11 + $0x8] sm:$0xff]
        %v2779 = vld [vmem:[#allocation11 + $0x10] sm:$0xff]
        %v2780 = vld [vmem:[#allocation11 + $0x18] sm:$0xff]
        %v2781 = vld [vmem:[%s10] sm:$0x1]
        %v2783 = vsel %vm753, %v2776, 0
        %v2786 = vsel %vm753, %v2777, 0
        %v2789 = vsel %vm753, %v2778, 0
        %v2792 = vsel %vm753, %v2779, 0
        %v2795 = vsel %vm753, %v2780, 0
        %2797 = vmatpush.xpose.msra.mxu0 0.0
        %2798 = vmatpush.xpose.msra.mxu0 0.0
        %2799 = vmatpush.xpose.msra.mxu0 0.0
        %2800 = vmatpush.xpose.msra.mxu0 0.0
        %2801 = vmatpush.xpose.msra.mxu0 0.0
        %2802 = vmatpush.xpose.msra.mxu0 0.0
        %2803 = vmatpush.xpose.msra.mxu0 0.0
        %2804 = vmatpush.xpose.msra.mxu0 0.0
        %2805 = vmatpush.xpose.msra.mxu0 0.0
        %2806 = vmatpush.xpose.msra.mxu0 0.0
        %2807 = vmatpush.xpose.msra.mxu0 0.0
        %2808 = vmatpush.xpose.msra.mxu0 0.0
        %2809 = vmatpush.xpose.msra.mxu0 %v2795
        %2810 = vmatpush.xpose.msra.mxu0 %v2792
        %2811 = vmatpush.xpose.msra.mxu0 %v2789
        %2812 = vmatpush.xpose.msra.mxu0 %v2786
        %2813 = vmatmul.f32.gmra.mxu0 %v2783
        %v2814 = vpop.f32.mrf.mxu0
        %v2815 = vadd.f32 %v2781, %v2814
        %2816 = vdwg.mxu0
        %v2817 = vld [vmem:[#allocation12] sm:$0xff]
        %v2818 = vld [vmem:[#allocation12 + $0x8] sm:$0xff]
        %v2819 = vld [vmem:[#allocation12 + $0x10] sm:$0xff]
        %v2820 = vld [vmem:[#allocation12 + $0x18] sm:$0xff]
        %v2821 = vld [vmem:[%s12] sm:$0x1]
        %v2823 = vsel %vm753, %v2815, 0
        %v2826 = vsel %vm753, %v2817, 0
        %v2829 = vsel %vm753, %v2818, 0
        %v2832 = vsel %vm753, %v2819, 0
        %v2835 = vsel %vm753, %v2820, 0
        %2837 = vmatpush.xpose.msra.mxu0 0.0
        %2838 = vmatpush.xpose.msra.mxu0 0.0
        %2839 = vmatpush.xpose.msra.mxu0 0.0
        %2840 = vmatpush.xpose.msra.mxu0 0.0
        %2841 = vmatpush.xpose.msra.mxu0 0.0
        %2842 = vmatpush.xpose.msra.mxu0 0.0
        %2843 = vmatpush.xpose.msra.mxu0 0.0
        %2844 = vmatpush.xpose.msra.mxu0 0.0
        %2845 = vmatpush.xpose.msra.mxu0 0.0
        %2846 = vmatpush.xpose.msra.mxu0 0.0
        %2847 = vmatpush.xpose.msra.mxu0 0.0
        %2848 = vmatpush.xpose.msra.mxu0 0.0
        %2849 = vmatpush.xpose.msra.mxu0 %v2835
        %2850 = vmatpush.xpose.msra.mxu0 %v2832
        %2851 = vmatpush.xpose.msra.mxu0 %v2829
        %2852 = vmatpush.xpose.msra.mxu0 %v2826
        %2853 = vmatmul.f32.gmra.mxu0 %v2823
        %v2854 = vpop.f32.mrf.mxu0
        %v2855 = vadd.f32 %v2821, %v2854
        %2856 = vdwg.mxu0
        %v2857 = vld [vmem:[#allocation14] sm:$0xff]
        %v2858 = vld [vmem:[#allocation14 + $0x8] sm:$0xff]
        %v2859 = vld [vmem:[#allocation14 + $0x10] sm:$0xff]
        %v2860 = vld [vmem:[#allocation14 + $0x18] sm:$0xff]
        %v2861 = vld [vmem:[%s14] sm:$0x1]
        %v2863 = vsel %vm753, %v2855, 0
        %v2866 = vsel %vm753, %v2857, 0
        %v2869 = vsel %vm753, %v2858, 0
        %v2872 = vsel %vm753, %v2859, 0
        %v2875 = vsel %vm753, %v2860, 0
        %2877 = vmatpush.xpose.msra.mxu0 0.0
        %2878 = vmatpush.xpose.msra.mxu0 0.0
        %2879 = vmatpush.xpose.msra.mxu0 0.0
        %2880 = vmatpush.xpose.msra.mxu0 0.0
        %2881 = vmatpush.xpose.msra.mxu0 0.0
        %2882 = vmatpush.xpose.msra.mxu0 0.0
        %2883 = vmatpush.xpose.msra.mxu0 0.0
        %2884 = vmatpush.xpose.msra.mxu0 0.0
        %2885 = vmatpush.xpose.msra.mxu0 0.0
        %2886 = vmatpush.xpose.msra.mxu0 0.0
        %2887 = vmatpush.xpose.msra.mxu0 0.0
        %2888 = vmatpush.xpose.msra.mxu0 0.0
        %2889 = vmatpush.xpose.msra.mxu0 %v2875
        %2890 = vmatpush.xpose.msra.mxu0 %v2872
        %2891 = vmatpush.xpose.msra.mxu0 %v2869
        %2892 = vmatpush.xpose.msra.mxu0 %v2866
        %2893 = vmatmul.f32.gmra.mxu0 %v2863
        %v2894 = vpop.f32.mrf.mxu0
        %v2895 = vadd.f32 %v2861, %v2894
        %2896 = vdwg.mxu0
        %2897 = vst.msk [vmem:[%s707 + $0x5] sm:$0x1] %vm1096, %v2815
        %2898 = vst.msk [vmem:[%s714 + $0x5] sm:$0x1] %vm1096, %v2895
        %v2899 = vld [vmem:[%s613 + $0x6] sm:$0x1]
        %s2900 = scalar_lea.vmem %s628, 24 [#allocation7]
        %v2901 = vld [vmem:[%s2900] sm:$0xf]
        %v2903 = vsel %vm724, %v2901, 0
        %2905 = vmatpush.msra.mxu0 0.0
        %2906 = vmatpush.msra.mxu0 0.0
        %2907 = vmatpush.msra.mxu0 0.0
        %2908 = vmatpush.msra.mxu0 0.0
        %2909 = vmatpush.msra.mxu0 0.0
        %2910 = vmatpush.msra.mxu0 0.0
        %2911 = vmatpush.msra.mxu0 0.0
        %2912 = vmatpush.msra.mxu0 0.0
        %2913 = vmatpush.msra.mxu0 0.0
        %2914 = vmatpush.msra.mxu0 0.0
        %2915 = vmatpush.msra.mxu0 0.0
        %2916 = vmatpush.msra.mxu0 0.0
        %2917 = vmatpush.msra.mxu0 0.0
        %2918 = vmatpush.msra.mxu0 0.0
        %2919 = vmatpush.msra.mxu0 %v717
        %2920 = vmatpush.msra.mxu0 %v716
        %2921 = vmatmul.f32.gmra.mxu0 %v2903
        %v2922 = vpop.f32.mrf.mxu0
        %v2923 = vadd.f32 0.0, %v2922
        %2924 = vdwg.mxu0
        %v2925 = vld [vmem:[%s3] sm:$0xff]
        %v2926 = vld [vmem:[%s3 + $0x8] sm:$0xff]
        %v2927 = vld [vmem:[%s3 + $0x10] sm:$0xff]
        %v2928 = vld [vmem:[%s3 + $0x18] sm:$0xff]
        %v2929 = vld [vmem:[%s4] sm:$0x1]
        %v2931 = vsel %vm753, %v2899, 0
        %v2934 = vsel %vm753, %v2925, 0
        %v2937 = vsel %vm753, %v2926, 0
        %v2940 = vsel %vm753, %v2927, 0
        %v2943 = vsel %vm753, %v2928, 0
        %2945 = vmatpush.xpose.msra.mxu0 0.0
        %2946 = vmatpush.xpose.msra.mxu0 0.0
        %2947 = vmatpush.xpose.msra.mxu0 0.0
        %2948 = vmatpush.xpose.msra.mxu0 0.0
        %2949 = vmatpush.xpose.msra.mxu0 0.0
        %2950 = vmatpush.xpose.msra.mxu0 0.0
        %2951 = vmatpush.xpose.msra.mxu0 0.0
        %2952 = vmatpush.xpose.msra.mxu0 0.0
        %2953 = vmatpush.xpose.msra.mxu0 0.0
        %2954 = vmatpush.xpose.msra.mxu0 0.0
        %2955 = vmatpush.xpose.msra.mxu0 0.0
        %2956 = vmatpush.xpose.msra.mxu0 0.0
        %2957 = vmatpush.xpose.msra.mxu0 %v2943
        %2958 = vmatpush.xpose.msra.mxu0 %v2940
        %2959 = vmatpush.xpose.msra.mxu0 %v2937
        %2960 = vmatpush.xpose.msra.mxu0 %v2934
        %2961 = vmatmul.f32.gmra.mxu0 %v2931
        %v2962 = vpop.f32.mrf.mxu0
        %v2963 = vadd.f32 %v2929, %v2962
        %2964 = vdwg.mxu0
        %v2965 = vld [vmem:[#allocation8] sm:$0xff]
        %v2966 = vld [vmem:[#allocation8 + $0x8] sm:$0xff]
        %v2967 = vld [vmem:[#allocation8 + $0x10] sm:$0xff]
        %v2968 = vld [vmem:[#allocation8 + $0x18] sm:$0xff]
        %v2969 = vld [vmem:[%s6] sm:$0x1]
        %v2971 = vperm.slane %v2969, 0
        %v2974 = vsel %vm753, %v2923, 0
        %v2977 = vsel %vm753, %v2965, 0
        %v2980 = vsel %vm753, %v2966, 0
        %v2983 = vsel %vm753, %v2967, 0
        %v2986 = vsel %vm753, %v2968, 0
        %2988 = vmatpush.xpose.msra.mxu0 0.0
        %2989 = vmatpush.xpose.msra.mxu0 0.0
        %2990 = vmatpush.xpose.msra.mxu0 0.0
        %2991 = vmatpush.xpose.msra.mxu0 0.0
        %2992 = vmatpush.xpose.msra.mxu0 0.0
        %2993 = vmatpush.xpose.msra.mxu0 0.0
        %2994 = vmatpush.xpose.msra.mxu0 0.0
        %2995 = vmatpush.xpose.msra.mxu0 0.0
        %2996 = vmatpush.xpose.msra.mxu0 0.0
        %2997 = vmatpush.xpose.msra.mxu0 0.0
        %2998 = vmatpush.xpose.msra.mxu0 0.0
        %2999 = vmatpush.xpose.msra.mxu0 0.0
        %3000 = vmatpush.xpose.msra.mxu0 %v2986
        %3001 = vmatpush.xpose.msra.mxu0 %v2983
        %3002 = vmatpush.xpose.msra.mxu0 %v2980
        %3003 = vmatpush.xpose.msra.mxu0 %v2977
        %3004 = vmatmul.f32.gmra.mxu0 %v2974
        %v3005 = vpop.f32.mrf.mxu0
        %v3006 = vadd.f32 %v2971, %v3005
        %3007 = vdwg.mxu0
        %v3008 = vld [vmem:[#allocation9] sm:$0xff]
        %v3009 = vld [vmem:[#allocation9 + $0x8] sm:$0xff]
        %v3010 = vld [vmem:[#allocation9 + $0x10] sm:$0xff]
        %v3011 = vld [vmem:[#allocation9 + $0x18] sm:$0xff]
        %v3012 = vld [vmem:[%s8] sm:$0x1]
        %v3014 = vperm.slane %v3012, 0
        %v3017 = vsel %vm753, %v3008, 0
        %v3020 = vsel %vm753, %v3009, 0
        %v3023 = vsel %vm753, %v3010, 0
        %v3026 = vsel %vm753, %v3011, 0
        %3028 = vmatpush.xpose.msra.mxu0 0.0
        %3029 = vmatpush.xpose.msra.mxu0 0.0
        %3030 = vmatpush.xpose.msra.mxu0 0.0
        %3031 = vmatpush.xpose.msra.mxu0 0.0
        %3032 = vmatpush.xpose.msra.mxu0 0.0
        %3033 = vmatpush.xpose.msra.mxu0 0.0
        %3034 = vmatpush.xpose.msra.mxu0 0.0
        %3035 = vmatpush.xpose.msra.mxu0 0.0
        %3036 = vmatpush.xpose.msra.mxu0 0.0
        %3037 = vmatpush.xpose.msra.mxu0 0.0
        %3038 = vmatpush.xpose.msra.mxu0 0.0
        %3039 = vmatpush.xpose.msra.mxu0 0.0
        %3040 = vmatpush.xpose.msra.mxu0 %v3026
        %3041 = vmatpush.xpose.msra.mxu0 %v3023
        %3042 = vmatpush.xpose.msra.mxu0 %v3020
        %3043 = vmatpush.xpose.msra.mxu0 %v3017
        %3044 = vmatmul.f32.gmra.mxu0 %v2974
        %v3045 = vpop.f32.mrf.mxu0
        %v3046 = vadd.f32 %v3014, %v3045
        %3047 = vdwg.mxu0
        %v3048 = vperm.slane %v2963, 0
        %v3049 = vmul.f32 %v3048, %v3006
        %v3050 = vmul.f32 %v3049, 0.35355338
        %v3052 = vsel %vm753, %v3050, 0
        %3054 = vmatpush.msra.mxu0 0.0
        %3055 = vmatpush.msra.mxu0 0.0
        %3056 = vmatpush.msra.mxu0 0.0
        %3057 = vmatpush.msra.mxu0 0.0
        %3058 = vmatpush.msra.mxu0 0.0
        %3059 = vmatpush.msra.mxu0 0.0
        %3060 = vmatpush.msra.mxu0 0.0
        %3061 = vmatpush.msra.mxu0 0.0
        %3062 = vmatpush.msra.mxu0 0.0
        %3063 = vmatpush.msra.mxu0 0.0
        %3064 = vmatpush.msra.mxu0 0.0
        %3065 = vmatpush.msra.mxu0 0.0
        %3066 = vmatpush.msra.mxu0 %v721
        %3067 = vmatpush.msra.mxu0 %v720
        %3068 = vmatpush.msra.mxu0 %v719
        %3069 = vmatpush.msra.mxu0 %v718
        %3070 = vmatmul.f32.gmra.mxu0 %v3052
        %v3071 = vpop.f32.mrf.mxu0
        %v3072 = vadd.f32 0.0, %v3071
        %3073 = vdwg.mxu0
        %v3074 = vsel %vm898, %v3072, -inf
        %v3075 = vrot.slane %v3074, 4
        %v3076 = vmax.f32 %v3074, %v3075
        %v3077 = vrot.slane %v3076, 2
        %v3078 = vmax.f32 %v3076, %v3077
        %v3079 = vrot.slane %v3078, 1
        %v3080 = vmax.f32 %v3078, %v3079
        %v3081 = vsub.f32 %v3072, %v3080
        %v3082 = vmul.f32 %v3081, 1.442695
        %v3083 = vpow.pop %v3082
        %v3084 = vsel %vm898, %v3083, 0.0
        %v3085 = vrot.slane %v3084, 4
        %v3086 = vadd.f32 %v3084, %v3085
        %v3087 = vrot.slane %v3086, 2
        %v3088 = vadd.f32 %v3086, %v3087
        %v3089 = vrot.slane %v3088, 1
        %v3090 = vadd.f32 %v3088, %v3089
        %v3091 = vrcp.pop %v3090
        %v3092 = vmul.f32 %v3090, %v3091
        %v3093 = vsub.f32 1.0, %v3092
        %v3094 = vmul.f32 %v3091, %v3093
        %v3095 = vadd.f32 %v3091, %v3094
        %vm3096 = vweird.f32 %v3090
        %vm3097 = vweird.f32 %v3091
        %vm3098 = vmor %vm3096, %vm3097
        %v3099 = vsel %vm3098, %v3091, %v3095
        %v3100 = vand.u32 2147483647, %v3090
        %vm3101 = vcmp.eq.f32.partialorder %v3100, 8.507059e+37
        %v3102 = vand.u32 %v3090, 2147483648
        %v3103 = vor.u32 1.1754944e-38, %v3102
        %v3104 = vsel %vm3101, %v3103, %v3099
        %v3105 = vmul.f32 %v3083, %v3104
        %v3107 = vsel %vm931, %v3105, 0
        %3109 = vmatpush.xpose.msra.mxu0 0.0
        %3110 = vmatpush.xpose.msra.mxu0 0.0
        %3111 = vmatpush.xpose.msra.mxu0 0.0
        %3112 = vmatpush.xpose.msra.mxu0 0.0
        %3113 = vmatpush.xpose.msra.mxu0 0.0
        %3114 = vmatpush.xpose.msra.mxu0 0.0
        %3115 = vmatpush.xpose.msra.mxu0 0.0
        %3116 = vmatpush.xpose.msra.mxu0 0.0
        %3117 = vmatpush.xpose.msra.mxu0 0.0
        %3118 = vmatpush.xpose.msra.mxu0 0.0
        %3119 = vmatpush.xpose.msra.mxu0 0.0
        %3120 = vmatpush.xpose.msra.mxu0 0.0
        %3121 = vmatpush.xpose.msra.mxu0 %v945
        %3122 = vmatpush.xpose.msra.mxu0 %v942
        %3123 = vmatpush.xpose.msra.mxu0 %v939
        %3124 = vmatpush.xpose.msra.mxu0 %v936
        %3125 = vmatmul.f32.gmra.mxu0 %v3107
        %v3126 = vpop.f32.mrf.mxu0
        %v3127 = vadd.f32 0.0, %v3126
        %3128 = vdwg.mxu0
        %v3129 = vmul.f32 %v3127, %v3046
        %v3130 = vsel %vm968, %v3129, 0.0
        %v3131 = vrot.slane %v3130, 4
        %v3132 = vadd.f32 %v3130, %v3131
        %v3133 = vrot.slane %v3132, 2
        %v3134 = vadd.f32 %v3132, %v3133
        %v3135 = vrot.slane %v3134, 1
        %v3136 = vadd.f32 %v3134, %v3135
        %v3137 = vld [vmem:[#allocation11] sm:$0xff]
        %v3138 = vld [vmem:[#allocation11 + $0x8] sm:$0xff]
        %v3139 = vld [vmem:[#allocation11 + $0x10] sm:$0xff]
        %v3140 = vld [vmem:[#allocation11 + $0x18] sm:$0xff]
        %v3141 = vld [vmem:[%s10] sm:$0x1]
        %v3143 = vsel %vm753, %v3136, 0
        %v3146 = vsel %vm753, %v3137, 0
        %v3149 = vsel %vm753, %v3138, 0
        %v3152 = vsel %vm753, %v3139, 0
        %v3155 = vsel %vm753, %v3140, 0
        %3157 = vmatpush.xpose.msra.mxu0 0.0
        %3158 = vmatpush.xpose.msra.mxu0 0.0
        %3159 = vmatpush.xpose.msra.mxu0 0.0
        %3160 = vmatpush.xpose.msra.mxu0 0.0
        %3161 = vmatpush.xpose.msra.mxu0 0.0
        %3162 = vmatpush.xpose.msra.mxu0 0.0
        %3163 = vmatpush.xpose.msra.mxu0 0.0
        %3164 = vmatpush.xpose.msra.mxu0 0.0
        %3165 = vmatpush.xpose.msra.mxu0 0.0
        %3166 = vmatpush.xpose.msra.mxu0 0.0
        %3167 = vmatpush.xpose.msra.mxu0 0.0
        %3168 = vmatpush.xpose.msra.mxu0 0.0
        %3169 = vmatpush.xpose.msra.mxu0 %v3155
        %3170 = vmatpush.xpose.msra.mxu0 %v3152
        %3171 = vmatpush.xpose.msra.mxu0 %v3149
        %3172 = vmatpush.xpose.msra.mxu0 %v3146
        %3173 = vmatmul.f32.gmra.mxu0 %v3143
        %v3174 = vpop.f32.mrf.mxu0
        %v3175 = vadd.f32 %v3141, %v3174
        %3176 = vdwg.mxu0
        %v3177 = vld [vmem:[#allocation12] sm:$0xff]
        %v3178 = vld [vmem:[#allocation12 + $0x8] sm:$0xff]
        %v3179 = vld [vmem:[#allocation12 + $0x10] sm:$0xff]
        %v3180 = vld [vmem:[#allocation12 + $0x18] sm:$0xff]
        %v3181 = vld [vmem:[%s12] sm:$0x1]
        %v3183 = vsel %vm753, %v3175, 0
        %v3186 = vsel %vm753, %v3177, 0
        %v3189 = vsel %vm753, %v3178, 0
        %v3192 = vsel %vm753, %v3179, 0
        %v3195 = vsel %vm753, %v3180, 0
        %3197 = vmatpush.xpose.msra.mxu0 0.0
        %3198 = vmatpush.xpose.msra.mxu0 0.0
        %3199 = vmatpush.xpose.msra.mxu0 0.0
        %3200 = vmatpush.xpose.msra.mxu0 0.0
        %3201 = vmatpush.xpose.msra.mxu0 0.0
        %3202 = vmatpush.xpose.msra.mxu0 0.0
        %3203 = vmatpush.xpose.msra.mxu0 0.0
        %3204 = vmatpush.xpose.msra.mxu0 0.0
        %3205 = vmatpush.xpose.msra.mxu0 0.0
        %3206 = vmatpush.xpose.msra.mxu0 0.0
        %3207 = vmatpush.xpose.msra.mxu0 0.0
        %3208 = vmatpush.xpose.msra.mxu0 0.0
        %3209 = vmatpush.xpose.msra.mxu0 %v3195
        %3210 = vmatpush.xpose.msra.mxu0 %v3192
        %3211 = vmatpush.xpose.msra.mxu0 %v3189
        %3212 = vmatpush.xpose.msra.mxu0 %v3186
        %3213 = vmatmul.f32.gmra.mxu0 %v3183
        %v3214 = vpop.f32.mrf.mxu0
        %v3215 = vadd.f32 %v3181, %v3214
        %3216 = vdwg.mxu0
        %v3217 = vld [vmem:[#allocation14] sm:$0xff]
        %v3218 = vld [vmem:[#allocation14 + $0x8] sm:$0xff]
        %v3219 = vld [vmem:[#allocation14 + $0x10] sm:$0xff]
        %v3220 = vld [vmem:[#allocation14 + $0x18] sm:$0xff]
        %v3221 = vld [vmem:[%s14] sm:$0x1]
        %v3223 = vsel %vm753, %v3215, 0
        %v3226 = vsel %vm753, %v3217, 0
        %v3229 = vsel %vm753, %v3218, 0
        %v3232 = vsel %vm753, %v3219, 0
        %v3235 = vsel %vm753, %v3220, 0
        %3237 = vmatpush.xpose.msra.mxu0 0.0
        %3238 = vmatpush.xpose.msra.mxu0 0.0
        %3239 = vmatpush.xpose.msra.mxu0 0.0
        %3240 = vmatpush.xpose.msra.mxu0 0.0
        %3241 = vmatpush.xpose.msra.mxu0 0.0
        %3242 = vmatpush.xpose.msra.mxu0 0.0
        %3243 = vmatpush.xpose.msra.mxu0 0.0
        %3244 = vmatpush.xpose.msra.mxu0 0.0
        %3245 = vmatpush.xpose.msra.mxu0 0.0
        %3246 = vmatpush.xpose.msra.mxu0 0.0
        %3247 = vmatpush.xpose.msra.mxu0 0.0
        %3248 = vmatpush.xpose.msra.mxu0 0.0
        %3249 = vmatpush.xpose.msra.mxu0 %v3235
        %3250 = vmatpush.xpose.msra.mxu0 %v3232
        %3251 = vmatpush.xpose.msra.mxu0 %v3229
        %3252 = vmatpush.xpose.msra.mxu0 %v3226
        %3253 = vmatmul.f32.gmra.mxu0 %v3223
        %v3254 = vpop.f32.mrf.mxu0
        %v3255 = vadd.f32 %v3221, %v3254
        %3256 = vdwg.mxu0
        %3257 = vst.msk [vmem:[%s707 + $0x6] sm:$0x1] %vm1096, %v3175
        %3258 = vst.msk [vmem:[%s714 + $0x6] sm:$0x1] %vm1096, %v3255
        %v3259 = vld [vmem:[%s613 + $0x7] sm:$0x1]
        %s3260 = scalar_lea.vmem %s628, 28 [#allocation7]
        %v3261 = vld [vmem:[%s3260] sm:$0xf]
        %v3263 = vsel %vm724, %v3261, 0
        %3265 = vmatpush.msra.mxu0 0.0
        %3266 = vmatpush.msra.mxu0 0.0
        %3267 = vmatpush.msra.mxu0 0.0
        %3268 = vmatpush.msra.mxu0 0.0
        %3269 = vmatpush.msra.mxu0 0.0
        %3270 = vmatpush.msra.mxu0 0.0
        %3271 = vmatpush.msra.mxu0 0.0
        %3272 = vmatpush.msra.mxu0 0.0
        %3273 = vmatpush.msra.mxu0 0.0
        %3274 = vmatpush.msra.mxu0 0.0
        %3275 = vmatpush.msra.mxu0 0.0
        %3276 = vmatpush.msra.mxu0 0.0
        %3277 = vmatpush.msra.mxu0 0.0
        %3278 = vmatpush.msra.mxu0 0.0
        %3279 = vmatpush.msra.mxu0 %v717
        %3280 = vmatpush.msra.mxu0 %v716
        %3281 = vmatmul.f32.gmra.mxu0 %v3263
        %v3282 = vpop.f32.mrf.mxu0
        %v3283 = vadd.f32 0.0, %v3282
        %3284 = vdwg.mxu0
        %v3285 = vld [vmem:[%s3] sm:$0xff]
        %v3286 = vld [vmem:[%s3 + $0x8] sm:$0xff]
        %v3287 = vld [vmem:[%s3 + $0x10] sm:$0xff]
        %v3288 = vld [vmem:[%s3 + $0x18] sm:$0xff]
        %v3289 = vld [vmem:[%s4] sm:$0x1]
        %v3291 = vsel %vm753, %v3259, 0
        %v3294 = vsel %vm753, %v3285, 0
        %v3297 = vsel %vm753, %v3286, 0
        %v3300 = vsel %vm753, %v3287, 0
        %v3303 = vsel %vm753, %v3288, 0
        %3305 = vmatpush.xpose.msra.mxu0 0.0
        %3306 = vmatpush.xpose.msra.mxu0 0.0
        %3307 = vmatpush.xpose.msra.mxu0 0.0
        %3308 = vmatpush.xpose.msra.mxu0 0.0
        %3309 = vmatpush.xpose.msra.mxu0 0.0
        %3310 = vmatpush.xpose.msra.mxu0 0.0
        %3311 = vmatpush.xpose.msra.mxu0 0.0
        %3312 = vmatpush.xpose.msra.mxu0 0.0
        %3313 = vmatpush.xpose.msra.mxu0 0.0
        %3314 = vmatpush.xpose.msra.mxu0 0.0
        %3315 = vmatpush.xpose.msra.mxu0 0.0
        %3316 = vmatpush.xpose.msra.mxu0 0.0
        %3317 = vmatpush.xpose.msra.mxu0 %v3303
        %3318 = vmatpush.xpose.msra.mxu0 %v3300
        %3319 = vmatpush.xpose.msra.mxu0 %v3297
        %3320 = vmatpush.xpose.msra.mxu0 %v3294
        %3321 = vmatmul.f32.gmra.mxu0 %v3291
        %v3322 = vpop.f32.mrf.mxu0
        %v3323 = vadd.f32 %v3289, %v3322
        %3324 = vdwg.mxu0
        %v3325 = vld [vmem:[#allocation8] sm:$0xff]
        %v3326 = vld [vmem:[#allocation8 + $0x8] sm:$0xff]
        %v3327 = vld [vmem:[#allocation8 + $0x10] sm:$0xff]
        %v3328 = vld [vmem:[#allocation8 + $0x18] sm:$0xff]
        %v3329 = vld [vmem:[%s6] sm:$0x1]
        %v3331 = vperm.slane %v3329, 0
        %v3334 = vsel %vm753, %v3283, 0
        %v3337 = vsel %vm753, %v3325, 0
        %v3340 = vsel %vm753, %v3326, 0
        %v3343 = vsel %vm753, %v3327, 0
        %v3346 = vsel %vm753, %v3328, 0
        %3348 = vmatpush.xpose.msra.mxu0 0.0
        %3349 = vmatpush.xpose.msra.mxu0 0.0
        %3350 = vmatpush.xpose.msra.mxu0 0.0
        %3351 = vmatpush.xpose.msra.mxu0 0.0
        %3352 = vmatpush.xpose.msra.mxu0 0.0
        %3353 = vmatpush.xpose.msra.mxu0 0.0
        %3354 = vmatpush.xpose.msra.mxu0 0.0
        %3355 = vmatpush.xpose.msra.mxu0 0.0
        %3356 = vmatpush.xpose.msra.mxu0 0.0
        %3357 = vmatpush.xpose.msra.mxu0 0.0
        %3358 = vmatpush.xpose.msra.mxu0 0.0
        %3359 = vmatpush.xpose.msra.mxu0 0.0
        %3360 = vmatpush.xpose.msra.mxu0 %v3346
        %3361 = vmatpush.xpose.msra.mxu0 %v3343
        %3362 = vmatpush.xpose.msra.mxu0 %v3340
        %3363 = vmatpush.xpose.msra.mxu0 %v3337
        %3364 = vmatmul.f32.gmra.mxu0 %v3334
        %v3365 = vpop.f32.mrf.mxu0
        %v3366 = vadd.f32 %v3331, %v3365
        %3367 = vdwg.mxu0
        %v3368 = vld [vmem:[#allocation9] sm:$0xff]
        %v3369 = vld [vmem:[#allocation9 + $0x8] sm:$0xff]
        %v3370 = vld [vmem:[#allocation9 + $0x10] sm:$0xff]
        %v3371 = vld [vmem:[#allocation9 + $0x18] sm:$0xff]
        %v3372 = vld [vmem:[%s8] sm:$0x1]
        %v3374 = vperm.slane %v3372, 0
        %v3377 = vsel %vm753, %v3368, 0
        %v3380 = vsel %vm753, %v3369, 0
        %v3383 = vsel %vm753, %v3370, 0
        %v3386 = vsel %vm753, %v3371, 0
        %3388 = vmatpush.xpose.msra.mxu0 0.0
        %3389 = vmatpush.xpose.msra.mxu0 0.0
        %3390 = vmatpush.xpose.msra.mxu0 0.0
        %3391 = vmatpush.xpose.msra.mxu0 0.0
        %3392 = vmatpush.xpose.msra.mxu0 0.0
        %3393 = vmatpush.xpose.msra.mxu0 0.0
        %3394 = vmatpush.xpose.msra.mxu0 0.0
        %3395 = vmatpush.xpose.msra.mxu0 0.0
        %3396 = vmatpush.xpose.msra.mxu0 0.0
        %3397 = vmatpush.xpose.msra.mxu0 0.0
        %3398 = vmatpush.xpose.msra.mxu0 0.0
        %3399 = vmatpush.xpose.msra.mxu0 0.0
        %3400 = vmatpush.xpose.msra.mxu0 %v3386
        %3401 = vmatpush.xpose.msra.mxu0 %v3383
        %3402 = vmatpush.xpose.msra.mxu0 %v3380
        %3403 = vmatpush.xpose.msra.mxu0 %v3377
        %3404 = vmatmul.f32.gmra.mxu0 %v3334
        %v3405 = vpop.f32.mrf.mxu0
        %v3406 = vadd.f32 %v3374, %v3405
        %3407 = vdwg.mxu0
        %v3408 = vperm.slane %v3323, 0
        %v3409 = vmul.f32 %v3408, %v3366
        %v3410 = vmul.f32 %v3409, 0.35355338
        %v3412 = vsel %vm753, %v3410, 0
        %3414 = vmatpush.msra.mxu0 0.0
        %3415 = vmatpush.msra.mxu0 0.0
        %3416 = vmatpush.msra.mxu0 0.0
        %3417 = vmatpush.msra.mxu0 0.0
        %3418 = vmatpush.msra.mxu0 0.0
        %3419 = vmatpush.msra.mxu0 0.0
        %3420 = vmatpush.msra.mxu0 0.0
        %3421 = vmatpush.msra.mxu0 0.0
        %3422 = vmatpush.msra.mxu0 0.0
        %3423 = vmatpush.msra.mxu0 0.0
        %3424 = vmatpush.msra.mxu0 0.0
        %3425 = vmatpush.msra.mxu0 0.0
        %3426 = vmatpush.msra.mxu0 %v721
        %3427 = vmatpush.msra.mxu0 %v720
        %3428 = vmatpush.msra.mxu0 %v719
        %3429 = vmatpush.msra.mxu0 %v718
        %3430 = vmatmul.f32.gmra.mxu0 %v3412
        %v3431 = vpop.f32.mrf.mxu0
        %v3432 = vadd.f32 0.0, %v3431
        %3433 = vdwg.mxu0
        %v3434 = vsel %vm898, %v3432, -inf
        %v3435 = vrot.slane %v3434, 4
        %v3436 = vmax.f32 %v3434, %v3435
        %v3437 = vrot.slane %v3436, 2
        %v3438 = vmax.f32 %v3436, %v3437
        %v3439 = vrot.slane %v3438, 1
        %v3440 = vmax.f32 %v3438, %v3439
        %v3441 = vsub.f32 %v3432, %v3440
        %v3442 = vmul.f32 %v3441, 1.442695
        %v3443 = vpow.pop %v3442
        %v3444 = vsel %vm898, %v3443, 0.0
        %v3445 = vrot.slane %v3444, 4
        %v3446 = vadd.f32 %v3444, %v3445
        %v3447 = vrot.slane %v3446, 2
        %v3448 = vadd.f32 %v3446, %v3447
        %v3449 = vrot.slane %v3448, 1
        %v3450 = vadd.f32 %v3448, %v3449
        %v3451 = vrcp.pop %v3450
        %v3452 = vmul.f32 %v3450, %v3451
        %v3453 = vsub.f32 1.0, %v3452
        %v3454 = vmul.f32 %v3451, %v3453
        %v3455 = vadd.f32 %v3451, %v3454
        %vm3456 = vweird.f32 %v3450
        %vm3457 = vweird.f32 %v3451
        %vm3458 = vmor %vm3456, %vm3457
        %v3459 = vsel %vm3458, %v3451, %v3455
        %v3460 = vand.u32 2147483647, %v3450
        %vm3461 = vcmp.eq.f32.partialorder %v3460, 8.507059e+37
        %v3462 = vand.u32 %v3450, 2147483648
        %v3463 = vor.u32 1.1754944e-38, %v3462
        %v3464 = vsel %vm3461, %v3463, %v3459
        %v3465 = vmul.f32 %v3443, %v3464
        %v3467 = vsel %vm931, %v3465, 0
        %3469 = vmatpush.xpose.msra.mxu0 0.0
        %3470 = vmatpush.xpose.msra.mxu0 0.0
        %3471 = vmatpush.xpose.msra.mxu0 0.0
        %3472 = vmatpush.xpose.msra.mxu0 0.0
        %3473 = vmatpush.xpose.msra.mxu0 0.0
        %3474 = vmatpush.xpose.msra.mxu0 0.0
        %3475 = vmatpush.xpose.msra.mxu0 0.0
        %3476 = vmatpush.xpose.msra.mxu0 0.0
        %3477 = vmatpush.xpose.msra.mxu0 0.0
        %3478 = vmatpush.xpose.msra.mxu0 0.0
        %3479 = vmatpush.xpose.msra.mxu0 0.0
        %3480 = vmatpush.xpose.msra.mxu0 0.0
        %3481 = vmatpush.xpose.msra.mxu0 %v945
        %3482 = vmatpush.xpose.msra.mxu0 %v942
        %3483 = vmatpush.xpose.msra.mxu0 %v939
        %3484 = vmatpush.xpose.msra.mxu0 %v936
        %3485 = vmatmul.f32.gmra.mxu0 %v3467
        %v3486 = vpop.f32.mrf.mxu0
        %v3487 = vadd.f32 0.0, %v3486
        %3488 = vdwg.mxu0
        %v3489 = vmul.f32 %v3487, %v3406
        %v3490 = vsel %vm968, %v3489, 0.0
        %v3491 = vrot.slane %v3490, 4
        %v3492 = vadd.f32 %v3490, %v3491
        %v3493 = vrot.slane %v3492, 2
        %v3494 = vadd.f32 %v3492, %v3493
        %v3495 = vrot.slane %v3494, 1
        %v3496 = vadd.f32 %v3494, %v3495
        %v3497 = vld [vmem:[#allocation11] sm:$0xff]
        %v3498 = vld [vmem:[#allocation11 + $0x8] sm:$0xff]
        %v3499 = vld [vmem:[#allocation11 + $0x10] sm:$0xff]
        %v3500 = vld [vmem:[#allocation11 + $0x18] sm:$0xff]
        %v3501 = vld [vmem:[%s10] sm:$0x1]
        %v3503 = vsel %vm753, %v3496, 0
        %v3506 = vsel %vm753, %v3497, 0
        %v3509 = vsel %vm753, %v3498, 0
        %v3512 = vsel %vm753, %v3499, 0
        %v3515 = vsel %vm753, %v3500, 0
        %3517 = vmatpush.xpose.msra.mxu0 0.0
        %3518 = vmatpush.xpose.msra.mxu0 0.0
        %3519 = vmatpush.xpose.msra.mxu0 0.0
        %3520 = vmatpush.xpose.msra.mxu0 0.0
        %3521 = vmatpush.xpose.msra.mxu0 0.0
        %3522 = vmatpush.xpose.msra.mxu0 0.0
        %3523 = vmatpush.xpose.msra.mxu0 0.0
        %3524 = vmatpush.xpose.msra.mxu0 0.0
        %3525 = vmatpush.xpose.msra.mxu0 0.0
        %3526 = vmatpush.xpose.msra.mxu0 0.0
        %3527 = vmatpush.xpose.msra.mxu0 0.0
        %3528 = vmatpush.xpose.msra.mxu0 0.0
        %3529 = vmatpush.xpose.msra.mxu0 %v3515
        %3530 = vmatpush.xpose.msra.mxu0 %v3512
        %3531 = vmatpush.xpose.msra.mxu0 %v3509
        %3532 = vmatpush.xpose.msra.mxu0 %v3506
        %3533 = vmatmul.f32.gmra.mxu0 %v3503
        %v3534 = vpop.f32.mrf.mxu0
        %v3535 = vadd.f32 %v3501, %v3534
        %3536 = vdwg.mxu0
        %v3537 = vld [vmem:[#allocation12] sm:$0xff]
        %v3538 = vld [vmem:[#allocation12 + $0x8] sm:$0xff]
        %v3539 = vld [vmem:[#allocation12 + $0x10] sm:$0xff]
        %v3540 = vld [vmem:[#allocation12 + $0x18] sm:$0xff]
        %v3541 = vld [vmem:[%s12] sm:$0x1]
        %v3543 = vsel %vm753, %v3535, 0
        %v3546 = vsel %vm753, %v3537, 0
        %v3549 = vsel %vm753, %v3538, 0
        %v3552 = vsel %vm753, %v3539, 0
        %v3555 = vsel %vm753, %v3540, 0
        %3557 = vmatpush.xpose.msra.mxu0 0.0
        %3558 = vmatpush.xpose.msra.mxu0 0.0
        %3559 = vmatpush.xpose.msra.mxu0 0.0
        %3560 = vmatpush.xpose.msra.mxu0 0.0
        %3561 = vmatpush.xpose.msra.mxu0 0.0
        %3562 = vmatpush.xpose.msra.mxu0 0.0
        %3563 = vmatpush.xpose.msra.mxu0 0.0
        %3564 = vmatpush.xpose.msra.mxu0 0.0
        %3565 = vmatpush.xpose.msra.mxu0 0.0
        %3566 = vmatpush.xpose.msra.mxu0 0.0
        %3567 = vmatpush.xpose.msra.mxu0 0.0
        %3568 = vmatpush.xpose.msra.mxu0 0.0
        %3569 = vmatpush.xpose.msra.mxu0 %v3555
        %3570 = vmatpush.xpose.msra.mxu0 %v3552
        %3571 = vmatpush.xpose.msra.mxu0 %v3549
        %3572 = vmatpush.xpose.msra.mxu0 %v3546
        %3573 = vmatmul.f32.gmra.mxu0 %v3543
        %v3574 = vpop.f32.mrf.mxu0
        %v3575 = vadd.f32 %v3541, %v3574
        %3576 = vdwg.mxu0
        %v3577 = vld [vmem:[#allocation14] sm:$0xff]
        %v3578 = vld [vmem:[#allocation14 + $0x8] sm:$0xff]
        %v3579 = vld [vmem:[#allocation14 + $0x10] sm:$0xff]
        %v3580 = vld [vmem:[#allocation14 + $0x18] sm:$0xff]
        %v3581 = vld [vmem:[%s14] sm:$0x1]
        %v3583 = vsel %vm753, %v3575, 0
        %v3586 = vsel %vm753, %v3577, 0
        %v3589 = vsel %vm753, %v3578, 0
        %v3592 = vsel %vm753, %v3579, 0
        %v3595 = vsel %vm753, %v3580, 0
        %3597 = vmatpush.xpose.msra.mxu0 0.0
        %3598 = vmatpush.xpose.msra.mxu0 0.0
        %3599 = vmatpush.xpose.msra.mxu0 0.0
        %3600 = vmatpush.xpose.msra.mxu0 0.0
        %3601 = vmatpush.xpose.msra.mxu0 0.0
        %3602 = vmatpush.xpose.msra.mxu0 0.0
        %3603 = vmatpush.xpose.msra.mxu0 0.0
        %3604 = vmatpush.xpose.msra.mxu0 0.0
        %3605 = vmatpush.xpose.msra.mxu0 0.0
        %3606 = vmatpush.xpose.msra.mxu0 0.0
        %3607 = vmatpush.xpose.msra.mxu0 0.0
        %3608 = vmatpush.xpose.msra.mxu0 0.0
        %3609 = vmatpush.xpose.msra.mxu0 %v3595
        %3610 = vmatpush.xpose.msra.mxu0 %v3592
        %3611 = vmatpush.xpose.msra.mxu0 %v3589
        %3612 = vmatpush.xpose.msra.mxu0 %v3586
        %3613 = vmatmul.f32.gmra.mxu0 %v3583
        %v3614 = vpop.f32.mrf.mxu0
        %v3615 = vadd.f32 %v3581, %v3614
        %3616 = vdwg.mxu0
        %3617 = vst.msk [vmem:[%s707 + $0x7] sm:$0x1] %vm1096, %v3535
        %3618 = vst.msk [vmem:[%s714 + $0x7] sm:$0x1] %vm1096, %v3615
        %s3619 = sand.u32 %s395, 1
        %s3620 = scalar_lea.sflag [#allocation4], %s3619
        %s3621 = sand.u32 %s395, 1
        %s3622 = smul.addr %s3621, 8
        %s3623 = scalar_lea.vmem [#allocation15], %s3622
        %s3624 = sand.u32 %s421, 1
        %s3625 = scalar_lea.sflag [#allocation17], %s3624
        %s3626 = sand.u32 %s421, 1
        %s3627 = smul.addr %s3626, 8
        %s3628 = scalar_lea.vmem [#allocation16], %s3627
        // Predicated region
        $region117: #{tpu_custom_call.1} parent=83 // pred_check
          %p3629 = pneg %p405
        $region118: #{tpu_custom_call.1} parent=83 // pred_check_branch
          %3631 = sbr.rel (%p3629) target = $region120
        $region119: #{tpu_custom_call.1} parent=83 // pred_region
          %3633 = vsyncadd %s3620, 0
          %s3634 = smul.addr %s41, 8
          %s3635 = scalar_lea.hbm %s16, %s3634
          %s3637 = sshll.u32 %s3623, 4
          %s3638 = int_to_ptr.vmem [resolvable:$true] %s3637
          %s3639 = sshll.u32 %s3635, 4
          %s3640 = int_to_ptr.hbm [resolvable:$true] %s3639
          %3642 = dma.vmem_to_hbm [thread:$0]  %s3638, 128, %s3640, %s3620
        $region120: #{tpu_custom_call.1} parent=83 // pred_fallthru
          _
        // Predicated region
        $region121: #{tpu_custom_call.1} parent=83 // pred_check
          %p3643 = pneg %p431
        $region122: #{tpu_custom_call.1} parent=83 // pred_check_branch
          %3645 = sbr.rel (%p3643) target = $region124
        $region123: #{tpu_custom_call.1} parent=83 // pred_region
          %3647 = vsyncadd %s3625, 0
          %s3648 = smul.addr %s41, 8
          %s3649 = scalar_lea.hbm %s17, %s3648
          %s3651 = sshll.u32 %s3628, 4
          %s3652 = int_to_ptr.vmem [resolvable:$true] %s3651
          %s3653 = sshll.u32 %s3649, 4
          %s3654 = int_to_ptr.hbm [resolvable:$true] %s3653
          %3656 = dma.vmem_to_hbm [thread:$0]  %s3652, 128, %s3654, %s3625
        $region124: #{tpu_custom_call.1} parent=83 // pred_fallthru
          _
      $region84: #{tpu_custom_call.1} parent=5 // pred_fallthru
        _
      %p3657 = scmp.le.s32.totalorder 2, %s36
      // Predicated region
      $region125: #{tpu_custom_call.1} parent=5 // pred_check
        %p3658 = pneg %p3657
      $region126: #{tpu_custom_call.1} parent=5 // pred_check_branch
        %3660 = sbr.rel (%p3658) target = $region128
      $region127: #{tpu_custom_call.1} parent=5 // pred_region
        %s3661 = ssub.s32 %s36, 2
        // Predicated region
        $region129: #{tpu_custom_call.1} parent=127 // pred_check
          %p3662 = pneg %p411
        $region130: #{tpu_custom_call.1} parent=127 // pred_check_branch
          %3664 = sbr.rel (%p3662) target = $region132
        $region131: #{tpu_custom_call.1} parent=127 // pred_region
          %s3665 = sand.u32 %s396, 1
          %s3666 = scalar_lea.sflag [#allocation4], %s3665
          %s3667 = sand.u32 %s396, 1
          %s3668 = smul.addr %s3667, 8
          %s3669 = scalar_lea.vmem [#allocation15], %s3668
          %3671 = dma.done %s3666, 128
        $region132: #{tpu_custom_call.1} parent=127 // pred_fallthru
          _
        // Predicated region
        $region133: #{tpu_custom_call.1} parent=127 // pred_check
          %p3672 = pneg %p437
        $region134: #{tpu_custom_call.1} parent=127 // pred_check_branch
          %3674 = sbr.rel (%p3672) target = $region136
        $region135: #{tpu_custom_call.1} parent=127 // pred_region
          %s3675 = sand.u32 %s422, 1
          %s3676 = scalar_lea.sflag [#allocation17], %s3675
          %s3677 = sand.u32 %s422, 1
          %s3678 = smul.addr %s3677, 8
          %s3679 = scalar_lea.vmem [#allocation16], %s3678
          %3681 = dma.done %s3676, 128
        $region136: #{tpu_custom_call.1} parent=127 // pred_fallthru
          _
      $region128: #{tpu_custom_call.1} parent=5 // pred_fallthru
        _
    $region6: #{tpu_custom_call.1} parent=1 // loop_footer
      %s40 = sadd.s32 1, %s36
    $region7: #{tpu_custom_call.1} parent=1 // loop_footer_branch
      %35 = sbr.rel target = $region3
    $region8: #{tpu_custom_call.1} parent=1 // loop_exit
      _
    %3682 = vsyncpa [#allocation3], 1
    %s3683 = scalar_lea.sflag [#allocation3], 1
    %3684 = vsyncpa %s3683, 1
    %3685 = vsyncpa [#allocation6], 1
    %3686 = vsyncpa [#allocation10], 1
    %3687 = vsyncpa [#allocation13], 1
    %3688 = vsyncpa [#allocation4], 1
    %s3689 = scalar_lea.sflag [#allocation4], 1
    %3690 = vsyncpa %s3689, 1
    %3691 = vsyncpa [#allocation17], 1
    %s3692 = scalar_lea.sflag [#allocation17], 1
    %3693 = vsyncpa %s3692, 1

</llo_original>
